<compile_context>
chip_gen: v6e
topology: v6e:2x2x1
jax: 0.10.0
libtpu: 0.0.40
codegen_flags: <defaults>
</compile_context>

<pallas_src>
import math
from functools import partial

import jax
import jax.numpy as jnp
from jax import lax
from jax.experimental import pallas as pl
from jax.experimental.pallas import tpu as pltpu


# ------------------------------ activations --------------------------------

def _apply_act(x, act):
    if act is None:
        return x
    if act == 'sin':
        return jnp.sin(x)
    if act == 'relu':
        return jnp.maximum(x, 0.0)
    if act == 'tanh':
        return jnp.tanh(x)
    raise ValueError(f'Invalid activation: {act}')


# ----------------------------- fused Pallas kernel --------------------------

def _siren_fused_kernel(*refs, acts, final_act):
    """Fused SIREN forward for one row-tile, feature-major layout.

    refs = (x_t, w0_pt, b0, w1_pt, b1, ..., w_last_pt, out_t)
      x_t        : (in_f, tm)           transposed coordinate tile (lane-dense)
      w_i_pt     : (fout_i, fin_i)      PyTorch-layout weight, omega folded in
      b_i        : (fout_i, 1)          bias, omega folded in
      w_last_pt  : (out_f, hidden)      final weight (bias=False), omega folded
      out_t      : (out_f, tm)          lane-dense output tile
    """
    x_ref = refs[0]
    o_ref = refs[-1]
    w_last_ref = refs[-2]
    layer_refs = refs[1:-2]

    h = x_ref[...]                                  # (in_f, tm), feature-major
    for li, act in enumerate(acts):
        w = layer_refs[2 * li][...]                 # (fout, fin)
        b = layer_refs[2 * li + 1][...]             # (fout, 1)
        h = lax.dot_general(
            w, h.astype(w.dtype),
            dimension_numbers=(((1,), (0,)), ((), ())),
            preferred_element_type=jnp.float32)     # (fout, tm)
        h = _apply_act(h + b, act)                  # lane-dense VPU/EUP work

    # Final layer (bias=False in Siren): (out_f, hidden) @ (hidden, tm).
    w_last = w_last_ref[...]
    y = lax.dot_general(
        w_last, h.astype(w_last.dtype),
        dimension_numbers=(((1,), (0,)), ((), ())),
        preferred_element_type=jnp.float32)         # (out_f, tm)
    y = _apply_act(y, final_act)
    o_ref[...] = y.astype(o_ref.dtype)              # unmasked, lane-dense vst


# ------------------------------- Siren forward ------------------------------

def siren_forward(coords, params, *, tm=512, param_dtype=jnp.float32):
    """Fused SIREN forward.  coords: (N, in_f) -> (N, out_f) float32.

    params: list of (W, b, omega, act) with W stored as (in_f, out_f); the final
    entry must have b=None (Siren final layer has bias=False).
    """
    N, in_f = coords.shape
    assert len(params) >= 2
    *body_params, (w_last, b_last, omega_last, act_last) = params
    if b_last is not None:
        raise NotImplementedError(
            "Siren final layer has bias=False; got a non-None final bias.")
    hidden, out_f = w_last.shape

    # --- fold omega into params, build resident-weight specs (PyTorch layout) ---
    fused_inputs = []
    in_specs = [pl.BlockSpec((in_f, tm), lambda i: (0, i))]     # streamed coords^T
    acts = []
    for (w, b, omega, act) in body_params:
        fin, fout = w.shape
        fused_inputs.append((w * omega).T.astype(param_dtype))              # (fout, fin)
        fused_inputs.append((b * omega).reshape(fout, 1).astype(jnp.float32))
        in_specs.append(pl.BlockSpec((fout, fin), lambda i: (0, 0)))        # resident
        in_specs.append(pl.BlockSpec((fout, 1), lambda i: (0, 0)))          # resident
        acts.append(act)
    w_last_pt = (w_last * omega_last).T.astype(param_dtype)                 # (out_f, hidden)
    fused_inputs.append(w_last_pt)
    in_specs.append(pl.BlockSpec((out_f, hidden), lambda i: (0, 0)))        # resident

    # --- transpose coords and pad rows to a tile multiple (arbitrary N) ---
    n_tiles = pl.cdiv(N, tm)
    n_pad = n_tiles * tm
    x_t = coords.astype(jnp.float32).T                                      # (in_f, N)
    if n_pad != N:
        x_t = jnp.pad(x_t, ((0, 0), (0, n_pad - N)))

    # --- explicit VMEM budget (keeps the same tiling valid on v7x's 64 MiB) ---
    param_bytes = sum(int(a.size) * a.dtype.itemsize for a in fused_inputs)
    widths = [in_f] + [w.shape[1] for (w, _, _, _) in body_params] + [out_f]
    tile_bytes = tm * (in_f + out_f) * 4
    act_bytes = tm * max(widths) * 4
    vmem_limit = int(min(100 * 2**20,
                         max(32 * 2**20,
                             2 * param_bytes + 2 * tile_bytes
                             + 4 * act_bytes + (4 << 20))))

    kernel = partial(_siren_fused_kernel, acts=tuple(acts), final_act=act_last)
    out_t = pl.pallas_call(
        kernel,
        out_shape=jax.ShapeDtypeStruct((out_f, n_pad), jnp.float32),
        grid_spec=pltpu.PrefetchScalarGridSpec(
            num_scalar_prefetch=0,
            grid=(n_tiles,),
            in_specs=in_specs,
            out_specs=pl.BlockSpec((out_f, tm), lambda i: (0, i)),
        ),
        compiler_params=pltpu.CompilerParams(
            dimension_semantics=("parallel",),   # shards row tiles across 2 TCs on v7x
            vmem_limit_bytes=vmem_limit),
    )(x_t, *fused_inputs)

    # (out_f, n_pad) -> (N, out_f): layout plumbing only.
    return out_t.T[:N]


# --------------------------- Siren parameter init ---------------------------

def init_siren_params(key, in_features, out_features, hidden_features,
                      hidden_layers, activation):
    """Matches SingleLayer.init_weights(); W stored as (in, out).

    Final layer has bias=False (b=None), activation=None.
    """
    params = []
    layer_defs = [(in_features, hidden_features, activation, True, True)]
    for _ in range(hidden_layers):
        layer_defs.append((hidden_features, hidden_features, activation, False, True))
    layer_defs.append((hidden_features, out_features, None, False, False))

    for (fin, fout, act, is_first, has_bias) in layer_defs:
        omega = 30.0 if act == 'sin' else 1.0
        bound = (1.0 / fin) if is_first else (math.sqrt(6.0 / fin) / omega)
        key, sub = jax.random.split(key)
        w = jax.random.uniform(sub, (fin, fout), minval=-bound, maxval=bound,
                               dtype=jnp.float32)
        b = jnp.zeros((1, fout), jnp.float32) if has_bias else None
        params.append((w, b, omega, act))
    return params


# ----------------------------------- main -----------------------------------

if __name__ == "__main__":
    in_features = 2
    out_features = 1
    hidden_features = 32
    hidden_layers = 2
    activation = 'sin'

    N = 1000           # deliberately NOT a multiple of the row tile
    tm = 256           # row tile (default 512 for large N; small demo uses 256)

    key = jax.random.PRNGKey(0)
    key, ck = jax.random.split(key)
    coords = jax.random.uniform(ck, (N, in_features), minval=-1.0, maxval=1.0,
                                dtype=jnp.float32)
    params = init_siren_params(key, in_features, out_features,
                               hidden_features, hidden_layers, activation)

    fwd = jax.jit(lambda c: siren_forward(c, params, tm=tm))
    out = jax.block_until_ready(fwd(coords))
    assert out.shape == (N, out_features)
    assert out.dtype == jnp.float32

    # Pure-JAX reference of the original (unfolded) layer-by-layer math.
    ref = coords
    for (w, b, omega, act) in params:
        y = ref @ w
        if b is not None:
            y = y + b
        ref = _apply_act(y * omega, act)

    assert jnp.allclose(out, ref, atol=1e-5, rtol=1e-5), \
        float(jnp.max(jnp.abs(out - ref)))

    print("KERNEL_OK")
</pallas_src>

<mosaic_0001>
module attributes {stable_mosaic.version = 11 : i64} {
  func.func @_siren_fused_kernel(%arg0: i32, %arg1: memref<2x256xf32, #tpu.memory_space<vmem>>, %arg2: memref<32x2xf32, #tpu.memory_space<vmem>>, %arg3: memref<32x1xf32, #tpu.memory_space<vmem>>, %arg4: memref<32x32xf32, #tpu.memory_space<vmem>>, %arg5: memref<32x1xf32, #tpu.memory_space<vmem>>, %arg6: memref<32x32xf32, #tpu.memory_space<vmem>>, %arg7: memref<32x1xf32, #tpu.memory_space<vmem>>, %arg8: memref<1x32xf32, #tpu.memory_space<vmem>>, %arg9: memref<1x256xf32, #tpu.memory_space<vmem>>) attributes {dimension_semantics = [#tpu.dimension_semantics<parallel>], iteration_bounds = array<i64: 4>, scalar_prefetch = 0 : i64, scratch_operands = 0 : i64, tpu.core_type = #tpu.core_type<tc>, window_params = [{transform_indices = @transform_0, window_bounds = array<i64: 2, 256>}, {pipeline_mode = #tpu.pipeline_mode<synchronous>, transform_indices = @transform_1, window_bounds = array<i64: 32, 2>}, {pipeline_mode = #tpu.pipeline_mode<synchronous>, transform_indices = @transform_2, window_bounds = array<i64: 32, 1>}, {pipeline_mode = #tpu.pipeline_mode<synchronous>, transform_indices = @transform_3, window_bounds = array<i64: 32, 32>}, {pipeline_mode = #tpu.pipeline_mode<synchronous>, transform_indices = @transform_4, window_bounds = array<i64: 32, 1>}, {pipeline_mode = #tpu.pipeline_mode<synchronous>, transform_indices = @transform_5, window_bounds = array<i64: 32, 32>}, {pipeline_mode = #tpu.pipeline_mode<synchronous>, transform_indices = @transform_6, window_bounds = array<i64: 32, 1>}, {pipeline_mode = #tpu.pipeline_mode<synchronous>, transform_indices = @transform_7, window_bounds = array<i64: 1, 32>}, {transform_indices = @transform_8, window_bounds = array<i64: 1, 256>}]} {
    %c0 = arith.constant 0 : index
    %c0_0 = arith.constant 0 : index
    %0 = vector.load %arg1[%c0, %c0_0] : memref<2x256xf32, #tpu.memory_space<vmem>>, vector<2x256xf32>
    %c0_1 = arith.constant 0 : index
    %c0_2 = arith.constant 0 : index
    %1 = vector.load %arg2[%c0_1, %c0_2] : memref<32x2xf32, #tpu.memory_space<vmem>>, vector<32x2xf32>
    %c0_3 = arith.constant 0 : index
    %c0_4 = arith.constant 0 : index
    %2 = vector.load %arg3[%c0_3, %c0_4] : memref<32x1xf32, #tpu.memory_space<vmem>>, vector<32x1xf32>
    %cst = arith.constant dense<0.000000e+00> : vector<32x256xf32>
    %3 = tpu.matmul %1, %0, %cst {dimension_numbers = #tpu.dot_dimension_numbers<[1], [0], [0], [1], [0, 0, 1, 1], [], []>} : vector<32x2xf32>, vector<2x256xf32>, vector<32x256xf32> -> vector<32x256xf32>
    %4 = vector.broadcast %2 : vector<32x1xf32> to vector<32x256xf32>
    %5 = arith.addf %3, %4 : vector<32x256xf32>
    %6 = math.sin %5 : vector<32x256xf32>
    %c0_5 = arith.constant 0 : index
    %c0_6 = arith.constant 0 : index
    %7 = vector.load %arg4[%c0_5, %c0_6] : memref<32x32xf32, #tpu.memory_space<vmem>>, vector<32x32xf32>
    %c0_7 = arith.constant 0 : index
    %c0_8 = arith.constant 0 : index
    %8 = vector.load %arg5[%c0_7, %c0_8] : memref<32x1xf32, #tpu.memory_space<vmem>>, vector<32x1xf32>
    %cst_9 = arith.constant dense<0.000000e+00> : vector<32x256xf32>
    %9 = tpu.matmul %7, %6, %cst_9 {dimension_numbers = #tpu.dot_dimension_numbers<[1], [0], [0], [1], [0, 0, 1, 1], [], []>} : vector<32x32xf32>, vector<32x256xf32>, vector<32x256xf32> -> vector<32x256xf32>
    %10 = vector.broadcast %8 : vector<32x1xf32> to vector<32x256xf32>
    %11 = arith.addf %9, %10 : vector<32x256xf32>
    %12 = math.sin %11 : vector<32x256xf32>
    %c0_10 = arith.constant 0 : index
    %c0_11 = arith.constant 0 : index
    %13 = vector.load %arg6[%c0_10, %c0_11] : memref<32x32xf32, #tpu.memory_space<vmem>>, vector<32x32xf32>
    %c0_12 = arith.constant 0 : index
    %c0_13 = arith.constant 0 : index
    %14 = vector.load %arg7[%c0_12, %c0_13] : memref<32x1xf32, #tpu.memory_space<vmem>>, vector<32x1xf32>
    %cst_14 = arith.constant dense<0.000000e+00> : vector<32x256xf32>
    %15 = tpu.matmul %13, %12, %cst_14 {dimension_numbers = #tpu.dot_dimension_numbers<[1], [0], [0], [1], [0, 0, 1, 1], [], []>} : vector<32x32xf32>, vector<32x256xf32>, vector<32x256xf32> -> vector<32x256xf32>
    %16 = vector.broadcast %14 : vector<32x1xf32> to vector<32x256xf32>
    %17 = arith.addf %15, %16 : vector<32x256xf32>
    %18 = math.sin %17 : vector<32x256xf32>
    %c0_15 = arith.constant 0 : index
    %c0_16 = arith.constant 0 : index
    %19 = vector.load %arg8[%c0_15, %c0_16] : memref<1x32xf32, #tpu.memory_space<vmem>>, vector<1x32xf32>
    %cst_17 = arith.constant dense<0.000000e+00> : vector<1x256xf32>
    %20 = tpu.matmul %19, %18, %cst_17 {dimension_numbers = #tpu.dot_dimension_numbers<[1], [0], [0], [1], [0, 0, 1, 1], [], []>} : vector<1x32xf32>, vector<32x256xf32>, vector<1x256xf32> -> vector<1x256xf32>
    %c0_18 = arith.constant 0 : index
    %c0_19 = arith.constant 0 : index
    %21 = vector.load %arg9[%c0_18, %c0_19] : memref<1x256xf32, #tpu.memory_space<vmem>>, vector<1x256xf32>
    tpu.vector_store %arg9[%c0_18, %c0_19], %20 {strides = array<i32>} : memref<1x256xf32, #tpu.memory_space<vmem>>, vector<1x256xf32>,
    return
  }
  func.func @transform_0(%arg0: i32) -> (i32, i32) {
    %c0_i32 = arith.constant 0 : i32
    %c0_i32_0 = arith.constant 0 : i32
    return %c0_i32, %arg0 : i32, i32
  }
  func.func @transform_1(%arg0: i32) -> (i32, i32) {
    %c0_i32 = arith.constant 0 : i32
    %c0_i32_0 = arith.constant 0 : i32
    %c0_i32_1 = arith.constant 0 : i32
    return %c0_i32, %c0_i32_0 : i32, i32
  }
  func.func @transform_2(%arg0: i32) -> (i32, i32) {
    %c0_i32 = arith.constant 0 : i32
    %c0_i32_0 = arith.constant 0 : i32
    %c0_i32_1 = arith.constant 0 : i32
    return %c0_i32, %c0_i32_0 : i32, i32
  }
  func.func @transform_3(%arg0: i32) -> (i32, i32) {
    %c0_i32 = arith.constant 0 : i32
    %c0_i32_0 = arith.constant 0 : i32
    %c0_i32_1 = arith.constant 0 : i32
    return %c0_i32, %c0_i32_0 : i32, i32
  }
  func.func @transform_4(%arg0: i32) -> (i32, i32) {
    %c0_i32 = arith.constant 0 : i32
    %c0_i32_0 = arith.constant 0 : i32
    %c0_i32_1 = arith.constant 0 : i32
    return %c0_i32, %c0_i32_0 : i32, i32
  }
  func.func @transform_5(%arg0: i32) -> (i32, i32) {
    %c0_i32 = arith.constant 0 : i32
    %c0_i32_0 = arith.constant 0 : i32
    %c0_i32_1 = arith.constant 0 : i32
    return %c0_i32, %c0_i32_0 : i32, i32
  }
  func.func @transform_6(%arg0: i32) -> (i32, i32) {
    %c0_i32 = arith.constant 0 : i32
    %c0_i32_0 = arith.constant 0 : i32
    %c0_i32_1 = arith.constant 0 : i32
    return %c0_i32, %c0_i32_0 : i32, i32
  }
  func.func @transform_7(%arg0: i32) -> (i32, i32) {
    %c0_i32 = arith.constant 0 : i32
    %c0_i32_0 = arith.constant 0 : i32
    %c0_i32_1 = arith.constant 0 : i32
    return %c0_i32, %c0_i32_0 : i32, i32
  }
  func.func @transform_8(%arg0: i32) -> (i32, i32) {
    %c0_i32 = arith.constant 0 : i32
    %c0_i32_0 = arith.constant 0 : i32
    return %c0_i32, %arg0 : i32, i32
  }
}

</mosaic_0001>

<llo_original>
// kernel: _lambda_.1
$region0: #{_lambda_.1}
  #allocation0 [shape = 'u32[]', space=smem, size = 0x4, offset = 0x4, fixed_abs, tag = 'smem constant byte address 0x4 - core index']
  #allocation1 [shape = 'u32[144,128]{1,0:T(1,128)}', space=vmem, size = 0x12000, scoped, tag = 'internal scratch']
  %s0 = inlined_call_operand.vmem [shape: f32[2,1024], index: 0, kind: input, shape index: {}]
  %s1 = inlined_call_operand.hbm [shape: f32[32,2], index: 1, kind: input, shape index: {}]
  %s2 = inlined_call_operand.vmem [shape: f32[32,1], index: 2, kind: input, shape index: {}, may-alias: {2,4,6}]
  %s3 = inlined_call_operand.vmem [shape: f32[32,32], index: 3, kind: input, shape index: {}]
  %s4 = inlined_call_operand.vmem [shape: f32[32,1], index: 4, kind: input, shape index: {}, may-alias: {2,4,6}]
  %s5 = inlined_call_operand.vmem [shape: f32[32,32], index: 5, kind: input, shape index: {}]
  %s6 = inlined_call_operand.vmem [shape: f32[32,1], index: 6, kind: input, shape index: {}, may-alias: {2,4,6}]
  %s7 = inlined_call_operand.vmem [shape: f32[1,32], index: 7, kind: input, shape index: {}]
  %s8 = inlined_call_operand.vmem [shape: f32[1,1024], index: 8, kind: output, shape index: {}]
  %s9 = sld [smem:[#allocation0]]
  $region69: #{_lambda_.1} parent=0
    _
  %s11 = ssub.s32 1, %s9
  %s12 = scalar_select 0, %s11, %s9
  $region1: #{_lambda_.1} parent=0
    #allocation2 [shape = 'u8[16384]{0}', space=vmem, size = 0x4000, scoped, tag = 'input window, operand 1, single buffered']
    #allocation3 [shape = 's32[2]{0}', space=sflag, size = 0x8, scoped, tag = 'scoped memory for _lambda_.1']
    %13 = vsyncpa [#allocation3], 0
    loop: start=0, step=1, limit=6
    $region2: #{_lambda_.1} parent=1 // loop_pre_header
      _
    $region3: #{_lambda_.1} parent=1 // loop_header
      %s15 = sphi 0, %s19
      %p16 = scmp.ge.s32.totalorder %s15, 6
      %s25 = sphi 0, %s27
      %s28 = sphi 0, %s25
      %s29 = sphi 0, %s28
      %s45 = sphi 0, %s29
      %s49 = sphi 0, %s49
      %s51 = sphi 0, %s49
      %s52 = sphi 0, %s51
      %s66 = sphi 0, %s52
      %s70 = sphi 0, %s70
      %s72 = sphi 0, %s70
      %s73 = sphi 0, %s72
      %s87 = sphi 0, %s73
      %s91 = sphi 0, %s91
      %s93 = sphi 0, %s91
      %s94 = sphi 0, %s93
      %s108 = sphi 0, %s94
      %s112 = sphi 0, %s112
      %s114 = sphi 0, %s112
      %s115 = sphi 0, %s114
      %s129 = sphi 0, %s115
      %s133 = sphi 0, %s133
      %s135 = sphi 0, %s133
      %s136 = sphi 0, %s135
      %s150 = sphi 0, %s136
      %s154 = sphi 0, %s154
      %s156 = sphi 0, %s154
      %s157 = sphi 0, %s156
      %s171 = sphi 0, %s157
      %s175 = sphi 0, %s175
      %s177 = sphi 0, %s175
      %s178 = sphi 0, %s177
      %s192 = sphi 0, %s178
      %s198 = sphi 0, %s200
      %s201 = sphi 0, %s198
      %s202 = sphi 0, %s201
      %s218 = sphi 0, %s202
    $region4: #{_lambda_.1} parent=1 // loop_header_branch
      %18 = sbr.rel (%p16) target = $region8
    $region5: #{_lambda_.1} parent=1 // loop_body
      %s20 = ssub.s32 %s15, 1
      %s21 = ssub.s32 %s15, 2
      %s22 = sadd.s32 %s15, 1
      %s23 = ssub.s32 %s15, %s22
      %p24 = scmp.eq.s32.totalorder %s23, 0
      %s26 = sadd.s32 %s25, 1
      %s27 = scalar_select %p24, %s25, %s26
      %p30 = pneg %p24
      %p31 = scmp.eq.s32.totalorder %s15, 3
      %p32 = por %p30, %p31
      %p33 = scmp.ne.s32.totalorder %s25, %s28
      %p34 = scmp.eq.s32.totalorder %s15, 0
      %p35 = por %p33, %p34
      %p36 = scmp.ne.s32.totalorder %s25, %s28
      %p37 = scmp.eq.s32.totalorder %s20, 3
      %p38 = por %p36, %p37
      %p39 = scmp.ne.s32.totalorder %s28, %s29
      %p40 = scmp.eq.s32.totalorder %s20, 0
      %p41 = por %p39, %p40
      %p42 = scmp.ne.s32.totalorder %s28, %s29
      %p43 = scmp.eq.s32.totalorder %s21, 3
      %p44 = por %p42, %p43
      %p46 = scmp.ne.s32.totalorder %s29, %s45
      %p47 = scmp.eq.s32.totalorder %s21, 0
      %p48 = por %p46, %p47
      %s50 = sadd.s32 %s49, 1
      %p53 = scmp.eq.s32.totalorder %s15, 3
      %p54 = scmp.ne.s32.totalorder %s49, %s51
      %p55 = scmp.eq.s32.totalorder %s15, 0
      %p56 = por %p54, %p55
      %p57 = scmp.ne.s32.totalorder %s49, %s51
      %p58 = scmp.eq.s32.totalorder %s20, 3
      %p59 = por %p57, %p58
      %p60 = scmp.ne.s32.totalorder %s51, %s52
      %p61 = scmp.eq.s32.totalorder %s20, 0
      %p62 = por %p60, %p61
      %p63 = scmp.ne.s32.totalorder %s51, %s52
      %p64 = scmp.eq.s32.totalorder %s21, 3
      %p65 = por %p63, %p64
      %p67 = scmp.ne.s32.totalorder %s52, %s66
      %p68 = scmp.eq.s32.totalorder %s21, 0
      %p69 = por %p67, %p68
      %s71 = sadd.s32 %s70, 1
      %p74 = scmp.eq.s32.totalorder %s15, 3
      %p75 = scmp.ne.s32.totalorder %s70, %s72
      %p76 = scmp.eq.s32.totalorder %s15, 0
      %p77 = por %p75, %p76
      %p78 = scmp.ne.s32.totalorder %s70, %s72
      %p79 = scmp.eq.s32.totalorder %s20, 3
      %p80 = por %p78, %p79
      %p81 = scmp.ne.s32.totalorder %s72, %s73
      %p82 = scmp.eq.s32.totalorder %s20, 0
      %p83 = por %p81, %p82
      %p84 = scmp.ne.s32.totalorder %s72, %s73
      %p85 = scmp.eq.s32.totalorder %s21, 3
      %p86 = por %p84, %p85
      %p88 = scmp.ne.s32.totalorder %s73, %s87
      %p89 = scmp.eq.s32.totalorder %s21, 0
      %p90 = por %p88, %p89
      %s92 = sadd.s32 %s91, 1
      %p95 = scmp.eq.s32.totalorder %s15, 3
      %p96 = scmp.ne.s32.totalorder %s91, %s93
      %p97 = scmp.eq.s32.totalorder %s15, 0
      %p98 = por %p96, %p97
      %p99 = scmp.ne.s32.totalorder %s91, %s93
      %p100 = scmp.eq.s32.totalorder %s20, 3
      %p101 = por %p99, %p100
      %p102 = scmp.ne.s32.totalorder %s93, %s94
      %p103 = scmp.eq.s32.totalorder %s20, 0
      %p104 = por %p102, %p103
      %p105 = scmp.ne.s32.totalorder %s93, %s94
      %p106 = scmp.eq.s32.totalorder %s21, 3
      %p107 = por %p105, %p106
      %p109 = scmp.ne.s32.totalorder %s94, %s108
      %p110 = scmp.eq.s32.totalorder %s21, 0
      %p111 = por %p109, %p110
      %s113 = sadd.s32 %s112, 1
      %p116 = scmp.eq.s32.totalorder %s15, 3
      %p117 = scmp.ne.s32.totalorder %s112, %s114
      %p118 = scmp.eq.s32.totalorder %s15, 0
      %p119 = por %p117, %p118
      %p120 = scmp.ne.s32.totalorder %s112, %s114
      %p121 = scmp.eq.s32.totalorder %s20, 3
      %p122 = por %p120, %p121
      %p123 = scmp.ne.s32.totalorder %s114, %s115
      %p124 = scmp.eq.s32.totalorder %s20, 0
      %p125 = por %p123, %p124
      %p126 = scmp.ne.s32.totalorder %s114, %s115
      %p127 = scmp.eq.s32.totalorder %s21, 3
      %p128 = por %p126, %p127
      %p130 = scmp.ne.s32.totalorder %s115, %s129
      %p131 = scmp.eq.s32.totalorder %s21, 0
      %p132 = por %p130, %p131
      %s134 = sadd.s32 %s133, 1
      %p137 = scmp.eq.s32.totalorder %s15, 3
      %p138 = scmp.ne.s32.totalorder %s133, %s135
      %p139 = scmp.eq.s32.totalorder %s15, 0
      %p140 = por %p138, %p139
      %p141 = scmp.ne.s32.totalorder %s133, %s135
      %p142 = scmp.eq.s32.totalorder %s20, 3
      %p143 = por %p141, %p142
      %p144 = scmp.ne.s32.totalorder %s135, %s136
      %p145 = scmp.eq.s32.totalorder %s20, 0
      %p146 = por %p144, %p145
      %p147 = scmp.ne.s32.totalorder %s135, %s136
      %p148 = scmp.eq.s32.totalorder %s21, 3
      %p149 = por %p147, %p148
      %p151 = scmp.ne.s32.totalorder %s136, %s150
      %p152 = scmp.eq.s32.totalorder %s21, 0
      %p153 = por %p151, %p152
      %s155 = sadd.s32 %s154, 1
      %p158 = scmp.eq.s32.totalorder %s15, 3
      %p159 = scmp.ne.s32.totalorder %s154, %s156
      %p160 = scmp.eq.s32.totalorder %s15, 0
      %p161 = por %p159, %p160
      %p162 = scmp.ne.s32.totalorder %s154, %s156
      %p163 = scmp.eq.s32.totalorder %s20, 3
      %p164 = por %p162, %p163
      %p165 = scmp.ne.s32.totalorder %s156, %s157
      %p166 = scmp.eq.s32.totalorder %s20, 0
      %p167 = por %p165, %p166
      %p168 = scmp.ne.s32.totalorder %s156, %s157
      %p169 = scmp.eq.s32.totalorder %s21, 3
      %p170 = por %p168, %p169
      %p172 = scmp.ne.s32.totalorder %s157, %s171
      %p173 = scmp.eq.s32.totalorder %s21, 0
      %p174 = por %p172, %p173
      %s176 = sadd.s32 %s175, 1
      %p179 = scmp.eq.s32.totalorder %s15, 3
      %p180 = scmp.ne.s32.totalorder %s175, %s177
      %p181 = scmp.eq.s32.totalorder %s15, 0
      %p182 = por %p180, %p181
      %p183 = scmp.ne.s32.totalorder %s175, %s177
      %p184 = scmp.eq.s32.totalorder %s20, 3
      %p185 = por %p183, %p184
      %p186 = scmp.ne.s32.totalorder %s177, %s178
      %p187 = scmp.eq.s32.totalorder %s20, 0
      %p188 = por %p186, %p187
      %p189 = scmp.ne.s32.totalorder %s177, %s178
      %p190 = scmp.eq.s32.totalorder %s21, 3
      %p191 = por %p189, %p190
      %p193 = scmp.ne.s32.totalorder %s178, %s192
      %p194 = scmp.eq.s32.totalorder %s21, 0
      %p195 = por %p193, %p194
      %s196 = ssub.s32 %s15, %s22
      %p197 = scmp.eq.s32.totalorder %s196, 0
      %s199 = sadd.s32 %s198, 1
      %s200 = scalar_select %p197, %s198, %s199
      %p203 = pneg %p197
      %p204 = scmp.eq.s32.totalorder %s15, 3
      %p205 = por %p203, %p204
      %p206 = scmp.ne.s32.totalorder %s198, %s201
      %p207 = scmp.eq.s32.totalorder %s15, 0
      %p208 = por %p206, %p207
      %p209 = scmp.ne.s32.totalorder %s198, %s201
      %p210 = scmp.eq.s32.totalorder %s20, 3
      %p211 = por %p209, %p210
      %p212 = scmp.ne.s32.totalorder %s201, %s202
      %p213 = scmp.eq.s32.totalorder %s20, 0
      %p214 = por %p212, %p213
      %p215 = scmp.ne.s32.totalorder %s201, %s202
      %p216 = scmp.eq.s32.totalorder %s21, 3
      %p217 = por %p215, %p216
      %p219 = scmp.ne.s32.totalorder %s202, %s218
      %p220 = scmp.eq.s32.totalorder %s21, 0
      %p221 = por %p219, %p220
      %p222 = scmp.le.s32.totalorder 1, %s15
      %p223 = scmp.lt.s32.totalorder %s15, 5
      %p224 = pnand %p222, %p223
      %p225 = pneg %p224
      // Predicated region
      $region9: #{_lambda_.1} parent=5 // pred_check
        _
      $region10: #{_lambda_.1} parent=5 // pred_check_branch
        %227 = sbr.rel (%p224) target = $region12
      $region11: #{_lambda_.1} parent=5 // pred_region
        %s228 = ssub.s32 %s15, 1
        // Predicated region
        $region13: #{_lambda_.1} parent=11 // pred_check
          %p229 = pneg %p62
        $region14: #{_lambda_.1} parent=11 // pred_check_branch
          %231 = sbr.rel (%p229) target = $region16
        $region15: #{_lambda_.1} parent=11 // pred_region
          %s233 = ssub.s32 512, 512
          %234 = vsyncadd [#allocation3], %s233
          %s235 = sshll.u32 [#allocation2], 4
          %s236 = int_to_ptr.vmem [resolvable:$true] %s235
          %241 = dma.hbm_to_vmem [thread:$0]  %s1, 512, %s236, [#allocation3], 128, 128, 8
        $region16: #{_lambda_.1} parent=11 // pred_fallthru
          _
        // Predicated region
        $region17: #{_lambda_.1} parent=11 // pred_check
          %p242 = pneg %p83
        $region18: #{_lambda_.1} parent=11 // pred_check_branch
          %244 = sbr.rel (%p242) target = $region20
        $region19: #{_lambda_.1} parent=11 // pred_region
          _
        $region20: #{_lambda_.1} parent=11 // pred_fallthru
          _
        // Predicated region
        $region21: #{_lambda_.1} parent=11 // pred_check
          %p245 = pneg %p104
        $region22: #{_lambda_.1} parent=11 // pred_check_branch
          %247 = sbr.rel (%p245) target = $region24
        $region23: #{_lambda_.1} parent=11 // pred_region
          _
        $region24: #{_lambda_.1} parent=11 // pred_fallthru
          _
        // Predicated region
        $region25: #{_lambda_.1} parent=11 // pred_check
          %p248 = pneg %p125
        $region26: #{_lambda_.1} parent=11 // pred_check_branch
          %250 = sbr.rel (%p248) target = $region28
        $region27: #{_lambda_.1} parent=11 // pred_region
          _
        $region28: #{_lambda_.1} parent=11 // pred_fallthru
          _
        // Predicated region
        $region29: #{_lambda_.1} parent=11 // pred_check
          %p251 = pneg %p146
        $region30: #{_lambda_.1} parent=11 // pred_check_branch
          %253 = sbr.rel (%p251) target = $region32
        $region31: #{_lambda_.1} parent=11 // pred_region
          _
        $region32: #{_lambda_.1} parent=11 // pred_fallthru
          _
        // Predicated region
        $region33: #{_lambda_.1} parent=11 // pred_check
          %p254 = pneg %p167
        $region34: #{_lambda_.1} parent=11 // pred_check_branch
          %256 = sbr.rel (%p254) target = $region36
        $region35: #{_lambda_.1} parent=11 // pred_region
          _
        $region36: #{_lambda_.1} parent=11 // pred_fallthru
          _
        // Predicated region
        $region37: #{_lambda_.1} parent=11 // pred_check
          %p257 = pneg %p188
        $region38: #{_lambda_.1} parent=11 // pred_check_branch
          %259 = sbr.rel (%p257) target = $region40
        $region39: #{_lambda_.1} parent=11 // pred_region
          _
        $region40: #{_lambda_.1} parent=11 // pred_fallthru
          _
      $region12: #{_lambda_.1} parent=5 // pred_fallthru
        _
      %p260 = scmp.lt.s32.totalorder %s15, 4
      // Predicated region
      $region41: #{_lambda_.1} parent=5 // pred_check
        %p261 = pneg %p260
      $region42: #{_lambda_.1} parent=5 // pred_check_branch
        %263 = sbr.rel (%p261) target = $region44
      $region43: #{_lambda_.1} parent=5 // pred_region
        // Predicated region
        $region45: #{_lambda_.1} parent=43 // pred_check
          %p264 = pneg %p35
        $region46: #{_lambda_.1} parent=43 // pred_check_branch
          %266 = sbr.rel (%p264) target = $region48
        $region47: #{_lambda_.1} parent=43 // pred_region
          %s267 = smul.u32 2, %s15
          %p268 = scmp.lt.s32.totalorder %s267, 7
          %s269 = scalar_select %p268, %s267, 7
          %s270 = smul.addr %s269, 2
          %s271 = scalar_lea.vmem %s0, %s270
          %s272 = smul.u32 2, %s15
        $region48: #{_lambda_.1} parent=43 // pred_fallthru
          _
      $region44: #{_lambda_.1} parent=5 // pred_fallthru
        _
      %p273 = scmp.le.s32.totalorder 1, %s15
      %p274 = scmp.lt.s32.totalorder %s15, 5
      %p275 = pnand %p273, %p274
      %p276 = pneg %p275
      // Predicated region
      $region49: #{_lambda_.1} parent=5 // pred_check
        _
      $region50: #{_lambda_.1} parent=5 // pred_check_branch
        %278 = sbr.rel (%p275) target = $region52
      $region51: #{_lambda_.1} parent=5 // pred_region
        %s279 = ssub.s32 %s15, 1
        // Predicated region
        $region53: #{_lambda_.1} parent=51 // pred_check
          %p280 = pneg %p62
        $region54: #{_lambda_.1} parent=51 // pred_check_branch
          %282 = sbr.rel (%p280) target = $region56
        $region55: #{_lambda_.1} parent=51 // pred_region
          %283 = dma.done [#allocation3], 512
        $region56: #{_lambda_.1} parent=51 // pred_fallthru
          _
        %s284 = smul.u32 2, %s20
        %p285 = scmp.lt.s32.totalorder %s284, 7
        %s286 = scalar_select %p285, %s284, 7
        %s287 = smul.addr %s286, 2
        %s288 = scalar_lea.vmem %s0, %s287
        %p289 = pneg %p41
        %p290 = pneg %p38
        %p291 = pneg %p62
        %p292 = pneg %p59
        %p293 = pneg %p83
        %p294 = pneg %p80
        %p295 = pneg %p104
        %p296 = pneg %p101
        %p297 = pneg %p125
        %p298 = pneg %p122
        %p299 = pneg %p146
        %p300 = pneg %p143
        %p301 = pneg %p167
        %p302 = pneg %p164
        %p303 = pneg %p188
        %p304 = pneg %p185
        %p305 = pneg %p214
        %p306 = pneg %p211
        %s307 = smul.u32 2, %s20
        %p308 = scmp.lt.s32.totalorder %s307, 7
        %s309 = scalar_select %p308, %s307, 7
        %s310 = scalar_lea.vmem %s8, %s309
        %s311 = smul.u32 2, %s20
        %p312 = scmp.lt.s32.totalorder %s311, 7
        %s313 = scalar_select %p312, %s311, 7
        %s314 = smul.addr %s313, 2
        %s315 = scalar_lea.vmem %s0, %s314
        %s316 = smul.u32 2, %s20
        %s317 = smul.u32 2, %s20
        %p318 = scmp.lt.s32.totalorder %s317, 7
        %s319 = scalar_select %p318, %s317, 7
        %s320 = scalar_lea.vmem %s8, %s319
        %s321 = smul.u32 2, %s20
        %v322 = vld [vmem:[%s315] sm:$0xf]
        %v323 = vld [vmem:[#allocation2] sm:$0xff]
        %v324 = vld [vmem:[#allocation2 + $0x8] sm:$0xff]
        %v325 = vld [vmem:[#allocation2 + $0x10] sm:$0xff]
        %v326 = vld [vmem:[#allocation2 + $0x18] sm:$0xff]
        %v327 = vld [vmem:[%s2] sm:$0xff]
        %v328 = vld [vmem:[%s2 + $0x8] sm:$0xff]
        %v329 = vld [vmem:[%s2 + $0x10] sm:$0xff]
        %v330 = vld [vmem:[%s2 + $0x18] sm:$0xff]
        %332 = vset.pattern.permute.xlu0 0
        %333 = vperm.xlu0 %332, %v327
        %v334 = vpop.permute.xlu0 %333
        %337 = vset.pattern.permute.xlu0 0
        %338 = vperm.xlu0 %337, %v328
        %v339 = vpop.permute.xlu0 %338
        %342 = vset.pattern.permute.xlu0 0
        %343 = vperm.xlu0 %342, %v329
        %v344 = vpop.permute.xlu0 %343
        %347 = vset.pattern.permute.xlu0 0
        %348 = vperm.xlu0 %347, %v330
        %v349 = vpop.permute.xlu0 %348
        %v353 = vunpack.c.l.s4 1983009808
        %v354 = vunpack.c.0.s8 %v353
        %v355 = vlaneseq
        %v356 = vshrl.u32 %v355, 7
        %v357 = vsub.s32 %v354, %v356
        %v358 = vrot.slane %v322, %v357
        %v359 = vcombine.high %v358, %v358
        %vm360 = vcmask 15360
        %v362 = vsel %vm360, %v323, 0
        %v365 = vsel %vm360, %v324, 0
        %v368 = vsel %vm360, %v325, 0
        %v371 = vsel %vm360, %v326, 0
        %vm373 = vcmask 1041408
        %v374 = vsel %vm373, %v358, 0
        %v376 = vsel %vm373, %v359, 0
        %378 = vmatprep.subr.mxu0 0.0
        %379 = vmatpush1.msra.mxu0 0.0
        %380 = vmatprep.subr.mxu0 0.0
        %381 = vmatpush1.msra.mxu0 0.0
        %382 = vmatprep.subr.mxu0 0.0
        %383 = vmatpush1.msra.mxu0 0.0
        %384 = vmatprep.subr.mxu0 0.0
        %385 = vmatpush1.msra.mxu0 0.0
        %386 = vmatprep.subr.mxu0 0.0
        %387 = vmatpush1.msra.mxu0 0.0
        %388 = vmatprep.subr.mxu0 0.0
        %389 = vmatpush1.msra.mxu0 0.0
        %390 = vmatprep.subr.mxu0 0.0
        %391 = vmatpush1.msra.mxu0 0.0
        %392 = vmatprep.subr.mxu0 0.0
        %393 = vmatpush1.msra.mxu0 0.0
        %394 = vmatprep.subr.mxu0 0.0
        %395 = vmatpush1.msra.mxu0 0.0
        %396 = vmatprep.subr.mxu0 0.0
        %397 = vmatpush1.msra.mxu0 0.0
        %398 = vmatprep.subr.mxu0 0.0
        %399 = vmatpush1.msra.mxu0 0.0
        %400 = vmatprep.subr.mxu0 0.0
        %401 = vmatpush1.msra.mxu0 0.0
        %402 = vmatprep.subr.mxu0 0.0
        %403 = vmatpush1.msra.mxu0 0.0
        %404 = vmatprep.subr.mxu0 0.0
        %405 = vmatpush1.msra.mxu0 0.0
        %406 = vmatprep.subr.mxu0 0.0
        %407 = vmatpush1.msra.mxu0 0.0
        %408 = vmatprep.subr.mxu0 %v376
        %409 = vmatpush1.msra.mxu0 %v374
        %410 = vmatprep.subr.mxu0 0.0
        %411 = vmatpush2.msra.mxu0 0.0
        %412 = vmatprep.subr.mxu0 0.0
        %413 = vmatpush2.msra.mxu0 0.0
        %414 = vmatprep.subr.mxu0 0.0
        %415 = vmatpush2.msra.mxu0 0.0
        %416 = vmatprep.subr.mxu0 0.0
        %417 = vmatpush2.msra.mxu0 0.0
        %418 = vmatprep.subr.mxu0 0.0
        %419 = vmatpush2.msra.mxu0 0.0
        %420 = vmatprep.subr.mxu0 0.0
        %421 = vmatpush2.msra.mxu0 0.0
        %422 = vmatprep.subr.mxu0 0.0
        %423 = vmatpush2.msra.mxu0 0.0
        %424 = vmatprep.subr.mxu0 0.0
        %425 = vmatpush2.msra.mxu0 0.0
        %426 = vmatprep.subr.mxu0 0.0
        %427 = vmatpush2.msra.mxu0 0.0
        %428 = vmatprep.subr.mxu0 0.0
        %429 = vmatpush2.msra.mxu0 0.0
        %430 = vmatprep.subr.mxu0 0.0
        %431 = vmatpush2.msra.mxu0 0.0
        %432 = vmatprep.subr.mxu0 0.0
        %433 = vmatpush2.msra.mxu0 0.0
        %434 = vmatprep.subr.mxu0 0.0
        %435 = vmatpush2.msra.mxu0 0.0
        %436 = vmatprep.subr.mxu0 0.0
        %437 = vmatpush2.msra.mxu0 0.0
        %438 = vmatprep.subr.mxu0 0.0
        %439 = vmatpush2.msra.mxu0 0.0
        %440 = vmatprep.subr.mxu0 0.0
        %441 = vmatpush2.msra.mxu0 0.0
        %442 = vmatprep.mubr.f32.mxu0 0.0
        %443 = vmatmul.mubr.f32.gmra.mxu0 %v362
        %v444 = vpop.f32.mrf.mxu0
        %v445 = vadd.f32 %v334, %v444
        %v446 = vpop.f32.mrf.mxu0
        %v447 = vadd.f32 %v334, %v446
        %448 = vmatprep.mubr.f32.mxu0 0.0
        %449 = vmatmul.mubr.f32.gmra.mxu0 %v365
        %v450 = vpop.f32.mrf.mxu0
        %v451 = vadd.f32 %v339, %v450
        %v452 = vpop.f32.mrf.mxu0
        %v453 = vadd.f32 %v339, %v452
        %454 = vmatprep.mubr.f32.mxu0 0.0
        %455 = vmatmul.mubr.f32.gmra.mxu0 %v368
        %v456 = vpop.f32.mrf.mxu0
        %v457 = vadd.f32 %v344, %v456
        %v458 = vpop.f32.mrf.mxu0
        %v459 = vadd.f32 %v344, %v458
        %460 = vmatprep.mubr.f32.mxu0 0.0
        %461 = vmatmul.mubr.f32.gmra.mxu0 %v371
        %v462 = vpop.f32.mrf.mxu0
        %v463 = vadd.f32 %v349, %v462
        %v464 = vpop.f32.mrf.mxu0
        %v465 = vadd.f32 %v349, %v464
        %466 = vdwg.mxu0
        %v467 = vand.u32 2147483647, %v445
        %vm468 = vcmp.le.f32.partialorder %v467, 0.7853982
        %vm469 = vcmp.lt.s32.totalorder %v445, 0
        %v470 = vand.u32 %v445, 2139095040
        %v471 = vshrl.u32 %v470, 23
        %v472 = vsub.s32 %v471, 127
        %v473 = vand.u32 2147483647, %v445
        %v474 = vand.u32 %v473, 8388607
        %v475 = vor.u32 %v474, 8388608
        %v476 = vsub.s32 0, %v475
        %v477 = vadd.s32 %v472, 1
        %vm478 = vcmp.gt.s32.totalorder %v477, 0
        %v479 = vsel %vm478, %v477, 0
        %v480 = vshrl.u32 %v479, 5
        %v481 = vand.u32 %v479, 31
        %v482 = vsub.s32 32, %v481
        %v483 = vshrl.u32 683565275, %v482
        %v484 = vshll.u32 683565275, %v481
        %v485 = vshrl.u32 2475754826, %v482
        %v486 = vor.u32 %v484, %v485
        %v487 = vshll.u32 2475754826, %v481
        %v488 = vshrl.u32 2131351028, %v482
        %v489 = vor.u32 %v487, %v488
        %v490 = vshll.u32 2131351028, %v481
        %v491 = vshrl.u32 2102212464, %v482
        %v492 = vor.u32 %v490, %v491
        %v493 = vshll.u32 2102212464, %v481
        %v494 = vshrl.u32 920167782, %v482
        %v495 = vor.u32 %v493, %v494
        %v496 = vshll.u32 920167782, %v481
        %v497 = vshrl.u32 1326507024, %v482
        %v498 = vor.u32 %v496, %v497
        %vm499 = vcmp.lt.s32.totalorder %v480, 1
        %vm500 = vcmp.lt.s32.totalorder %v480, 2
        %vm501 = vcmp.lt.s32.totalorder %v480, 3
        %vm502 = vcmp.lt.s32.totalorder %v480, 4
        %v503 = vsel %vm499, %v483, %v486
        %v504 = vsel %vm502, %v492, 2102212464
        %v505 = vsel %vm501, %v489, %v504
        %v506 = vsel %vm500, %v503, %v505
        %v507 = vsel %vm499, %v486, %v489
        %v508 = vsel %vm502, %v495, 920167782
        %v509 = vsel %vm501, %v492, %v508
        %v510 = vsel %vm500, %v507, %v509
        %v511 = vsel %vm499, %v489, %v492
        %v512 = vsel %vm502, %v498, 1326507024
        %v513 = vsel %vm501, %v495, %v512
        %v514 = vsel %vm500, %v511, %v513
        %v515 = vshll.u32 %v475, 8
        %v516 = vmul.u32.u64.compose %v515, %v514
        %v517 = vextract.low.u32 %v516
        %v518 = vextract.high.u32 %v516
        %v519 = vmul.u32.u64.compose %v515, %v510
        %v520 = vextract.low.u32 %v519
        %v521 = vextract.high.u32 %v519
        %v522 = vmul.u32 %v515, %v506
        %v523 = vadd.s32 %v518, %v520
        %vm524 = vc.u32 %v518, %v520
        %v525 = vadd.s32 %v521, 1
        %v526 = vsel %vm524, %v525, %v521
        %v527 = vadd.s32 %v522, %v526
        %v528 = vadd.s32 %v527, 536870912
        %v529 = vshrl.u32 %v528, 30
        %v530 = vshll.u32 %v529, 30
        %v531 = vsub.s32 %v527, %v530
        %vm532 = vcmp.lt.s32.totalorder %v531, 0
        %v533 = vsub.s32 0, %v531
        %v534 = vsel %vm532, %v533, %v531
        %v535 = vclz %v534
        %v536 = vsub.s32 %v535, 2
        %vm537 = vcmp.gt.s32.totalorder 0, %v536
        %v538 = vsel %vm537, 0, %v536
        %v539 = vsub.s32 32, %v538
        %v540 = vshll.u32 %v531, %v538
        %v541 = vshrl.u32 %v523, %v539
        %v542 = vor.u32 %v540, %v541
        %v543 = vsub.s32 4294967266, %v538
        %v544 = vadd.s32 %v543, 127
        %v545 = vshll.u32 %v544, 23
        %v546 = vor.u32 4788187, %v545
        %v547 = vand.u32 2147483647, %v546
        %v549 = vcvt.s32.f32 %v542
        %v550 = vmul.f32 %v549, %v547
        %v551 = vxor.u32 %v550, 2147483648
        %v552 = vsel %vm469, %v551, %v550
        %v553 = vsub.s32 4, %v529
        %v554 = vsel %vm469, %v553, %v529
        %v555 = vsel %vm468, %v445, %v552
        %v556 = vsel %vm468, 0, %v554
        %v557 = vcosq.f32.pop %v555
        %v558 = vsinq.f32.pop %v555
        %vm559 = vweird.f32 %v445
        %v560 = vadd.s32 %v556, 3
        %v561 = vand.u32 %v560, 3
        %vm562 = vcmp.lt.s32.totalorder %v561, 2
        %vm563 = vcmp.eq.s32.totalorder %v561, 0
        %v564 = vxor.u32 %v558, 2147483648
        %v565 = vsel %vm563, %v557, %v564
        %vm566 = vcmp.eq.s32.totalorder %v561, 2
        %v567 = vxor.u32 %v557, 2147483648
        %v568 = vsel %vm566, %v567, %v558
        %v569 = vsel %vm562, %v565, %v568
        %v570 = vsel %vm559, nan, %v569
        %v571 = vand.u32 2147483647, %v447
        %vm572 = vcmp.le.f32.partialorder %v571, 0.7853982
        %vm573 = vcmp.lt.s32.totalorder %v447, 0
        %v574 = vand.u32 %v447, 2139095040
        %v575 = vshrl.u32 %v574, 23
        %v576 = vsub.s32 %v575, 127
        %v577 = vand.u32 2147483647, %v447
        %v578 = vand.u32 %v577, 8388607
        %v579 = vor.u32 %v578, 8388608
        %v580 = vsub.s32 0, %v579
        %v581 = vadd.s32 %v576, 1
        %vm582 = vcmp.gt.s32.totalorder %v581, 0
        %v583 = vsel %vm582, %v581, 0
        %v584 = vshrl.u32 %v583, 5
        %v585 = vand.u32 %v583, 31
        %v586 = vsub.s32 32, %v585
        %v587 = vshrl.u32 683565275, %v586
        %v588 = vshll.u32 683565275, %v585
        %v589 = vshrl.u32 2475754826, %v586
        %v590 = vor.u32 %v588, %v589
        %v591 = vshll.u32 2475754826, %v585
        %v592 = vshrl.u32 2131351028, %v586
        %v593 = vor.u32 %v591, %v592
        %v594 = vshll.u32 2131351028, %v585
        %v595 = vshrl.u32 2102212464, %v586
        %v596 = vor.u32 %v594, %v595
        %v597 = vshll.u32 2102212464, %v585
        %v598 = vshrl.u32 920167782, %v586
        %v599 = vor.u32 %v597, %v598
        %v600 = vshll.u32 920167782, %v585
        %v601 = vshrl.u32 1326507024, %v586
        %v602 = vor.u32 %v600, %v601
        %vm603 = vcmp.lt.s32.totalorder %v584, 1
        %vm604 = vcmp.lt.s32.totalorder %v584, 2
        %vm605 = vcmp.lt.s32.totalorder %v584, 3
        %vm606 = vcmp.lt.s32.totalorder %v584, 4
        %v607 = vsel %vm603, %v587, %v590
        %v608 = vsel %vm606, %v596, 2102212464
        %v609 = vsel %vm605, %v593, %v608
        %v610 = vsel %vm604, %v607, %v609
        %v611 = vsel %vm603, %v590, %v593
        %v612 = vsel %vm606, %v599, 920167782
        %v613 = vsel %vm605, %v596, %v612
        %v614 = vsel %vm604, %v611, %v613
        %v615 = vsel %vm603, %v593, %v596
        %v616 = vsel %vm606, %v602, 1326507024
        %v617 = vsel %vm605, %v599, %v616
        %v618 = vsel %vm604, %v615, %v617
        %v619 = vshll.u32 %v579, 8
        %v620 = vmul.u32.u64.compose %v619, %v618
        %v621 = vextract.low.u32 %v620
        %v622 = vextract.high.u32 %v620
        %v623 = vmul.u32.u64.compose %v619, %v614
        %v624 = vextract.low.u32 %v623
        %v625 = vextract.high.u32 %v623
        %v626 = vmul.u32 %v619, %v610
        %v627 = vadd.s32 %v622, %v624
        %vm628 = vc.u32 %v622, %v624
        %v629 = vadd.s32 %v625, 1
        %v630 = vsel %vm628, %v629, %v625
        %v631 = vadd.s32 %v626, %v630
        %v632 = vadd.s32 %v631, 536870912
        %v633 = vshrl.u32 %v632, 30
        %v634 = vshll.u32 %v633, 30
        %v635 = vsub.s32 %v631, %v634
        %vm636 = vcmp.lt.s32.totalorder %v635, 0
        %v637 = vsub.s32 0, %v635
        %v638 = vsel %vm636, %v637, %v635
        %v639 = vclz %v638
        %v640 = vsub.s32 %v639, 2
        %vm641 = vcmp.gt.s32.totalorder 0, %v640
        %v642 = vsel %vm641, 0, %v640
        %v643 = vsub.s32 32, %v642
        %v644 = vshll.u32 %v635, %v642
        %v645 = vshrl.u32 %v627, %v643
        %v646 = vor.u32 %v644, %v645
        %v647 = vsub.s32 4294967266, %v642
        %v648 = vadd.s32 %v647, 127
        %v649 = vshll.u32 %v648, 23
        %v650 = vor.u32 4788187, %v649
        %v651 = vand.u32 2147483647, %v650
        %v653 = vcvt.s32.f32 %v646
        %v654 = vmul.f32 %v653, %v651
        %v655 = vxor.u32 %v654, 2147483648
        %v656 = vsel %vm573, %v655, %v654
        %v657 = vsub.s32 4, %v633
        %v658 = vsel %vm573, %v657, %v633
        %v659 = vsel %vm572, %v447, %v656
        %v660 = vsel %vm572, 0, %v658
        %v661 = vcosq.f32.pop %v659
        %v662 = vsinq.f32.pop %v659
        %vm663 = vweird.f32 %v447
        %v664 = vadd.s32 %v660, 3
        %v665 = vand.u32 %v664, 3
        %vm666 = vcmp.lt.s32.totalorder %v665, 2
        %vm667 = vcmp.eq.s32.totalorder %v665, 0
        %v668 = vxor.u32 %v662, 2147483648
        %v669 = vsel %vm667, %v661, %v668
        %vm670 = vcmp.eq.s32.totalorder %v665, 2
        %v671 = vxor.u32 %v661, 2147483648
        %v672 = vsel %vm670, %v671, %v662
        %v673 = vsel %vm666, %v669, %v672
        %v674 = vsel %vm663, nan, %v673
        %v675 = vand.u32 2147483647, %v451
        %vm676 = vcmp.le.f32.partialorder %v675, 0.7853982
        %vm677 = vcmp.lt.s32.totalorder %v451, 0
        %v678 = vand.u32 %v451, 2139095040
        %v679 = vshrl.u32 %v678, 23
        %v680 = vsub.s32 %v679, 127
        %v681 = vand.u32 2147483647, %v451
        %v682 = vand.u32 %v681, 8388607
        %v683 = vor.u32 %v682, 8388608
        %v684 = vsub.s32 0, %v683
        %v685 = vadd.s32 %v680, 1
        %vm686 = vcmp.gt.s32.totalorder %v685, 0
        %v687 = vsel %vm686, %v685, 0
        %v688 = vshrl.u32 %v687, 5
        %v689 = vand.u32 %v687, 31
        %v690 = vsub.s32 32, %v689
        %v691 = vshrl.u32 683565275, %v690
        %v692 = vshll.u32 683565275, %v689
        %v693 = vshrl.u32 2475754826, %v690
        %v694 = vor.u32 %v692, %v693
        %v695 = vshll.u32 2475754826, %v689
        %v696 = vshrl.u32 2131351028, %v690
        %v697 = vor.u32 %v695, %v696
        %v698 = vshll.u32 2131351028, %v689
        %v699 = vshrl.u32 2102212464, %v690
        %v700 = vor.u32 %v698, %v699
        %v701 = vshll.u32 2102212464, %v689
        %v702 = vshrl.u32 920167782, %v690
        %v703 = vor.u32 %v701, %v702
        %v704 = vshll.u32 920167782, %v689
        %v705 = vshrl.u32 1326507024, %v690
        %v706 = vor.u32 %v704, %v705
        %vm707 = vcmp.lt.s32.totalorder %v688, 1
        %vm708 = vcmp.lt.s32.totalorder %v688, 2
        %vm709 = vcmp.lt.s32.totalorder %v688, 3
        %vm710 = vcmp.lt.s32.totalorder %v688, 4
        %v711 = vsel %vm707, %v691, %v694
        %v712 = vsel %vm710, %v700, 2102212464
        %v713 = vsel %vm709, %v697, %v712
        %v714 = vsel %vm708, %v711, %v713
        %v715 = vsel %vm707, %v694, %v697
        %v716 = vsel %vm710, %v703, 920167782
        %v717 = vsel %vm709, %v700, %v716
        %v718 = vsel %vm708, %v715, %v717
        %v719 = vsel %vm707, %v697, %v700
        %v720 = vsel %vm710, %v706, 1326507024
        %v721 = vsel %vm709, %v703, %v720
        %v722 = vsel %vm708, %v719, %v721
        %v723 = vshll.u32 %v683, 8
        %v724 = vmul.u32.u64.compose %v723, %v722
        %v725 = vextract.low.u32 %v724
        %v726 = vextract.high.u32 %v724
        %v727 = vmul.u32.u64.compose %v723, %v718
        %v728 = vextract.low.u32 %v727
        %v729 = vextract.high.u32 %v727
        %v730 = vmul.u32 %v723, %v714
        %v731 = vadd.s32 %v726, %v728
        %vm732 = vc.u32 %v726, %v728
        %v733 = vadd.s32 %v729, 1
        %v734 = vsel %vm732, %v733, %v729
        %v735 = vadd.s32 %v730, %v734
        %v736 = vadd.s32 %v735, 536870912
        %v737 = vshrl.u32 %v736, 30
        %v738 = vshll.u32 %v737, 30
        %v739 = vsub.s32 %v735, %v738
        %vm740 = vcmp.lt.s32.totalorder %v739, 0
        %v741 = vsub.s32 0, %v739
        %v742 = vsel %vm740, %v741, %v739
        %v743 = vclz %v742
        %v744 = vsub.s32 %v743, 2
        %vm745 = vcmp.gt.s32.totalorder 0, %v744
        %v746 = vsel %vm745, 0, %v744
        %v747 = vsub.s32 32, %v746
        %v748 = vshll.u32 %v739, %v746
        %v749 = vshrl.u32 %v731, %v747
        %v750 = vor.u32 %v748, %v749
        %v751 = vsub.s32 4294967266, %v746
        %v752 = vadd.s32 %v751, 127
        %v753 = vshll.u32 %v752, 23
        %v754 = vor.u32 4788187, %v753
        %v755 = vand.u32 2147483647, %v754
        %v757 = vcvt.s32.f32 %v750
        %v758 = vmul.f32 %v757, %v755
        %v759 = vxor.u32 %v758, 2147483648
        %v760 = vsel %vm677, %v759, %v758
        %v761 = vsub.s32 4, %v737
        %v762 = vsel %vm677, %v761, %v737
        %v763 = vsel %vm676, %v451, %v760
        %v764 = vsel %vm676, 0, %v762
        %v765 = vcosq.f32.pop %v763
        %v766 = vsinq.f32.pop %v763
        %vm767 = vweird.f32 %v451
        %v768 = vadd.s32 %v764, 3
        %v769 = vand.u32 %v768, 3
        %vm770 = vcmp.lt.s32.totalorder %v769, 2
        %vm771 = vcmp.eq.s32.totalorder %v769, 0
        %v772 = vxor.u32 %v766, 2147483648
        %v773 = vsel %vm771, %v765, %v772
        %vm774 = vcmp.eq.s32.totalorder %v769, 2
        %v775 = vxor.u32 %v765, 2147483648
        %v776 = vsel %vm774, %v775, %v766
        %v777 = vsel %vm770, %v773, %v776
        %v778 = vsel %vm767, nan, %v777
        %v779 = vand.u32 2147483647, %v453
        %vm780 = vcmp.le.f32.partialorder %v779, 0.7853982
        %vm781 = vcmp.lt.s32.totalorder %v453, 0
        %v782 = vand.u32 %v453, 2139095040
        %v783 = vshrl.u32 %v782, 23
        %v784 = vsub.s32 %v783, 127
        %v785 = vand.u32 2147483647, %v453
        %v786 = vand.u32 %v785, 8388607
        %v787 = vor.u32 %v786, 8388608
        %v788 = vsub.s32 0, %v787
        %v789 = vadd.s32 %v784, 1
        %vm790 = vcmp.gt.s32.totalorder %v789, 0
        %v791 = vsel %vm790, %v789, 0
        %v792 = vshrl.u32 %v791, 5
        %v793 = vand.u32 %v791, 31
        %v794 = vsub.s32 32, %v793
        %v795 = vshrl.u32 683565275, %v794
        %v796 = vshll.u32 683565275, %v793
        %v797 = vshrl.u32 2475754826, %v794
        %v798 = vor.u32 %v796, %v797
        %v799 = vshll.u32 2475754826, %v793
        %v800 = vshrl.u32 2131351028, %v794
        %v801 = vor.u32 %v799, %v800
        %v802 = vshll.u32 2131351028, %v793
        %v803 = vshrl.u32 2102212464, %v794
        %v804 = vor.u32 %v802, %v803
        %v805 = vshll.u32 2102212464, %v793
        %v806 = vshrl.u32 920167782, %v794
        %v807 = vor.u32 %v805, %v806
        %v808 = vshll.u32 920167782, %v793
        %v809 = vshrl.u32 1326507024, %v794
        %v810 = vor.u32 %v808, %v809
        %vm811 = vcmp.lt.s32.totalorder %v792, 1
        %vm812 = vcmp.lt.s32.totalorder %v792, 2
        %vm813 = vcmp.lt.s32.totalorder %v792, 3
        %vm814 = vcmp.lt.s32.totalorder %v792, 4
        %v815 = vsel %vm811, %v795, %v798
        %v816 = vsel %vm814, %v804, 2102212464
        %v817 = vsel %vm813, %v801, %v816
        %v818 = vsel %vm812, %v815, %v817
        %v819 = vsel %vm811, %v798, %v801
        %v820 = vsel %vm814, %v807, 920167782
        %v821 = vsel %vm813, %v804, %v820
        %v822 = vsel %vm812, %v819, %v821
        %v823 = vsel %vm811, %v801, %v804
        %v824 = vsel %vm814, %v810, 1326507024
        %v825 = vsel %vm813, %v807, %v824
        %v826 = vsel %vm812, %v823, %v825
        %v827 = vshll.u32 %v787, 8
        %v828 = vmul.u32.u64.compose %v827, %v826
        %v829 = vextract.low.u32 %v828
        %v830 = vextract.high.u32 %v828
        %v831 = vmul.u32.u64.compose %v827, %v822
        %v832 = vextract.low.u32 %v831
        %v833 = vextract.high.u32 %v831
        %v834 = vmul.u32 %v827, %v818
        %v835 = vadd.s32 %v830, %v832
        %vm836 = vc.u32 %v830, %v832
        %v837 = vadd.s32 %v833, 1
        %v838 = vsel %vm836, %v837, %v833
        %v839 = vadd.s32 %v834, %v838
        %v840 = vadd.s32 %v839, 536870912
        %v841 = vshrl.u32 %v840, 30
        %v842 = vshll.u32 %v841, 30
        %v843 = vsub.s32 %v839, %v842
        %vm844 = vcmp.lt.s32.totalorder %v843, 0
        %v845 = vsub.s32 0, %v843
        %v846 = vsel %vm844, %v845, %v843
        %v847 = vclz %v846
        %v848 = vsub.s32 %v847, 2
        %vm849 = vcmp.gt.s32.totalorder 0, %v848
        %v850 = vsel %vm849, 0, %v848
        %v851 = vsub.s32 32, %v850
        %v852 = vshll.u32 %v843, %v850
        %v853 = vshrl.u32 %v835, %v851
        %v854 = vor.u32 %v852, %v853
        %v855 = vsub.s32 4294967266, %v850
        %v856 = vadd.s32 %v855, 127
        %v857 = vshll.u32 %v856, 23
        %v858 = vor.u32 4788187, %v857
        %v859 = vand.u32 2147483647, %v858
        %v861 = vcvt.s32.f32 %v854
        %v862 = vmul.f32 %v861, %v859
        %v863 = vxor.u32 %v862, 2147483648
        %v864 = vsel %vm781, %v863, %v862
        %v865 = vsub.s32 4, %v841
        %v866 = vsel %vm781, %v865, %v841
        %v867 = vsel %vm780, %v453, %v864
        %v868 = vsel %vm780, 0, %v866
        %v869 = vcosq.f32.pop %v867
        %v870 = vsinq.f32.pop %v867
        %vm871 = vweird.f32 %v453
        %v872 = vadd.s32 %v868, 3
        %v873 = vand.u32 %v872, 3
        %vm874 = vcmp.lt.s32.totalorder %v873, 2
        %vm875 = vcmp.eq.s32.totalorder %v873, 0
        %v876 = vxor.u32 %v870, 2147483648
        %v877 = vsel %vm875, %v869, %v876
        %vm878 = vcmp.eq.s32.totalorder %v873, 2
        %v879 = vxor.u32 %v869, 2147483648
        %v880 = vsel %vm878, %v879, %v870
        %v881 = vsel %vm874, %v877, %v880
        %v882 = vsel %vm871, nan, %v881
        %v883 = vand.u32 2147483647, %v457
        %vm884 = vcmp.le.f32.partialorder %v883, 0.7853982
        %vm885 = vcmp.lt.s32.totalorder %v457, 0
        %v886 = vand.u32 %v457, 2139095040
        %v887 = vshrl.u32 %v886, 23
        %v888 = vsub.s32 %v887, 127
        %v889 = vand.u32 2147483647, %v457
        %v890 = vand.u32 %v889, 8388607
        %v891 = vor.u32 %v890, 8388608
        %v892 = vsub.s32 0, %v891
        %v893 = vadd.s32 %v888, 1
        %vm894 = vcmp.gt.s32.totalorder %v893, 0
        %v895 = vsel %vm894, %v893, 0
        %v896 = vshrl.u32 %v895, 5
        %v897 = vand.u32 %v895, 31
        %v898 = vsub.s32 32, %v897
        %v899 = vshrl.u32 683565275, %v898
        %v900 = vshll.u32 683565275, %v897
        %v901 = vshrl.u32 2475754826, %v898
        %v902 = vor.u32 %v900, %v901
        %v903 = vshll.u32 2475754826, %v897
        %v904 = vshrl.u32 2131351028, %v898
        %v905 = vor.u32 %v903, %v904
        %v906 = vshll.u32 2131351028, %v897
        %v907 = vshrl.u32 2102212464, %v898
        %v908 = vor.u32 %v906, %v907
        %v909 = vshll.u32 2102212464, %v897
        %v910 = vshrl.u32 920167782, %v898
        %v911 = vor.u32 %v909, %v910
        %v912 = vshll.u32 920167782, %v897
        %v913 = vshrl.u32 1326507024, %v898
        %v914 = vor.u32 %v912, %v913
        %vm915 = vcmp.lt.s32.totalorder %v896, 1
        %vm916 = vcmp.lt.s32.totalorder %v896, 2
        %vm917 = vcmp.lt.s32.totalorder %v896, 3
        %vm918 = vcmp.lt.s32.totalorder %v896, 4
        %v919 = vsel %vm915, %v899, %v902
        %v920 = vsel %vm918, %v908, 2102212464
        %v921 = vsel %vm917, %v905, %v920
        %v922 = vsel %vm916, %v919, %v921
        %v923 = vsel %vm915, %v902, %v905
        %v924 = vsel %vm918, %v911, 920167782
        %v925 = vsel %vm917, %v908, %v924
        %v926 = vsel %vm916, %v923, %v925
        %v927 = vsel %vm915, %v905, %v908
        %v928 = vsel %vm918, %v914, 1326507024
        %v929 = vsel %vm917, %v911, %v928
        %v930 = vsel %vm916, %v927, %v929
        %v931 = vshll.u32 %v891, 8
        %v932 = vmul.u32.u64.compose %v931, %v930
        %v933 = vextract.low.u32 %v932
        %v934 = vextract.high.u32 %v932
        %v935 = vmul.u32.u64.compose %v931, %v926
        %v936 = vextract.low.u32 %v935
        %v937 = vextract.high.u32 %v935
        %v938 = vmul.u32 %v931, %v922
        %v939 = vadd.s32 %v934, %v936
        %vm940 = vc.u32 %v934, %v936
        %v941 = vadd.s32 %v937, 1
        %v942 = vsel %vm940, %v941, %v937
        %v943 = vadd.s32 %v938, %v942
        %v944 = vadd.s32 %v943, 536870912
        %v945 = vshrl.u32 %v944, 30
        %v946 = vshll.u32 %v945, 30
        %v947 = vsub.s32 %v943, %v946
        %vm948 = vcmp.lt.s32.totalorder %v947, 0
        %v949 = vsub.s32 0, %v947
        %v950 = vsel %vm948, %v949, %v947
        %v951 = vclz %v950
        %v952 = vsub.s32 %v951, 2
        %vm953 = vcmp.gt.s32.totalorder 0, %v952
        %v954 = vsel %vm953, 0, %v952
        %v955 = vsub.s32 32, %v954
        %v956 = vshll.u32 %v947, %v954
        %v957 = vshrl.u32 %v939, %v955
        %v958 = vor.u32 %v956, %v957
        %v959 = vsub.s32 4294967266, %v954
        %v960 = vadd.s32 %v959, 127
        %v961 = vshll.u32 %v960, 23
        %v962 = vor.u32 4788187, %v961
        %v963 = vand.u32 2147483647, %v962
        %v965 = vcvt.s32.f32 %v958
        %v966 = vmul.f32 %v965, %v963
        %v967 = vxor.u32 %v966, 2147483648
        %v968 = vsel %vm885, %v967, %v966
        %v969 = vsub.s32 4, %v945
        %v970 = vsel %vm885, %v969, %v945
        %v971 = vsel %vm884, %v457, %v968
        %v972 = vsel %vm884, 0, %v970
        %v973 = vcosq.f32.pop %v971
        %v974 = vsinq.f32.pop %v971
        %vm975 = vweird.f32 %v457
        %v976 = vadd.s32 %v972, 3
        %v977 = vand.u32 %v976, 3
        %vm978 = vcmp.lt.s32.totalorder %v977, 2
        %vm979 = vcmp.eq.s32.totalorder %v977, 0
        %v980 = vxor.u32 %v974, 2147483648
        %v981 = vsel %vm979, %v973, %v980
        %vm982 = vcmp.eq.s32.totalorder %v977, 2
        %v983 = vxor.u32 %v973, 2147483648
        %v984 = vsel %vm982, %v983, %v974
        %v985 = vsel %vm978, %v981, %v984
        %v986 = vsel %vm975, nan, %v985
        %v987 = vand.u32 2147483647, %v459
        %vm988 = vcmp.le.f32.partialorder %v987, 0.7853982
        %vm989 = vcmp.lt.s32.totalorder %v459, 0
        %v990 = vand.u32 %v459, 2139095040
        %v991 = vshrl.u32 %v990, 23
        %v992 = vsub.s32 %v991, 127
        %v993 = vand.u32 2147483647, %v459
        %v994 = vand.u32 %v993, 8388607
        %v995 = vor.u32 %v994, 8388608
        %v996 = vsub.s32 0, %v995
        %v997 = vadd.s32 %v992, 1
        %vm998 = vcmp.gt.s32.totalorder %v997, 0
        %v999 = vsel %vm998, %v997, 0
        %v1000 = vshrl.u32 %v999, 5
        %v1001 = vand.u32 %v999, 31
        %v1002 = vsub.s32 32, %v1001
        %v1003 = vshrl.u32 683565275, %v1002
        %v1004 = vshll.u32 683565275, %v1001
        %v1005 = vshrl.u32 2475754826, %v1002
        %v1006 = vor.u32 %v1004, %v1005
        %v1007 = vshll.u32 2475754826, %v1001
        %v1008 = vshrl.u32 2131351028, %v1002
        %v1009 = vor.u32 %v1007, %v1008
        %v1010 = vshll.u32 2131351028, %v1001
        %v1011 = vshrl.u32 2102212464, %v1002
        %v1012 = vor.u32 %v1010, %v1011
        %v1013 = vshll.u32 2102212464, %v1001
        %v1014 = vshrl.u32 920167782, %v1002
        %v1015 = vor.u32 %v1013, %v1014
        %v1016 = vshll.u32 920167782, %v1001
        %v1017 = vshrl.u32 1326507024, %v1002
        %v1018 = vor.u32 %v1016, %v1017
        %vm1019 = vcmp.lt.s32.totalorder %v1000, 1
        %vm1020 = vcmp.lt.s32.totalorder %v1000, 2
        %vm1021 = vcmp.lt.s32.totalorder %v1000, 3
        %vm1022 = vcmp.lt.s32.totalorder %v1000, 4
        %v1023 = vsel %vm1019, %v1003, %v1006
        %v1024 = vsel %vm1022, %v1012, 2102212464
        %v1025 = vsel %vm1021, %v1009, %v1024
        %v1026 = vsel %vm1020, %v1023, %v1025
        %v1027 = vsel %vm1019, %v1006, %v1009
        %v1028 = vsel %vm1022, %v1015, 920167782
        %v1029 = vsel %vm1021, %v1012, %v1028
        %v1030 = vsel %vm1020, %v1027, %v1029
        %v1031 = vsel %vm1019, %v1009, %v1012
        %v1032 = vsel %vm1022, %v1018, 1326507024
        %v1033 = vsel %vm1021, %v1015, %v1032
        %v1034 = vsel %vm1020, %v1031, %v1033
        %v1035 = vshll.u32 %v995, 8
        %v1036 = vmul.u32.u64.compose %v1035, %v1034
        %v1037 = vextract.low.u32 %v1036
        %v1038 = vextract.high.u32 %v1036
        %v1039 = vmul.u32.u64.compose %v1035, %v1030
        %v1040 = vextract.low.u32 %v1039
        %v1041 = vextract.high.u32 %v1039
        %v1042 = vmul.u32 %v1035, %v1026
        %v1043 = vadd.s32 %v1038, %v1040
        %vm1044 = vc.u32 %v1038, %v1040
        %v1045 = vadd.s32 %v1041, 1
        %v1046 = vsel %vm1044, %v1045, %v1041
        %v1047 = vadd.s32 %v1042, %v1046
        %v1048 = vadd.s32 %v1047, 536870912
        %v1049 = vshrl.u32 %v1048, 30
        %v1050 = vshll.u32 %v1049, 30
        %v1051 = vsub.s32 %v1047, %v1050
        %vm1052 = vcmp.lt.s32.totalorder %v1051, 0
        %v1053 = vsub.s32 0, %v1051
        %v1054 = vsel %vm1052, %v1053, %v1051
        %v1055 = vclz %v1054
        %v1056 = vsub.s32 %v1055, 2
        %vm1057 = vcmp.gt.s32.totalorder 0, %v1056
        %v1058 = vsel %vm1057, 0, %v1056
        %v1059 = vsub.s32 32, %v1058
        %v1060 = vshll.u32 %v1051, %v1058
        %v1061 = vshrl.u32 %v1043, %v1059
        %v1062 = vor.u32 %v1060, %v1061
        %v1063 = vsub.s32 4294967266, %v1058
        %v1064 = vadd.s32 %v1063, 127
        %v1065 = vshll.u32 %v1064, 23
        %v1066 = vor.u32 4788187, %v1065
        %v1067 = vand.u32 2147483647, %v1066
        %v1069 = vcvt.s32.f32 %v1062
        %v1070 = vmul.f32 %v1069, %v1067
        %v1071 = vxor.u32 %v1070, 2147483648
        %v1072 = vsel %vm989, %v1071, %v1070
        %v1073 = vsub.s32 4, %v1049
        %v1074 = vsel %vm989, %v1073, %v1049
        %v1075 = vsel %vm988, %v459, %v1072
        %v1076 = vsel %vm988, 0, %v1074
        %v1077 = vcosq.f32.pop %v1075
        %v1078 = vsinq.f32.pop %v1075
        %vm1079 = vweird.f32 %v459
        %v1080 = vadd.s32 %v1076, 3
        %v1081 = vand.u32 %v1080, 3
        %vm1082 = vcmp.lt.s32.totalorder %v1081, 2
        %vm1083 = vcmp.eq.s32.totalorder %v1081, 0
        %v1084 = vxor.u32 %v1078, 2147483648
        %v1085 = vsel %vm1083, %v1077, %v1084
        %vm1086 = vcmp.eq.s32.totalorder %v1081, 2
        %v1087 = vxor.u32 %v1077, 2147483648
        %v1088 = vsel %vm1086, %v1087, %v1078
        %v1089 = vsel %vm1082, %v1085, %v1088
        %v1090 = vsel %vm1079, nan, %v1089
        %v1091 = vand.u32 2147483647, %v463
        %vm1092 = vcmp.le.f32.partialorder %v1091, 0.7853982
        %vm1093 = vcmp.lt.s32.totalorder %v463, 0
        %v1094 = vand.u32 %v463, 2139095040
        %v1095 = vshrl.u32 %v1094, 23
        %v1096 = vsub.s32 %v1095, 127
        %v1097 = vand.u32 2147483647, %v463
        %v1098 = vand.u32 %v1097, 8388607
        %v1099 = vor.u32 %v1098, 8388608
        %v1100 = vsub.s32 0, %v1099
        %v1101 = vadd.s32 %v1096, 1
        %vm1102 = vcmp.gt.s32.totalorder %v1101, 0
        %v1103 = vsel %vm1102, %v1101, 0
        %v1104 = vshrl.u32 %v1103, 5
        %v1105 = vand.u32 %v1103, 31
        %v1106 = vsub.s32 32, %v1105
        %v1107 = vshrl.u32 683565275, %v1106
        %v1108 = vshll.u32 683565275, %v1105
        %v1109 = vshrl.u32 2475754826, %v1106
        %v1110 = vor.u32 %v1108, %v1109
        %v1111 = vshll.u32 2475754826, %v1105
        %v1112 = vshrl.u32 2131351028, %v1106
        %v1113 = vor.u32 %v1111, %v1112
        %v1114 = vshll.u32 2131351028, %v1105
        %v1115 = vshrl.u32 2102212464, %v1106
        %v1116 = vor.u32 %v1114, %v1115
        %v1117 = vshll.u32 2102212464, %v1105
        %v1118 = vshrl.u32 920167782, %v1106
        %v1119 = vor.u32 %v1117, %v1118
        %v1120 = vshll.u32 920167782, %v1105
        %v1121 = vshrl.u32 1326507024, %v1106
        %v1122 = vor.u32 %v1120, %v1121
        %vm1123 = vcmp.lt.s32.totalorder %v1104, 1
        %vm1124 = vcmp.lt.s32.totalorder %v1104, 2
        %vm1125 = vcmp.lt.s32.totalorder %v1104, 3
        %vm1126 = vcmp.lt.s32.totalorder %v1104, 4
        %v1127 = vsel %vm1123, %v1107, %v1110
        %v1128 = vsel %vm1126, %v1116, 2102212464
        %v1129 = vsel %vm1125, %v1113, %v1128
        %v1130 = vsel %vm1124, %v1127, %v1129
        %v1131 = vsel %vm1123, %v1110, %v1113
        %v1132 = vsel %vm1126, %v1119, 920167782
        %v1133 = vsel %vm1125, %v1116, %v1132
        %v1134 = vsel %vm1124, %v1131, %v1133
        %v1135 = vsel %vm1123, %v1113, %v1116
        %v1136 = vsel %vm1126, %v1122, 1326507024
        %v1137 = vsel %vm1125, %v1119, %v1136
        %v1138 = vsel %vm1124, %v1135, %v1137
        %v1139 = vshll.u32 %v1099, 8
        %v1140 = vmul.u32.u64.compose %v1139, %v1138
        %v1141 = vextract.low.u32 %v1140
        %v1142 = vextract.high.u32 %v1140
        %v1143 = vmul.u32.u64.compose %v1139, %v1134
        %v1144 = vextract.low.u32 %v1143
        %v1145 = vextract.high.u32 %v1143
        %v1146 = vmul.u32 %v1139, %v1130
        %v1147 = vadd.s32 %v1142, %v1144
        %vm1148 = vc.u32 %v1142, %v1144
        %v1149 = vadd.s32 %v1145, 1
        %v1150 = vsel %vm1148, %v1149, %v1145
        %v1151 = vadd.s32 %v1146, %v1150
        %v1152 = vadd.s32 %v1151, 536870912
        %v1153 = vshrl.u32 %v1152, 30
        %v1154 = vshll.u32 %v1153, 30
        %v1155 = vsub.s32 %v1151, %v1154
        %vm1156 = vcmp.lt.s32.totalorder %v1155, 0
        %v1157 = vsub.s32 0, %v1155
        %v1158 = vsel %vm1156, %v1157, %v1155
        %v1159 = vclz %v1158
        %v1160 = vsub.s32 %v1159, 2
        %vm1161 = vcmp.gt.s32.totalorder 0, %v1160
        %v1162 = vsel %vm1161, 0, %v1160
        %v1163 = vsub.s32 32, %v1162
        %v1164 = vshll.u32 %v1155, %v1162
        %v1165 = vshrl.u32 %v1147, %v1163
        %v1166 = vor.u32 %v1164, %v1165
        %v1167 = vsub.s32 4294967266, %v1162
        %v1168 = vadd.s32 %v1167, 127
        %v1169 = vshll.u32 %v1168, 23
        %v1170 = vor.u32 4788187, %v1169
        %v1171 = vand.u32 2147483647, %v1170
        %v1173 = vcvt.s32.f32 %v1166
        %v1174 = vmul.f32 %v1173, %v1171
        %v1175 = vxor.u32 %v1174, 2147483648
        %v1176 = vsel %vm1093, %v1175, %v1174
        %v1177 = vsub.s32 4, %v1153
        %v1178 = vsel %vm1093, %v1177, %v1153
        %v1179 = vsel %vm1092, %v463, %v1176
        %v1180 = vsel %vm1092, 0, %v1178
        %v1181 = vcosq.f32.pop %v1179
        %v1182 = vsinq.f32.pop %v1179
        %vm1183 = vweird.f32 %v463
        %v1184 = vadd.s32 %v1180, 3
        %v1185 = vand.u32 %v1184, 3
        %vm1186 = vcmp.lt.s32.totalorder %v1185, 2
        %vm1187 = vcmp.eq.s32.totalorder %v1185, 0
        %v1188 = vxor.u32 %v1182, 2147483648
        %v1189 = vsel %vm1187, %v1181, %v1188
        %vm1190 = vcmp.eq.s32.totalorder %v1185, 2
        %v1191 = vxor.u32 %v1181, 2147483648
        %v1192 = vsel %vm1190, %v1191, %v1182
        %v1193 = vsel %vm1186, %v1189, %v1192
        %v1194 = vsel %vm1183, nan, %v1193
        %v1195 = vand.u32 2147483647, %v465
        %vm1196 = vcmp.le.f32.partialorder %v1195, 0.7853982
        %vm1197 = vcmp.lt.s32.totalorder %v465, 0
        %v1198 = vand.u32 %v465, 2139095040
        %v1199 = vshrl.u32 %v1198, 23
        %v1200 = vsub.s32 %v1199, 127
        %v1201 = vand.u32 2147483647, %v465
        %v1202 = vand.u32 %v1201, 8388607
        %v1203 = vor.u32 %v1202, 8388608
        %v1204 = vsub.s32 0, %v1203
        %v1205 = vadd.s32 %v1200, 1
        %vm1206 = vcmp.gt.s32.totalorder %v1205, 0
        %v1207 = vsel %vm1206, %v1205, 0
        %v1208 = vshrl.u32 %v1207, 5
        %v1209 = vand.u32 %v1207, 31
        %v1210 = vsub.s32 32, %v1209
        %v1211 = vshrl.u32 683565275, %v1210
        %v1212 = vshll.u32 683565275, %v1209
        %v1213 = vshrl.u32 2475754826, %v1210
        %v1214 = vor.u32 %v1212, %v1213
        %v1215 = vshll.u32 2475754826, %v1209
        %v1216 = vshrl.u32 2131351028, %v1210
        %v1217 = vor.u32 %v1215, %v1216
        %v1218 = vshll.u32 2131351028, %v1209
        %v1219 = vshrl.u32 2102212464, %v1210
        %v1220 = vor.u32 %v1218, %v1219
        %v1221 = vshll.u32 2102212464, %v1209
        %v1222 = vshrl.u32 920167782, %v1210
        %v1223 = vor.u32 %v1221, %v1222
        %v1224 = vshll.u32 920167782, %v1209
        %v1225 = vshrl.u32 1326507024, %v1210
        %v1226 = vor.u32 %v1224, %v1225
        %vm1227 = vcmp.lt.s32.totalorder %v1208, 1
        %vm1228 = vcmp.lt.s32.totalorder %v1208, 2
        %vm1229 = vcmp.lt.s32.totalorder %v1208, 3
        %vm1230 = vcmp.lt.s32.totalorder %v1208, 4
        %v1231 = vsel %vm1227, %v1211, %v1214
        %v1232 = vsel %vm1230, %v1220, 2102212464
        %v1233 = vsel %vm1229, %v1217, %v1232
        %v1234 = vsel %vm1228, %v1231, %v1233
        %v1235 = vsel %vm1227, %v1214, %v1217
        %v1236 = vsel %vm1230, %v1223, 920167782
        %v1237 = vsel %vm1229, %v1220, %v1236
        %v1238 = vsel %vm1228, %v1235, %v1237
        %v1239 = vsel %vm1227, %v1217, %v1220
        %v1240 = vsel %vm1230, %v1226, 1326507024
        %v1241 = vsel %vm1229, %v1223, %v1240
        %v1242 = vsel %vm1228, %v1239, %v1241
        %v1243 = vshll.u32 %v1203, 8
        %v1244 = vmul.u32.u64.compose %v1243, %v1242
        %v1245 = vextract.low.u32 %v1244
        %v1246 = vextract.high.u32 %v1244
        %v1247 = vmul.u32.u64.compose %v1243, %v1238
        %v1248 = vextract.low.u32 %v1247
        %v1249 = vextract.high.u32 %v1247
        %v1250 = vmul.u32 %v1243, %v1234
        %v1251 = vadd.s32 %v1246, %v1248
        %vm1252 = vc.u32 %v1246, %v1248
        %v1253 = vadd.s32 %v1249, 1
        %v1254 = vsel %vm1252, %v1253, %v1249
        %v1255 = vadd.s32 %v1250, %v1254
        %v1256 = vadd.s32 %v1255, 536870912
        %v1257 = vshrl.u32 %v1256, 30
        %v1258 = vshll.u32 %v1257, 30
        %v1259 = vsub.s32 %v1255, %v1258
        %vm1260 = vcmp.lt.s32.totalorder %v1259, 0
        %v1261 = vsub.s32 0, %v1259
        %v1262 = vsel %vm1260, %v1261, %v1259
        %v1263 = vclz %v1262
        %v1264 = vsub.s32 %v1263, 2
        %vm1265 = vcmp.gt.s32.totalorder 0, %v1264
        %v1266 = vsel %vm1265, 0, %v1264
        %v1267 = vsub.s32 32, %v1266
        %v1268 = vshll.u32 %v1259, %v1266
        %v1269 = vshrl.u32 %v1251, %v1267
        %v1270 = vor.u32 %v1268, %v1269
        %v1271 = vsub.s32 4294967266, %v1266
        %v1272 = vadd.s32 %v1271, 127
        %v1273 = vshll.u32 %v1272, 23
        %v1274 = vor.u32 4788187, %v1273
        %v1275 = vand.u32 2147483647, %v1274
        %v1277 = vcvt.s32.f32 %v1270
        %v1278 = vmul.f32 %v1277, %v1275
        %v1279 = vxor.u32 %v1278, 2147483648
        %v1280 = vsel %vm1197, %v1279, %v1278
        %v1281 = vsub.s32 4, %v1257
        %v1282 = vsel %vm1197, %v1281, %v1257
        %v1283 = vsel %vm1196, %v465, %v1280
        %v1284 = vsel %vm1196, 0, %v1282
        %v1285 = vcosq.f32.pop %v1283
        %v1286 = vsinq.f32.pop %v1283
        %vm1287 = vweird.f32 %v465
        %v1288 = vadd.s32 %v1284, 3
        %v1289 = vand.u32 %v1288, 3
        %vm1290 = vcmp.lt.s32.totalorder %v1289, 2
        %vm1291 = vcmp.eq.s32.totalorder %v1289, 0
        %v1292 = vxor.u32 %v1286, 2147483648
        %v1293 = vsel %vm1291, %v1285, %v1292
        %vm1294 = vcmp.eq.s32.totalorder %v1289, 2
        %v1295 = vxor.u32 %v1285, 2147483648
        %v1296 = vsel %vm1294, %v1295, %v1286
        %v1297 = vsel %vm1290, %v1293, %v1296
        %v1298 = vsel %vm1287, nan, %v1297
        %v1299 = vld [vmem:[%s3] sm:$0xff]
        %v1300 = vld [vmem:[%s3 + $0x8] sm:$0xff]
        %v1301 = vld [vmem:[%s3 + $0x10] sm:$0xff]
        %v1302 = vld [vmem:[%s3 + $0x18] sm:$0xff]
        %v1303 = vld [vmem:[%s4] sm:$0xff]
        %v1304 = vld [vmem:[%s4 + $0x8] sm:$0xff]
        %v1305 = vld [vmem:[%s4 + $0x10] sm:$0xff]
        %v1306 = vld [vmem:[%s4 + $0x18] sm:$0xff]
        %1308 = vset.pattern.permute.xlu0 0
        %1309 = vperm.xlu0 %1308, %v1303
        %v1310 = vpop.permute.xlu0 %1309
        %1313 = vset.pattern.permute.xlu0 0
        %1314 = vperm.xlu0 %1313, %v1304
        %v1315 = vpop.permute.xlu0 %1314
        %1318 = vset.pattern.permute.xlu0 0
        %1319 = vperm.xlu0 %1318, %v1305
        %v1320 = vpop.permute.xlu0 %1319
        %1323 = vset.pattern.permute.xlu0 0
        %1324 = vperm.xlu0 %1323, %v1306
        %v1325 = vpop.permute.xlu0 %1324
        %vm1327 = vcmask 261120
        %v1329 = vsel %vm1327, %v1299, 0
        %v1332 = vsel %vm1327, %v1300, 0
        %v1335 = vsel %vm1327, %v1301, 0
        %v1338 = vsel %vm1327, %v1302, 0
        %1340 = vmatprep.subr.mxu0 0.0
        %1341 = vmatpush1.msra.mxu0 0.0
        %1342 = vmatprep.subr.mxu0 0.0
        %1343 = vmatpush1.msra.mxu0 0.0
        %1344 = vmatprep.subr.mxu0 0.0
        %1345 = vmatpush1.msra.mxu0 0.0
        %1346 = vmatprep.subr.mxu0 0.0
        %1347 = vmatpush1.msra.mxu0 0.0
        %1348 = vmatprep.subr.mxu0 0.0
        %1349 = vmatpush1.msra.mxu0 0.0
        %1350 = vmatprep.subr.mxu0 0.0
        %1351 = vmatpush1.msra.mxu0 0.0
        %1352 = vmatprep.subr.mxu0 0.0
        %1353 = vmatpush1.msra.mxu0 0.0
        %1354 = vmatprep.subr.mxu0 0.0
        %1355 = vmatpush1.msra.mxu0 0.0
        %1356 = vmatprep.subr.mxu0 0.0
        %1357 = vmatpush1.msra.mxu0 0.0
        %1358 = vmatprep.subr.mxu0 0.0
        %1359 = vmatpush1.msra.mxu0 0.0
        %1360 = vmatprep.subr.mxu0 0.0
        %1361 = vmatpush1.msra.mxu0 0.0
        %1362 = vmatprep.subr.mxu0 0.0
        %1363 = vmatpush1.msra.mxu0 0.0
        %1364 = vmatprep.subr.mxu0 %v1298
        %1365 = vmatpush1.msra.mxu0 %v1194
        %1366 = vmatprep.subr.mxu0 %v1090
        %1367 = vmatpush1.msra.mxu0 %v986
        %1368 = vmatprep.subr.mxu0 %v882
        %1369 = vmatpush1.msra.mxu0 %v778
        %1370 = vmatprep.subr.mxu0 %v674
        %1371 = vmatpush1.msra.mxu0 %v570
        %1372 = vmatprep.subr.mxu0 0.0
        %1373 = vmatpush2.msra.mxu0 0.0
        %1374 = vmatprep.subr.mxu0 0.0
        %1375 = vmatpush2.msra.mxu0 0.0
        %1376 = vmatprep.subr.mxu0 0.0
        %1377 = vmatpush2.msra.mxu0 0.0
        %1378 = vmatprep.subr.mxu0 0.0
        %1379 = vmatpush2.msra.mxu0 0.0
        %1380 = vmatprep.subr.mxu0 0.0
        %1381 = vmatpush2.msra.mxu0 0.0
        %1382 = vmatprep.subr.mxu0 0.0
        %1383 = vmatpush2.msra.mxu0 0.0
        %1384 = vmatprep.subr.mxu0 0.0
        %1385 = vmatpush2.msra.mxu0 0.0
        %1386 = vmatprep.subr.mxu0 0.0
        %1387 = vmatpush2.msra.mxu0 0.0
        %1388 = vmatprep.subr.mxu0 0.0
        %1389 = vmatpush2.msra.mxu0 0.0
        %1390 = vmatprep.subr.mxu0 0.0
        %1391 = vmatpush2.msra.mxu0 0.0
        %1392 = vmatprep.subr.mxu0 0.0
        %1393 = vmatpush2.msra.mxu0 0.0
        %1394 = vmatprep.subr.mxu0 0.0
        %1395 = vmatpush2.msra.mxu0 0.0
        %1396 = vmatprep.subr.mxu0 0.0
        %1397 = vmatpush2.msra.mxu0 0.0
        %1398 = vmatprep.subr.mxu0 0.0
        %1399 = vmatpush2.msra.mxu0 0.0
        %1400 = vmatprep.subr.mxu0 0.0
        %1401 = vmatpush2.msra.mxu0 0.0
        %1402 = vmatprep.subr.mxu0 0.0
        %1403 = vmatpush2.msra.mxu0 0.0
        %1404 = vmatprep.mubr.f32.mxu0 0.0
        %1405 = vmatmul.mubr.f32.gmra.mxu0 %v1329
        %v1406 = vpop.f32.mrf.mxu0
        %v1407 = vadd.f32 %v1310, %v1406
        %v1408 = vpop.f32.mrf.mxu0
        %v1409 = vadd.f32 %v1310, %v1408
        %1410 = vmatprep.mubr.f32.mxu0 0.0
        %1411 = vmatmul.mubr.f32.gmra.mxu0 %v1332
        %v1412 = vpop.f32.mrf.mxu0
        %v1413 = vadd.f32 %v1315, %v1412
        %v1414 = vpop.f32.mrf.mxu0
        %v1415 = vadd.f32 %v1315, %v1414
        %1416 = vmatprep.mubr.f32.mxu0 0.0
        %1417 = vmatmul.mubr.f32.gmra.mxu0 %v1335
        %v1418 = vpop.f32.mrf.mxu0
        %v1419 = vadd.f32 %v1320, %v1418
        %v1420 = vpop.f32.mrf.mxu0
        %v1421 = vadd.f32 %v1320, %v1420
        %1422 = vmatprep.mubr.f32.mxu0 0.0
        %1423 = vmatmul.mubr.f32.gmra.mxu0 %v1338
        %v1424 = vpop.f32.mrf.mxu0
        %v1425 = vadd.f32 %v1325, %v1424
        %v1426 = vpop.f32.mrf.mxu0
        %v1427 = vadd.f32 %v1325, %v1426
        %1428 = vdwg.mxu0
        %v1429 = vand.u32 2147483647, %v1407
        %vm1430 = vcmp.le.f32.partialorder %v1429, 0.7853982
        %vm1431 = vcmp.lt.s32.totalorder %v1407, 0
        %v1432 = vand.u32 %v1407, 2139095040
        %v1433 = vshrl.u32 %v1432, 23
        %v1434 = vsub.s32 %v1433, 127
        %v1435 = vand.u32 2147483647, %v1407
        %v1436 = vand.u32 %v1435, 8388607
        %v1437 = vor.u32 %v1436, 8388608
        %v1438 = vsub.s32 0, %v1437
        %v1439 = vadd.s32 %v1434, 1
        %vm1440 = vcmp.gt.s32.totalorder %v1439, 0
        %v1441 = vsel %vm1440, %v1439, 0
        %v1442 = vshrl.u32 %v1441, 5
        %v1443 = vand.u32 %v1441, 31
        %v1444 = vsub.s32 32, %v1443
        %v1445 = vshrl.u32 683565275, %v1444
        %v1446 = vshll.u32 683565275, %v1443
        %v1447 = vshrl.u32 2475754826, %v1444
        %v1448 = vor.u32 %v1446, %v1447
        %v1449 = vshll.u32 2475754826, %v1443
        %v1450 = vshrl.u32 2131351028, %v1444
        %v1451 = vor.u32 %v1449, %v1450
        %v1452 = vshll.u32 2131351028, %v1443
        %v1453 = vshrl.u32 2102212464, %v1444
        %v1454 = vor.u32 %v1452, %v1453
        %v1455 = vshll.u32 2102212464, %v1443
        %v1456 = vshrl.u32 920167782, %v1444
        %v1457 = vor.u32 %v1455, %v1456
        %v1458 = vshll.u32 920167782, %v1443
        %v1459 = vshrl.u32 1326507024, %v1444
        %v1460 = vor.u32 %v1458, %v1459
        %vm1461 = vcmp.lt.s32.totalorder %v1442, 1
        %vm1462 = vcmp.lt.s32.totalorder %v1442, 2
        %vm1463 = vcmp.lt.s32.totalorder %v1442, 3
        %vm1464 = vcmp.lt.s32.totalorder %v1442, 4
        %v1465 = vsel %vm1461, %v1445, %v1448
        %v1466 = vsel %vm1464, %v1454, 2102212464
        %v1467 = vsel %vm1463, %v1451, %v1466
        %v1468 = vsel %vm1462, %v1465, %v1467
        %v1469 = vsel %vm1461, %v1448, %v1451
        %v1470 = vsel %vm1464, %v1457, 920167782
        %v1471 = vsel %vm1463, %v1454, %v1470
        %v1472 = vsel %vm1462, %v1469, %v1471
        %v1473 = vsel %vm1461, %v1451, %v1454
        %v1474 = vsel %vm1464, %v1460, 1326507024
        %v1475 = vsel %vm1463, %v1457, %v1474
        %v1476 = vsel %vm1462, %v1473, %v1475
        %v1477 = vshll.u32 %v1437, 8
        %v1478 = vmul.u32.u64.compose %v1477, %v1476
        %v1479 = vextract.low.u32 %v1478
        %v1480 = vextract.high.u32 %v1478
        %v1481 = vmul.u32.u64.compose %v1477, %v1472
        %v1482 = vextract.low.u32 %v1481
        %v1483 = vextract.high.u32 %v1481
        %v1484 = vmul.u32 %v1477, %v1468
        %v1485 = vadd.s32 %v1480, %v1482
        %vm1486 = vc.u32 %v1480, %v1482
        %v1487 = vadd.s32 %v1483, 1
        %v1488 = vsel %vm1486, %v1487, %v1483
        %v1489 = vadd.s32 %v1484, %v1488
        %v1490 = vadd.s32 %v1489, 536870912
        %v1491 = vshrl.u32 %v1490, 30
        %v1492 = vshll.u32 %v1491, 30
        %v1493 = vsub.s32 %v1489, %v1492
        %vm1494 = vcmp.lt.s32.totalorder %v1493, 0
        %v1495 = vsub.s32 0, %v1493
        %v1496 = vsel %vm1494, %v1495, %v1493
        %v1497 = vclz %v1496
        %v1498 = vsub.s32 %v1497, 2
        %vm1499 = vcmp.gt.s32.totalorder 0, %v1498
        %v1500 = vsel %vm1499, 0, %v1498
        %v1501 = vsub.s32 32, %v1500
        %v1502 = vshll.u32 %v1493, %v1500
        %v1503 = vshrl.u32 %v1485, %v1501
        %v1504 = vor.u32 %v1502, %v1503
        %v1505 = vsub.s32 4294967266, %v1500
        %v1506 = vadd.s32 %v1505, 127
        %v1507 = vshll.u32 %v1506, 23
        %v1508 = vor.u32 4788187, %v1507
        %v1509 = vand.u32 2147483647, %v1508
        %v1511 = vcvt.s32.f32 %v1504
        %v1512 = vmul.f32 %v1511, %v1509
        %v1513 = vxor.u32 %v1512, 2147483648
        %v1514 = vsel %vm1431, %v1513, %v1512
        %v1515 = vsub.s32 4, %v1491
        %v1516 = vsel %vm1431, %v1515, %v1491
        %v1517 = vsel %vm1430, %v1407, %v1514
        %v1518 = vsel %vm1430, 0, %v1516
        %v1519 = vcosq.f32.pop %v1517
        %v1520 = vsinq.f32.pop %v1517
        %vm1521 = vweird.f32 %v1407
        %v1522 = vadd.s32 %v1518, 3
        %v1523 = vand.u32 %v1522, 3
        %vm1524 = vcmp.lt.s32.totalorder %v1523, 2
        %vm1525 = vcmp.eq.s32.totalorder %v1523, 0
        %v1526 = vxor.u32 %v1520, 2147483648
        %v1527 = vsel %vm1525, %v1519, %v1526
        %vm1528 = vcmp.eq.s32.totalorder %v1523, 2
        %v1529 = vxor.u32 %v1519, 2147483648
        %v1530 = vsel %vm1528, %v1529, %v1520
        %v1531 = vsel %vm1524, %v1527, %v1530
        %v1532 = vsel %vm1521, nan, %v1531
        %v1533 = vand.u32 2147483647, %v1409
        %vm1534 = vcmp.le.f32.partialorder %v1533, 0.7853982
        %vm1535 = vcmp.lt.s32.totalorder %v1409, 0
        %v1536 = vand.u32 %v1409, 2139095040
        %v1537 = vshrl.u32 %v1536, 23
        %v1538 = vsub.s32 %v1537, 127
        %v1539 = vand.u32 2147483647, %v1409
        %v1540 = vand.u32 %v1539, 8388607
        %v1541 = vor.u32 %v1540, 8388608
        %v1542 = vsub.s32 0, %v1541
        %v1543 = vadd.s32 %v1538, 1
        %vm1544 = vcmp.gt.s32.totalorder %v1543, 0
        %v1545 = vsel %vm1544, %v1543, 0
        %v1546 = vshrl.u32 %v1545, 5
        %v1547 = vand.u32 %v1545, 31
        %v1548 = vsub.s32 32, %v1547
        %v1549 = vshrl.u32 683565275, %v1548
        %v1550 = vshll.u32 683565275, %v1547
        %v1551 = vshrl.u32 2475754826, %v1548
        %v1552 = vor.u32 %v1550, %v1551
        %v1553 = vshll.u32 2475754826, %v1547
        %v1554 = vshrl.u32 2131351028, %v1548
        %v1555 = vor.u32 %v1553, %v1554
        %v1556 = vshll.u32 2131351028, %v1547
        %v1557 = vshrl.u32 2102212464, %v1548
        %v1558 = vor.u32 %v1556, %v1557
        %v1559 = vshll.u32 2102212464, %v1547
        %v1560 = vshrl.u32 920167782, %v1548
        %v1561 = vor.u32 %v1559, %v1560
        %v1562 = vshll.u32 920167782, %v1547
        %v1563 = vshrl.u32 1326507024, %v1548
        %v1564 = vor.u32 %v1562, %v1563
        %vm1565 = vcmp.lt.s32.totalorder %v1546, 1
        %vm1566 = vcmp.lt.s32.totalorder %v1546, 2
        %vm1567 = vcmp.lt.s32.totalorder %v1546, 3
        %vm1568 = vcmp.lt.s32.totalorder %v1546, 4
        %v1569 = vsel %vm1565, %v1549, %v1552
        %v1570 = vsel %vm1568, %v1558, 2102212464
        %v1571 = vsel %vm1567, %v1555, %v1570
        %v1572 = vsel %vm1566, %v1569, %v1571
        %v1573 = vsel %vm1565, %v1552, %v1555
        %v1574 = vsel %vm1568, %v1561, 920167782
        %v1575 = vsel %vm1567, %v1558, %v1574
        %v1576 = vsel %vm1566, %v1573, %v1575
        %v1577 = vsel %vm1565, %v1555, %v1558
        %v1578 = vsel %vm1568, %v1564, 1326507024
        %v1579 = vsel %vm1567, %v1561, %v1578
        %v1580 = vsel %vm1566, %v1577, %v1579
        %v1581 = vshll.u32 %v1541, 8
        %v1582 = vmul.u32.u64.compose %v1581, %v1580
        %v1583 = vextract.low.u32 %v1582
        %v1584 = vextract.high.u32 %v1582
        %v1585 = vmul.u32.u64.compose %v1581, %v1576
        %v1586 = vextract.low.u32 %v1585
        %v1587 = vextract.high.u32 %v1585
        %v1588 = vmul.u32 %v1581, %v1572
        %v1589 = vadd.s32 %v1584, %v1586
        %vm1590 = vc.u32 %v1584, %v1586
        %v1591 = vadd.s32 %v1587, 1
        %v1592 = vsel %vm1590, %v1591, %v1587
        %v1593 = vadd.s32 %v1588, %v1592
        %v1594 = vadd.s32 %v1593, 536870912
        %v1595 = vshrl.u32 %v1594, 30
        %v1596 = vshll.u32 %v1595, 30
        %v1597 = vsub.s32 %v1593, %v1596
        %vm1598 = vcmp.lt.s32.totalorder %v1597, 0
        %v1599 = vsub.s32 0, %v1597
        %v1600 = vsel %vm1598, %v1599, %v1597
        %v1601 = vclz %v1600
        %v1602 = vsub.s32 %v1601, 2
        %vm1603 = vcmp.gt.s32.totalorder 0, %v1602
        %v1604 = vsel %vm1603, 0, %v1602
        %v1605 = vsub.s32 32, %v1604
        %v1606 = vshll.u32 %v1597, %v1604
        %v1607 = vshrl.u32 %v1589, %v1605
        %v1608 = vor.u32 %v1606, %v1607
        %v1609 = vsub.s32 4294967266, %v1604
        %v1610 = vadd.s32 %v1609, 127
        %v1611 = vshll.u32 %v1610, 23
        %v1612 = vor.u32 4788187, %v1611
        %v1613 = vand.u32 2147483647, %v1612
        %v1615 = vcvt.s32.f32 %v1608
        %v1616 = vmul.f32 %v1615, %v1613
        %v1617 = vxor.u32 %v1616, 2147483648
        %v1618 = vsel %vm1535, %v1617, %v1616
        %v1619 = vsub.s32 4, %v1595
        %v1620 = vsel %vm1535, %v1619, %v1595
        %v1621 = vsel %vm1534, %v1409, %v1618
        %v1622 = vsel %vm1534, 0, %v1620
        %v1623 = vcosq.f32.pop %v1621
        %v1624 = vsinq.f32.pop %v1621
        %vm1625 = vweird.f32 %v1409
        %v1626 = vadd.s32 %v1622, 3
        %v1627 = vand.u32 %v1626, 3
        %vm1628 = vcmp.lt.s32.totalorder %v1627, 2
        %vm1629 = vcmp.eq.s32.totalorder %v1627, 0
        %v1630 = vxor.u32 %v1624, 2147483648
        %v1631 = vsel %vm1629, %v1623, %v1630
        %vm1632 = vcmp.eq.s32.totalorder %v1627, 2
        %v1633 = vxor.u32 %v1623, 2147483648
        %v1634 = vsel %vm1632, %v1633, %v1624
        %v1635 = vsel %vm1628, %v1631, %v1634
        %v1636 = vsel %vm1625, nan, %v1635
        %v1637 = vand.u32 2147483647, %v1413
        %vm1638 = vcmp.le.f32.partialorder %v1637, 0.7853982
        %vm1639 = vcmp.lt.s32.totalorder %v1413, 0
        %v1640 = vand.u32 %v1413, 2139095040
        %v1641 = vshrl.u32 %v1640, 23
        %v1642 = vsub.s32 %v1641, 127
        %v1643 = vand.u32 2147483647, %v1413
        %v1644 = vand.u32 %v1643, 8388607
        %v1645 = vor.u32 %v1644, 8388608
        %v1646 = vsub.s32 0, %v1645
        %v1647 = vadd.s32 %v1642, 1
        %vm1648 = vcmp.gt.s32.totalorder %v1647, 0
        %v1649 = vsel %vm1648, %v1647, 0
        %v1650 = vshrl.u32 %v1649, 5
        %v1651 = vand.u32 %v1649, 31
        %v1652 = vsub.s32 32, %v1651
        %v1653 = vshrl.u32 683565275, %v1652
        %v1654 = vshll.u32 683565275, %v1651
        %v1655 = vshrl.u32 2475754826, %v1652
        %v1656 = vor.u32 %v1654, %v1655
        %v1657 = vshll.u32 2475754826, %v1651
        %v1658 = vshrl.u32 2131351028, %v1652
        %v1659 = vor.u32 %v1657, %v1658
        %v1660 = vshll.u32 2131351028, %v1651
        %v1661 = vshrl.u32 2102212464, %v1652
        %v1662 = vor.u32 %v1660, %v1661
        %v1663 = vshll.u32 2102212464, %v1651
        %v1664 = vshrl.u32 920167782, %v1652
        %v1665 = vor.u32 %v1663, %v1664
        %v1666 = vshll.u32 920167782, %v1651
        %v1667 = vshrl.u32 1326507024, %v1652
        %v1668 = vor.u32 %v1666, %v1667
        %vm1669 = vcmp.lt.s32.totalorder %v1650, 1
        %vm1670 = vcmp.lt.s32.totalorder %v1650, 2
        %vm1671 = vcmp.lt.s32.totalorder %v1650, 3
        %vm1672 = vcmp.lt.s32.totalorder %v1650, 4
        %v1673 = vsel %vm1669, %v1653, %v1656
        %v1674 = vsel %vm1672, %v1662, 2102212464
        %v1675 = vsel %vm1671, %v1659, %v1674
        %v1676 = vsel %vm1670, %v1673, %v1675
        %v1677 = vsel %vm1669, %v1656, %v1659
        %v1678 = vsel %vm1672, %v1665, 920167782
        %v1679 = vsel %vm1671, %v1662, %v1678
        %v1680 = vsel %vm1670, %v1677, %v1679
        %v1681 = vsel %vm1669, %v1659, %v1662
        %v1682 = vsel %vm1672, %v1668, 1326507024
        %v1683 = vsel %vm1671, %v1665, %v1682
        %v1684 = vsel %vm1670, %v1681, %v1683
        %v1685 = vshll.u32 %v1645, 8
        %v1686 = vmul.u32.u64.compose %v1685, %v1684
        %v1687 = vextract.low.u32 %v1686
        %v1688 = vextract.high.u32 %v1686
        %v1689 = vmul.u32.u64.compose %v1685, %v1680
        %v1690 = vextract.low.u32 %v1689
        %v1691 = vextract.high.u32 %v1689
        %v1692 = vmul.u32 %v1685, %v1676
        %v1693 = vadd.s32 %v1688, %v1690
        %vm1694 = vc.u32 %v1688, %v1690
        %v1695 = vadd.s32 %v1691, 1
        %v1696 = vsel %vm1694, %v1695, %v1691
        %v1697 = vadd.s32 %v1692, %v1696
        %v1698 = vadd.s32 %v1697, 536870912
        %v1699 = vshrl.u32 %v1698, 30
        %v1700 = vshll.u32 %v1699, 30
        %v1701 = vsub.s32 %v1697, %v1700
        %vm1702 = vcmp.lt.s32.totalorder %v1701, 0
        %v1703 = vsub.s32 0, %v1701
        %v1704 = vsel %vm1702, %v1703, %v1701
        %v1705 = vclz %v1704
        %v1706 = vsub.s32 %v1705, 2
        %vm1707 = vcmp.gt.s32.totalorder 0, %v1706
        %v1708 = vsel %vm1707, 0, %v1706
        %v1709 = vsub.s32 32, %v1708
        %v1710 = vshll.u32 %v1701, %v1708
        %v1711 = vshrl.u32 %v1693, %v1709
        %v1712 = vor.u32 %v1710, %v1711
        %v1713 = vsub.s32 4294967266, %v1708
        %v1714 = vadd.s32 %v1713, 127
        %v1715 = vshll.u32 %v1714, 23
        %v1716 = vor.u32 4788187, %v1715
        %v1717 = vand.u32 2147483647, %v1716
        %v1719 = vcvt.s32.f32 %v1712
        %v1720 = vmul.f32 %v1719, %v1717
        %v1721 = vxor.u32 %v1720, 2147483648
        %v1722 = vsel %vm1639, %v1721, %v1720
        %v1723 = vsub.s32 4, %v1699
        %v1724 = vsel %vm1639, %v1723, %v1699
        %v1725 = vsel %vm1638, %v1413, %v1722
        %v1726 = vsel %vm1638, 0, %v1724
        %v1727 = vcosq.f32.pop %v1725
        %v1728 = vsinq.f32.pop %v1725
        %vm1729 = vweird.f32 %v1413
        %v1730 = vadd.s32 %v1726, 3
        %v1731 = vand.u32 %v1730, 3
        %vm1732 = vcmp.lt.s32.totalorder %v1731, 2
        %vm1733 = vcmp.eq.s32.totalorder %v1731, 0
        %v1734 = vxor.u32 %v1728, 2147483648
        %v1735 = vsel %vm1733, %v1727, %v1734
        %vm1736 = vcmp.eq.s32.totalorder %v1731, 2
        %v1737 = vxor.u32 %v1727, 2147483648
        %v1738 = vsel %vm1736, %v1737, %v1728
        %v1739 = vsel %vm1732, %v1735, %v1738
        %v1740 = vsel %vm1729, nan, %v1739
        %v1741 = vand.u32 2147483647, %v1415
        %vm1742 = vcmp.le.f32.partialorder %v1741, 0.7853982
        %vm1743 = vcmp.lt.s32.totalorder %v1415, 0
        %v1744 = vand.u32 %v1415, 2139095040
        %v1745 = vshrl.u32 %v1744, 23
        %v1746 = vsub.s32 %v1745, 127
        %v1747 = vand.u32 2147483647, %v1415
        %v1748 = vand.u32 %v1747, 8388607
        %v1749 = vor.u32 %v1748, 8388608
        %v1750 = vsub.s32 0, %v1749
        %v1751 = vadd.s32 %v1746, 1
        %vm1752 = vcmp.gt.s32.totalorder %v1751, 0
        %v1753 = vsel %vm1752, %v1751, 0
        %v1754 = vshrl.u32 %v1753, 5
        %v1755 = vand.u32 %v1753, 31
        %v1756 = vsub.s32 32, %v1755
        %v1757 = vshrl.u32 683565275, %v1756
        %v1758 = vshll.u32 683565275, %v1755
        %v1759 = vshrl.u32 2475754826, %v1756
        %v1760 = vor.u32 %v1758, %v1759
        %v1761 = vshll.u32 2475754826, %v1755
        %v1762 = vshrl.u32 2131351028, %v1756
        %v1763 = vor.u32 %v1761, %v1762
        %v1764 = vshll.u32 2131351028, %v1755
        %v1765 = vshrl.u32 2102212464, %v1756
        %v1766 = vor.u32 %v1764, %v1765
        %v1767 = vshll.u32 2102212464, %v1755
        %v1768 = vshrl.u32 920167782, %v1756
        %v1769 = vor.u32 %v1767, %v1768
        %v1770 = vshll.u32 920167782, %v1755
        %v1771 = vshrl.u32 1326507024, %v1756
        %v1772 = vor.u32 %v1770, %v1771
        %vm1773 = vcmp.lt.s32.totalorder %v1754, 1
        %vm1774 = vcmp.lt.s32.totalorder %v1754, 2
        %vm1775 = vcmp.lt.s32.totalorder %v1754, 3
        %vm1776 = vcmp.lt.s32.totalorder %v1754, 4
        %v1777 = vsel %vm1773, %v1757, %v1760
        %v1778 = vsel %vm1776, %v1766, 2102212464
        %v1779 = vsel %vm1775, %v1763, %v1778
        %v1780 = vsel %vm1774, %v1777, %v1779
        %v1781 = vsel %vm1773, %v1760, %v1763
        %v1782 = vsel %vm1776, %v1769, 920167782
        %v1783 = vsel %vm1775, %v1766, %v1782
        %v1784 = vsel %vm1774, %v1781, %v1783
        %v1785 = vsel %vm1773, %v1763, %v1766
        %v1786 = vsel %vm1776, %v1772, 1326507024
        %v1787 = vsel %vm1775, %v1769, %v1786
        %v1788 = vsel %vm1774, %v1785, %v1787
        %v1789 = vshll.u32 %v1749, 8
        %v1790 = vmul.u32.u64.compose %v1789, %v1788
        %v1791 = vextract.low.u32 %v1790
        %v1792 = vextract.high.u32 %v1790
        %v1793 = vmul.u32.u64.compose %v1789, %v1784
        %v1794 = vextract.low.u32 %v1793
        %v1795 = vextract.high.u32 %v1793
        %v1796 = vmul.u32 %v1789, %v1780
        %v1797 = vadd.s32 %v1792, %v1794
        %vm1798 = vc.u32 %v1792, %v1794
        %v1799 = vadd.s32 %v1795, 1
        %v1800 = vsel %vm1798, %v1799, %v1795
        %v1801 = vadd.s32 %v1796, %v1800
        %v1802 = vadd.s32 %v1801, 536870912
        %v1803 = vshrl.u32 %v1802, 30
        %v1804 = vshll.u32 %v1803, 30
        %v1805 = vsub.s32 %v1801, %v1804
        %vm1806 = vcmp.lt.s32.totalorder %v1805, 0
        %v1807 = vsub.s32 0, %v1805
        %v1808 = vsel %vm1806, %v1807, %v1805
        %v1809 = vclz %v1808
        %v1810 = vsub.s32 %v1809, 2
        %vm1811 = vcmp.gt.s32.totalorder 0, %v1810
        %v1812 = vsel %vm1811, 0, %v1810
        %v1813 = vsub.s32 32, %v1812
        %v1814 = vshll.u32 %v1805, %v1812
        %v1815 = vshrl.u32 %v1797, %v1813
        %v1816 = vor.u32 %v1814, %v1815
        %v1817 = vsub.s32 4294967266, %v1812
        %v1818 = vadd.s32 %v1817, 127
        %v1819 = vshll.u32 %v1818, 23
        %v1820 = vor.u32 4788187, %v1819
        %v1821 = vand.u32 2147483647, %v1820
        %v1823 = vcvt.s32.f32 %v1816
        %v1824 = vmul.f32 %v1823, %v1821
        %v1825 = vxor.u32 %v1824, 2147483648
        %v1826 = vsel %vm1743, %v1825, %v1824
        %v1827 = vsub.s32 4, %v1803
        %v1828 = vsel %vm1743, %v1827, %v1803
        %v1829 = vsel %vm1742, %v1415, %v1826
        %v1830 = vsel %vm1742, 0, %v1828
        %v1831 = vcosq.f32.pop %v1829
        %v1832 = vsinq.f32.pop %v1829
        %vm1833 = vweird.f32 %v1415
        %v1834 = vadd.s32 %v1830, 3
        %v1835 = vand.u32 %v1834, 3
        %vm1836 = vcmp.lt.s32.totalorder %v1835, 2
        %vm1837 = vcmp.eq.s32.totalorder %v1835, 0
        %v1838 = vxor.u32 %v1832, 2147483648
        %v1839 = vsel %vm1837, %v1831, %v1838
        %vm1840 = vcmp.eq.s32.totalorder %v1835, 2
        %v1841 = vxor.u32 %v1831, 2147483648
        %v1842 = vsel %vm1840, %v1841, %v1832
        %v1843 = vsel %vm1836, %v1839, %v1842
        %v1844 = vsel %vm1833, nan, %v1843
        %v1845 = vand.u32 2147483647, %v1419
        %vm1846 = vcmp.le.f32.partialorder %v1845, 0.7853982
        %vm1847 = vcmp.lt.s32.totalorder %v1419, 0
        %v1848 = vand.u32 %v1419, 2139095040
        %v1849 = vshrl.u32 %v1848, 23
        %v1850 = vsub.s32 %v1849, 127
        %v1851 = vand.u32 2147483647, %v1419
        %v1852 = vand.u32 %v1851, 8388607
        %v1853 = vor.u32 %v1852, 8388608
        %v1854 = vsub.s32 0, %v1853
        %v1855 = vadd.s32 %v1850, 1
        %vm1856 = vcmp.gt.s32.totalorder %v1855, 0
        %v1857 = vsel %vm1856, %v1855, 0
        %v1858 = vshrl.u32 %v1857, 5
        %v1859 = vand.u32 %v1857, 31
        %v1860 = vsub.s32 32, %v1859
        %v1861 = vshrl.u32 683565275, %v1860
        %v1862 = vshll.u32 683565275, %v1859
        %v1863 = vshrl.u32 2475754826, %v1860
        %v1864 = vor.u32 %v1862, %v1863
        %v1865 = vshll.u32 2475754826, %v1859
        %v1866 = vshrl.u32 2131351028, %v1860
        %v1867 = vor.u32 %v1865, %v1866
        %v1868 = vshll.u32 2131351028, %v1859
        %v1869 = vshrl.u32 2102212464, %v1860
        %v1870 = vor.u32 %v1868, %v1869
        %v1871 = vshll.u32 2102212464, %v1859
        %v1872 = vshrl.u32 920167782, %v1860
        %v1873 = vor.u32 %v1871, %v1872
        %v1874 = vshll.u32 920167782, %v1859
        %v1875 = vshrl.u32 1326507024, %v1860
        %v1876 = vor.u32 %v1874, %v1875
        %vm1877 = vcmp.lt.s32.totalorder %v1858, 1
        %vm1878 = vcmp.lt.s32.totalorder %v1858, 2
        %vm1879 = vcmp.lt.s32.totalorder %v1858, 3
        %vm1880 = vcmp.lt.s32.totalorder %v1858, 4
        %v1881 = vsel %vm1877, %v1861, %v1864
        %v1882 = vsel %vm1880, %v1870, 2102212464
        %v1883 = vsel %vm1879, %v1867, %v1882
        %v1884 = vsel %vm1878, %v1881, %v1883
        %v1885 = vsel %vm1877, %v1864, %v1867
        %v1886 = vsel %vm1880, %v1873, 920167782
        %v1887 = vsel %vm1879, %v1870, %v1886
        %v1888 = vsel %vm1878, %v1885, %v1887
        %v1889 = vsel %vm1877, %v1867, %v1870
        %v1890 = vsel %vm1880, %v1876, 1326507024
        %v1891 = vsel %vm1879, %v1873, %v1890
        %v1892 = vsel %vm1878, %v1889, %v1891
        %v1893 = vshll.u32 %v1853, 8
        %v1894 = vmul.u32.u64.compose %v1893, %v1892
        %v1895 = vextract.low.u32 %v1894
        %v1896 = vextract.high.u32 %v1894
        %v1897 = vmul.u32.u64.compose %v1893, %v1888
        %v1898 = vextract.low.u32 %v1897
        %v1899 = vextract.high.u32 %v1897
        %v1900 = vmul.u32 %v1893, %v1884
        %v1901 = vadd.s32 %v1896, %v1898
        %vm1902 = vc.u32 %v1896, %v1898
        %v1903 = vadd.s32 %v1899, 1
        %v1904 = vsel %vm1902, %v1903, %v1899
        %v1905 = vadd.s32 %v1900, %v1904
        %v1906 = vadd.s32 %v1905, 536870912
        %v1907 = vshrl.u32 %v1906, 30
        %v1908 = vshll.u32 %v1907, 30
        %v1909 = vsub.s32 %v1905, %v1908
        %vm1910 = vcmp.lt.s32.totalorder %v1909, 0
        %v1911 = vsub.s32 0, %v1909
        %v1912 = vsel %vm1910, %v1911, %v1909
        %v1913 = vclz %v1912
        %v1914 = vsub.s32 %v1913, 2
        %vm1915 = vcmp.gt.s32.totalorder 0, %v1914
        %v1916 = vsel %vm1915, 0, %v1914
        %v1917 = vsub.s32 32, %v1916
        %v1918 = vshll.u32 %v1909, %v1916
        %v1919 = vshrl.u32 %v1901, %v1917
        %v1920 = vor.u32 %v1918, %v1919
        %v1921 = vsub.s32 4294967266, %v1916
        %v1922 = vadd.s32 %v1921, 127
        %v1923 = vshll.u32 %v1922, 23
        %v1924 = vor.u32 4788187, %v1923
        %v1925 = vand.u32 2147483647, %v1924
        %v1927 = vcvt.s32.f32 %v1920
        %v1928 = vmul.f32 %v1927, %v1925
        %v1929 = vxor.u32 %v1928, 2147483648
        %v1930 = vsel %vm1847, %v1929, %v1928
        %v1931 = vsub.s32 4, %v1907
        %v1932 = vsel %vm1847, %v1931, %v1907
        %v1933 = vsel %vm1846, %v1419, %v1930
        %v1934 = vsel %vm1846, 0, %v1932
        %v1935 = vcosq.f32.pop %v1933
        %v1936 = vsinq.f32.pop %v1933
        %vm1937 = vweird.f32 %v1419
        %v1938 = vadd.s32 %v1934, 3
        %v1939 = vand.u32 %v1938, 3
        %vm1940 = vcmp.lt.s32.totalorder %v1939, 2
        %vm1941 = vcmp.eq.s32.totalorder %v1939, 0
        %v1942 = vxor.u32 %v1936, 2147483648
        %v1943 = vsel %vm1941, %v1935, %v1942
        %vm1944 = vcmp.eq.s32.totalorder %v1939, 2
        %v1945 = vxor.u32 %v1935, 2147483648
        %v1946 = vsel %vm1944, %v1945, %v1936
        %v1947 = vsel %vm1940, %v1943, %v1946
        %v1948 = vsel %vm1937, nan, %v1947
        %v1949 = vand.u32 2147483647, %v1421
        %vm1950 = vcmp.le.f32.partialorder %v1949, 0.7853982
        %vm1951 = vcmp.lt.s32.totalorder %v1421, 0
        %v1952 = vand.u32 %v1421, 2139095040
        %v1953 = vshrl.u32 %v1952, 23
        %v1954 = vsub.s32 %v1953, 127
        %v1955 = vand.u32 2147483647, %v1421
        %v1956 = vand.u32 %v1955, 8388607
        %v1957 = vor.u32 %v1956, 8388608
        %v1958 = vsub.s32 0, %v1957
        %v1959 = vadd.s32 %v1954, 1
        %vm1960 = vcmp.gt.s32.totalorder %v1959, 0
        %v1961 = vsel %vm1960, %v1959, 0
        %v1962 = vshrl.u32 %v1961, 5
        %v1963 = vand.u32 %v1961, 31
        %v1964 = vsub.s32 32, %v1963
        %v1965 = vshrl.u32 683565275, %v1964
        %v1966 = vshll.u32 683565275, %v1963
        %v1967 = vshrl.u32 2475754826, %v1964
        %v1968 = vor.u32 %v1966, %v1967
        %v1969 = vshll.u32 2475754826, %v1963
        %v1970 = vshrl.u32 2131351028, %v1964
        %v1971 = vor.u32 %v1969, %v1970
        %v1972 = vshll.u32 2131351028, %v1963
        %v1973 = vshrl.u32 2102212464, %v1964
        %v1974 = vor.u32 %v1972, %v1973
        %v1975 = vshll.u32 2102212464, %v1963
        %v1976 = vshrl.u32 920167782, %v1964
        %v1977 = vor.u32 %v1975, %v1976
        %v1978 = vshll.u32 920167782, %v1963
        %v1979 = vshrl.u32 1326507024, %v1964
        %v1980 = vor.u32 %v1978, %v1979
        %vm1981 = vcmp.lt.s32.totalorder %v1962, 1
        %vm1982 = vcmp.lt.s32.totalorder %v1962, 2
        %vm1983 = vcmp.lt.s32.totalorder %v1962, 3
        %vm1984 = vcmp.lt.s32.totalorder %v1962, 4
        %v1985 = vsel %vm1981, %v1965, %v1968
        %v1986 = vsel %vm1984, %v1974, 2102212464
        %v1987 = vsel %vm1983, %v1971, %v1986
        %v1988 = vsel %vm1982, %v1985, %v1987
        %v1989 = vsel %vm1981, %v1968, %v1971
        %v1990 = vsel %vm1984, %v1977, 920167782
        %v1991 = vsel %vm1983, %v1974, %v1990
        %v1992 = vsel %vm1982, %v1989, %v1991
        %v1993 = vsel %vm1981, %v1971, %v1974
        %v1994 = vsel %vm1984, %v1980, 1326507024
        %v1995 = vsel %vm1983, %v1977, %v1994
        %v1996 = vsel %vm1982, %v1993, %v1995
        %v1997 = vshll.u32 %v1957, 8
        %v1998 = vmul.u32.u64.compose %v1997, %v1996
        %v1999 = vextract.low.u32 %v1998
        %v2000 = vextract.high.u32 %v1998
        %v2001 = vmul.u32.u64.compose %v1997, %v1992
        %v2002 = vextract.low.u32 %v2001
        %v2003 = vextract.high.u32 %v2001
        %v2004 = vmul.u32 %v1997, %v1988
        %v2005 = vadd.s32 %v2000, %v2002
        %vm2006 = vc.u32 %v2000, %v2002
        %v2007 = vadd.s32 %v2003, 1
        %v2008 = vsel %vm2006, %v2007, %v2003
        %v2009 = vadd.s32 %v2004, %v2008
        %v2010 = vadd.s32 %v2009, 536870912
        %v2011 = vshrl.u32 %v2010, 30
        %v2012 = vshll.u32 %v2011, 30
        %v2013 = vsub.s32 %v2009, %v2012
        %vm2014 = vcmp.lt.s32.totalorder %v2013, 0
        %v2015 = vsub.s32 0, %v2013
        %v2016 = vsel %vm2014, %v2015, %v2013
        %v2017 = vclz %v2016
        %v2018 = vsub.s32 %v2017, 2
        %vm2019 = vcmp.gt.s32.totalorder 0, %v2018
        %v2020 = vsel %vm2019, 0, %v2018
        %v2021 = vsub.s32 32, %v2020
        %v2022 = vshll.u32 %v2013, %v2020
        %v2023 = vshrl.u32 %v2005, %v2021
        %v2024 = vor.u32 %v2022, %v2023
        %v2025 = vsub.s32 4294967266, %v2020
        %v2026 = vadd.s32 %v2025, 127
        %v2027 = vshll.u32 %v2026, 23
        %v2028 = vor.u32 4788187, %v2027
        %v2029 = vand.u32 2147483647, %v2028
        %v2031 = vcvt.s32.f32 %v2024
        %v2032 = vmul.f32 %v2031, %v2029
        %v2033 = vxor.u32 %v2032, 2147483648
        %v2034 = vsel %vm1951, %v2033, %v2032
        %v2035 = vsub.s32 4, %v2011
        %v2036 = vsel %vm1951, %v2035, %v2011
        %v2037 = vsel %vm1950, %v1421, %v2034
        %v2038 = vsel %vm1950, 0, %v2036
        %v2039 = vcosq.f32.pop %v2037
        %v2040 = vsinq.f32.pop %v2037
        %vm2041 = vweird.f32 %v1421
        %v2042 = vadd.s32 %v2038, 3
        %v2043 = vand.u32 %v2042, 3
        %vm2044 = vcmp.lt.s32.totalorder %v2043, 2
        %vm2045 = vcmp.eq.s32.totalorder %v2043, 0
        %v2046 = vxor.u32 %v2040, 2147483648
        %v2047 = vsel %vm2045, %v2039, %v2046
        %vm2048 = vcmp.eq.s32.totalorder %v2043, 2
        %v2049 = vxor.u32 %v2039, 2147483648
        %v2050 = vsel %vm2048, %v2049, %v2040
        %v2051 = vsel %vm2044, %v2047, %v2050
        %v2052 = vsel %vm2041, nan, %v2051
        %v2053 = vand.u32 2147483647, %v1425
        %vm2054 = vcmp.le.f32.partialorder %v2053, 0.7853982
        %vm2055 = vcmp.lt.s32.totalorder %v1425, 0
        %v2056 = vand.u32 %v1425, 2139095040
        %v2057 = vshrl.u32 %v2056, 23
        %v2058 = vsub.s32 %v2057, 127
        %v2059 = vand.u32 2147483647, %v1425
        %v2060 = vand.u32 %v2059, 8388607
        %v2061 = vor.u32 %v2060, 8388608
        %v2062 = vsub.s32 0, %v2061
        %v2063 = vadd.s32 %v2058, 1
        %vm2064 = vcmp.gt.s32.totalorder %v2063, 0
        %v2065 = vsel %vm2064, %v2063, 0
        %v2066 = vshrl.u32 %v2065, 5
        %v2067 = vand.u32 %v2065, 31
        %v2068 = vsub.s32 32, %v2067
        %v2069 = vshrl.u32 683565275, %v2068
        %v2070 = vshll.u32 683565275, %v2067
        %v2071 = vshrl.u32 2475754826, %v2068
        %v2072 = vor.u32 %v2070, %v2071
        %v2073 = vshll.u32 2475754826, %v2067
        %v2074 = vshrl.u32 2131351028, %v2068
        %v2075 = vor.u32 %v2073, %v2074
        %v2076 = vshll.u32 2131351028, %v2067
        %v2077 = vshrl.u32 2102212464, %v2068
        %v2078 = vor.u32 %v2076, %v2077
        %v2079 = vshll.u32 2102212464, %v2067
        %v2080 = vshrl.u32 920167782, %v2068
        %v2081 = vor.u32 %v2079, %v2080
        %v2082 = vshll.u32 920167782, %v2067
        %v2083 = vshrl.u32 1326507024, %v2068
        %v2084 = vor.u32 %v2082, %v2083
        %vm2085 = vcmp.lt.s32.totalorder %v2066, 1
        %vm2086 = vcmp.lt.s32.totalorder %v2066, 2
        %vm2087 = vcmp.lt.s32.totalorder %v2066, 3
        %vm2088 = vcmp.lt.s32.totalorder %v2066, 4
        %v2089 = vsel %vm2085, %v2069, %v2072
        %v2090 = vsel %vm2088, %v2078, 2102212464
        %v2091 = vsel %vm2087, %v2075, %v2090
        %v2092 = vsel %vm2086, %v2089, %v2091
        %v2093 = vsel %vm2085, %v2072, %v2075
        %v2094 = vsel %vm2088, %v2081, 920167782
        %v2095 = vsel %vm2087, %v2078, %v2094
        %v2096 = vsel %vm2086, %v2093, %v2095
        %v2097 = vsel %vm2085, %v2075, %v2078
        %v2098 = vsel %vm2088, %v2084, 1326507024
        %v2099 = vsel %vm2087, %v2081, %v2098
        %v2100 = vsel %vm2086, %v2097, %v2099
        %v2101 = vshll.u32 %v2061, 8
        %v2102 = vmul.u32.u64.compose %v2101, %v2100
        %v2103 = vextract.low.u32 %v2102
        %v2104 = vextract.high.u32 %v2102
        %v2105 = vmul.u32.u64.compose %v2101, %v2096
        %v2106 = vextract.low.u32 %v2105
        %v2107 = vextract.high.u32 %v2105
        %v2108 = vmul.u32 %v2101, %v2092
        %v2109 = vadd.s32 %v2104, %v2106
        %vm2110 = vc.u32 %v2104, %v2106
        %v2111 = vadd.s32 %v2107, 1
        %v2112 = vsel %vm2110, %v2111, %v2107
        %v2113 = vadd.s32 %v2108, %v2112
        %v2114 = vadd.s32 %v2113, 536870912
        %v2115 = vshrl.u32 %v2114, 30
        %v2116 = vshll.u32 %v2115, 30
        %v2117 = vsub.s32 %v2113, %v2116
        %vm2118 = vcmp.lt.s32.totalorder %v2117, 0
        %v2119 = vsub.s32 0, %v2117
        %v2120 = vsel %vm2118, %v2119, %v2117
        %v2121 = vclz %v2120
        %v2122 = vsub.s32 %v2121, 2
        %vm2123 = vcmp.gt.s32.totalorder 0, %v2122
        %v2124 = vsel %vm2123, 0, %v2122
        %v2125 = vsub.s32 32, %v2124
        %v2126 = vshll.u32 %v2117, %v2124
        %v2127 = vshrl.u32 %v2109, %v2125
        %v2128 = vor.u32 %v2126, %v2127
        %v2129 = vsub.s32 4294967266, %v2124
        %v2130 = vadd.s32 %v2129, 127
        %v2131 = vshll.u32 %v2130, 23
        %v2132 = vor.u32 4788187, %v2131
        %v2133 = vand.u32 2147483647, %v2132
        %v2135 = vcvt.s32.f32 %v2128
        %v2136 = vmul.f32 %v2135, %v2133
        %v2137 = vxor.u32 %v2136, 2147483648
        %v2138 = vsel %vm2055, %v2137, %v2136
        %v2139 = vsub.s32 4, %v2115
        %v2140 = vsel %vm2055, %v2139, %v2115
        %v2141 = vsel %vm2054, %v1425, %v2138
        %v2142 = vsel %vm2054, 0, %v2140
        %v2143 = vcosq.f32.pop %v2141
        %v2144 = vsinq.f32.pop %v2141
        %vm2145 = vweird.f32 %v1425
        %v2146 = vadd.s32 %v2142, 3
        %v2147 = vand.u32 %v2146, 3
        %vm2148 = vcmp.lt.s32.totalorder %v2147, 2
        %vm2149 = vcmp.eq.s32.totalorder %v2147, 0
        %v2150 = vxor.u32 %v2144, 2147483648
        %v2151 = vsel %vm2149, %v2143, %v2150
        %vm2152 = vcmp.eq.s32.totalorder %v2147, 2
        %v2153 = vxor.u32 %v2143, 2147483648
        %v2154 = vsel %vm2152, %v2153, %v2144
        %v2155 = vsel %vm2148, %v2151, %v2154
        %v2156 = vsel %vm2145, nan, %v2155
        %v2157 = vand.u32 2147483647, %v1427
        %vm2158 = vcmp.le.f32.partialorder %v2157, 0.7853982
        %vm2159 = vcmp.lt.s32.totalorder %v1427, 0
        %v2160 = vand.u32 %v1427, 2139095040
        %v2161 = vshrl.u32 %v2160, 23
        %v2162 = vsub.s32 %v2161, 127
        %v2163 = vand.u32 2147483647, %v1427
        %v2164 = vand.u32 %v2163, 8388607
        %v2165 = vor.u32 %v2164, 8388608
        %v2166 = vsub.s32 0, %v2165
        %v2167 = vadd.s32 %v2162, 1
        %vm2168 = vcmp.gt.s32.totalorder %v2167, 0
        %v2169 = vsel %vm2168, %v2167, 0
        %v2170 = vshrl.u32 %v2169, 5
        %v2171 = vand.u32 %v2169, 31
        %v2172 = vsub.s32 32, %v2171
        %v2173 = vshrl.u32 683565275, %v2172
        %v2174 = vshll.u32 683565275, %v2171
        %v2175 = vshrl.u32 2475754826, %v2172
        %v2176 = vor.u32 %v2174, %v2175
        %v2177 = vshll.u32 2475754826, %v2171
        %v2178 = vshrl.u32 2131351028, %v2172
        %v2179 = vor.u32 %v2177, %v2178
        %v2180 = vshll.u32 2131351028, %v2171
        %v2181 = vshrl.u32 2102212464, %v2172
        %v2182 = vor.u32 %v2180, %v2181
        %v2183 = vshll.u32 2102212464, %v2171
        %v2184 = vshrl.u32 920167782, %v2172
        %v2185 = vor.u32 %v2183, %v2184
        %v2186 = vshll.u32 920167782, %v2171
        %v2187 = vshrl.u32 1326507024, %v2172
        %v2188 = vor.u32 %v2186, %v2187
        %vm2189 = vcmp.lt.s32.totalorder %v2170, 1
        %vm2190 = vcmp.lt.s32.totalorder %v2170, 2
        %vm2191 = vcmp.lt.s32.totalorder %v2170, 3
        %vm2192 = vcmp.lt.s32.totalorder %v2170, 4
        %v2193 = vsel %vm2189, %v2173, %v2176
        %v2194 = vsel %vm2192, %v2182, 2102212464
        %v2195 = vsel %vm2191, %v2179, %v2194
        %v2196 = vsel %vm2190, %v2193, %v2195
        %v2197 = vsel %vm2189, %v2176, %v2179
        %v2198 = vsel %vm2192, %v2185, 920167782
        %v2199 = vsel %vm2191, %v2182, %v2198
        %v2200 = vsel %vm2190, %v2197, %v2199
        %v2201 = vsel %vm2189, %v2179, %v2182
        %v2202 = vsel %vm2192, %v2188, 1326507024
        %v2203 = vsel %vm2191, %v2185, %v2202
        %v2204 = vsel %vm2190, %v2201, %v2203
        %v2205 = vshll.u32 %v2165, 8
        %v2206 = vmul.u32.u64.compose %v2205, %v2204
        %v2207 = vextract.low.u32 %v2206
        %v2208 = vextract.high.u32 %v2206
        %v2209 = vmul.u32.u64.compose %v2205, %v2200
        %v2210 = vextract.low.u32 %v2209
        %v2211 = vextract.high.u32 %v2209
        %v2212 = vmul.u32 %v2205, %v2196
        %v2213 = vadd.s32 %v2208, %v2210
        %vm2214 = vc.u32 %v2208, %v2210
        %v2215 = vadd.s32 %v2211, 1
        %v2216 = vsel %vm2214, %v2215, %v2211
        %v2217 = vadd.s32 %v2212, %v2216
        %v2218 = vadd.s32 %v2217, 536870912
        %v2219 = vshrl.u32 %v2218, 30
        %v2220 = vshll.u32 %v2219, 30
        %v2221 = vsub.s32 %v2217, %v2220
        %vm2222 = vcmp.lt.s32.totalorder %v2221, 0
        %v2223 = vsub.s32 0, %v2221
        %v2224 = vsel %vm2222, %v2223, %v2221
        %v2225 = vclz %v2224
        %v2226 = vsub.s32 %v2225, 2
        %vm2227 = vcmp.gt.s32.totalorder 0, %v2226
        %v2228 = vsel %vm2227, 0, %v2226
        %v2229 = vsub.s32 32, %v2228
        %v2230 = vshll.u32 %v2221, %v2228
        %v2231 = vshrl.u32 %v2213, %v2229
        %v2232 = vor.u32 %v2230, %v2231
        %v2233 = vsub.s32 4294967266, %v2228
        %v2234 = vadd.s32 %v2233, 127
        %v2235 = vshll.u32 %v2234, 23
        %v2236 = vor.u32 4788187, %v2235
        %v2237 = vand.u32 2147483647, %v2236
        %v2239 = vcvt.s32.f32 %v2232
        %v2240 = vmul.f32 %v2239, %v2237
        %v2241 = vxor.u32 %v2240, 2147483648
        %v2242 = vsel %vm2159, %v2241, %v2240
        %v2243 = vsub.s32 4, %v2219
        %v2244 = vsel %vm2159, %v2243, %v2219
        %v2245 = vsel %vm2158, %v1427, %v2242
        %v2246 = vsel %vm2158, 0, %v2244
        %v2247 = vcosq.f32.pop %v2245
        %v2248 = vsinq.f32.pop %v2245
        %vm2249 = vweird.f32 %v1427
        %v2250 = vadd.s32 %v2246, 3
        %v2251 = vand.u32 %v2250, 3
        %vm2252 = vcmp.lt.s32.totalorder %v2251, 2
        %vm2253 = vcmp.eq.s32.totalorder %v2251, 0
        %v2254 = vxor.u32 %v2248, 2147483648
        %v2255 = vsel %vm2253, %v2247, %v2254
        %vm2256 = vcmp.eq.s32.totalorder %v2251, 2
        %v2257 = vxor.u32 %v2247, 2147483648
        %v2258 = vsel %vm2256, %v2257, %v2248
        %v2259 = vsel %vm2252, %v2255, %v2258
        %v2260 = vsel %vm2249, nan, %v2259
        %v2261 = vld [vmem:[%s5] sm:$0xff]
        %v2262 = vld [vmem:[%s5 + $0x8] sm:$0xff]
        %v2263 = vld [vmem:[%s5 + $0x10] sm:$0xff]
        %v2264 = vld [vmem:[%s5 + $0x18] sm:$0xff]
        %v2265 = vld [vmem:[%s6] sm:$0xff]
        %v2266 = vld [vmem:[%s6 + $0x8] sm:$0xff]
        %v2267 = vld [vmem:[%s6 + $0x10] sm:$0xff]
        %v2268 = vld [vmem:[%s6 + $0x18] sm:$0xff]
        %2270 = vset.pattern.permute.xlu0 0
        %2271 = vperm.xlu0 %2270, %v2265
        %v2272 = vpop.permute.xlu0 %2271
        %2275 = vset.pattern.permute.xlu0 0
        %2276 = vperm.xlu0 %2275, %v2266
        %v2277 = vpop.permute.xlu0 %2276
        %2280 = vset.pattern.permute.xlu0 0
        %2281 = vperm.xlu0 %2280, %v2267
        %v2282 = vpop.permute.xlu0 %2281
        %2285 = vset.pattern.permute.xlu0 0
        %2286 = vperm.xlu0 %2285, %v2268
        %v2287 = vpop.permute.xlu0 %2286
        %v2290 = vsel %vm1327, %v2261, 0
        %v2293 = vsel %vm1327, %v2262, 0
        %v2296 = vsel %vm1327, %v2263, 0
        %v2299 = vsel %vm1327, %v2264, 0
        %2301 = vmatprep.subr.mxu0 0.0
        %2302 = vmatpush1.msra.mxu0 0.0
        %2303 = vmatprep.subr.mxu0 0.0
        %2304 = vmatpush1.msra.mxu0 0.0
        %2305 = vmatprep.subr.mxu0 0.0
        %2306 = vmatpush1.msra.mxu0 0.0
        %2307 = vmatprep.subr.mxu0 0.0
        %2308 = vmatpush1.msra.mxu0 0.0
        %2309 = vmatprep.subr.mxu0 0.0
        %2310 = vmatpush1.msra.mxu0 0.0
        %2311 = vmatprep.subr.mxu0 0.0
        %2312 = vmatpush1.msra.mxu0 0.0
        %2313 = vmatprep.subr.mxu0 0.0
        %2314 = vmatpush1.msra.mxu0 0.0
        %2315 = vmatprep.subr.mxu0 0.0
        %2316 = vmatpush1.msra.mxu0 0.0
        %2317 = vmatprep.subr.mxu0 0.0
        %2318 = vmatpush1.msra.mxu0 0.0
        %2319 = vmatprep.subr.mxu0 0.0
        %2320 = vmatpush1.msra.mxu0 0.0
        %2321 = vmatprep.subr.mxu0 0.0
        %2322 = vmatpush1.msra.mxu0 0.0
        %2323 = vmatprep.subr.mxu0 0.0
        %2324 = vmatpush1.msra.mxu0 0.0
        %2325 = vmatprep.subr.mxu0 %v2260
        %2326 = vmatpush1.msra.mxu0 %v2156
        %2327 = vmatprep.subr.mxu0 %v2052
        %2328 = vmatpush1.msra.mxu0 %v1948
        %2329 = vmatprep.subr.mxu0 %v1844
        %2330 = vmatpush1.msra.mxu0 %v1740
        %2331 = vmatprep.subr.mxu0 %v1636
        %2332 = vmatpush1.msra.mxu0 %v1532
        %2333 = vmatprep.subr.mxu0 0.0
        %2334 = vmatpush2.msra.mxu0 0.0
        %2335 = vmatprep.subr.mxu0 0.0
        %2336 = vmatpush2.msra.mxu0 0.0
        %2337 = vmatprep.subr.mxu0 0.0
        %2338 = vmatpush2.msra.mxu0 0.0
        %2339 = vmatprep.subr.mxu0 0.0
        %2340 = vmatpush2.msra.mxu0 0.0
        %2341 = vmatprep.subr.mxu0 0.0
        %2342 = vmatpush2.msra.mxu0 0.0
        %2343 = vmatprep.subr.mxu0 0.0
        %2344 = vmatpush2.msra.mxu0 0.0
        %2345 = vmatprep.subr.mxu0 0.0
        %2346 = vmatpush2.msra.mxu0 0.0
        %2347 = vmatprep.subr.mxu0 0.0
        %2348 = vmatpush2.msra.mxu0 0.0
        %2349 = vmatprep.subr.mxu0 0.0
        %2350 = vmatpush2.msra.mxu0 0.0
        %2351 = vmatprep.subr.mxu0 0.0
        %2352 = vmatpush2.msra.mxu0 0.0
        %2353 = vmatprep.subr.mxu0 0.0
        %2354 = vmatpush2.msra.mxu0 0.0
        %2355 = vmatprep.subr.mxu0 0.0
        %2356 = vmatpush2.msra.mxu0 0.0
        %2357 = vmatprep.subr.mxu0 0.0
        %2358 = vmatpush2.msra.mxu0 0.0
        %2359 = vmatprep.subr.mxu0 0.0
        %2360 = vmatpush2.msra.mxu0 0.0
        %2361 = vmatprep.subr.mxu0 0.0
        %2362 = vmatpush2.msra.mxu0 0.0
        %2363 = vmatprep.subr.mxu0 0.0
        %2364 = vmatpush2.msra.mxu0 0.0
        %2365 = vmatprep.mubr.f32.mxu0 0.0
        %2366 = vmatmul.mubr.f32.gmra.mxu0 %v2290
        %v2367 = vpop.f32.mrf.mxu0
        %v2368 = vadd.f32 %v2272, %v2367
        %v2369 = vpop.f32.mrf.mxu0
        %v2370 = vadd.f32 %v2272, %v2369
        %2371 = vmatprep.mubr.f32.mxu0 0.0
        %2372 = vmatmul.mubr.f32.gmra.mxu0 %v2293
        %v2373 = vpop.f32.mrf.mxu0
        %v2374 = vadd.f32 %v2277, %v2373
        %v2375 = vpop.f32.mrf.mxu0
        %v2376 = vadd.f32 %v2277, %v2375
        %2377 = vmatprep.mubr.f32.mxu0 0.0
        %2378 = vmatmul.mubr.f32.gmra.mxu0 %v2296
        %v2379 = vpop.f32.mrf.mxu0
        %v2380 = vadd.f32 %v2282, %v2379
        %v2381 = vpop.f32.mrf.mxu0
        %v2382 = vadd.f32 %v2282, %v2381
        %2383 = vmatprep.mubr.f32.mxu0 0.0
        %2384 = vmatmul.mubr.f32.gmra.mxu0 %v2299
        %v2385 = vpop.f32.mrf.mxu0
        %v2386 = vadd.f32 %v2287, %v2385
        %v2387 = vpop.f32.mrf.mxu0
        %v2388 = vadd.f32 %v2287, %v2387
        %2389 = vdwg.mxu0
        %v2390 = vand.u32 2147483647, %v2368
        %vm2391 = vcmp.le.f32.partialorder %v2390, 0.7853982
        %vm2392 = vcmp.lt.s32.totalorder %v2368, 0
        %v2393 = vand.u32 %v2368, 2139095040
        %v2394 = vshrl.u32 %v2393, 23
        %v2395 = vsub.s32 %v2394, 127
        %v2396 = vand.u32 2147483647, %v2368
        %v2397 = vand.u32 %v2396, 8388607
        %v2398 = vor.u32 %v2397, 8388608
        %v2399 = vsub.s32 0, %v2398
        %v2400 = vadd.s32 %v2395, 1
        %vm2401 = vcmp.gt.s32.totalorder %v2400, 0
        %v2402 = vsel %vm2401, %v2400, 0
        %v2403 = vshrl.u32 %v2402, 5
        %v2404 = vand.u32 %v2402, 31
        %v2405 = vsub.s32 32, %v2404
        %v2406 = vshrl.u32 683565275, %v2405
        %v2407 = vshll.u32 683565275, %v2404
        %v2408 = vshrl.u32 2475754826, %v2405
        %v2409 = vor.u32 %v2407, %v2408
        %v2410 = vshll.u32 2475754826, %v2404
        %v2411 = vshrl.u32 2131351028, %v2405
        %v2412 = vor.u32 %v2410, %v2411
        %v2413 = vshll.u32 2131351028, %v2404
        %v2414 = vshrl.u32 2102212464, %v2405
        %v2415 = vor.u32 %v2413, %v2414
        %v2416 = vshll.u32 2102212464, %v2404
        %v2417 = vshrl.u32 920167782, %v2405
        %v2418 = vor.u32 %v2416, %v2417
        %v2419 = vshll.u32 920167782, %v2404
        %v2420 = vshrl.u32 1326507024, %v2405
        %v2421 = vor.u32 %v2419, %v2420
        %vm2422 = vcmp.lt.s32.totalorder %v2403, 1
        %vm2423 = vcmp.lt.s32.totalorder %v2403, 2
        %vm2424 = vcmp.lt.s32.totalorder %v2403, 3
        %vm2425 = vcmp.lt.s32.totalorder %v2403, 4
        %v2426 = vsel %vm2422, %v2406, %v2409
        %v2427 = vsel %vm2425, %v2415, 2102212464
        %v2428 = vsel %vm2424, %v2412, %v2427
        %v2429 = vsel %vm2423, %v2426, %v2428
        %v2430 = vsel %vm2422, %v2409, %v2412
        %v2431 = vsel %vm2425, %v2418, 920167782
        %v2432 = vsel %vm2424, %v2415, %v2431
        %v2433 = vsel %vm2423, %v2430, %v2432
        %v2434 = vsel %vm2422, %v2412, %v2415
        %v2435 = vsel %vm2425, %v2421, 1326507024
        %v2436 = vsel %vm2424, %v2418, %v2435
        %v2437 = vsel %vm2423, %v2434, %v2436
        %v2438 = vshll.u32 %v2398, 8
        %v2439 = vmul.u32.u64.compose %v2438, %v2437
        %v2440 = vextract.low.u32 %v2439
        %v2441 = vextract.high.u32 %v2439
        %v2442 = vmul.u32.u64.compose %v2438, %v2433
        %v2443 = vextract.low.u32 %v2442
        %v2444 = vextract.high.u32 %v2442
        %v2445 = vmul.u32 %v2438, %v2429
        %v2446 = vadd.s32 %v2441, %v2443
        %vm2447 = vc.u32 %v2441, %v2443
        %v2448 = vadd.s32 %v2444, 1
        %v2449 = vsel %vm2447, %v2448, %v2444
        %v2450 = vadd.s32 %v2445, %v2449
        %v2451 = vadd.s32 %v2450, 536870912
        %v2452 = vshrl.u32 %v2451, 30
        %v2453 = vshll.u32 %v2452, 30
        %v2454 = vsub.s32 %v2450, %v2453
        %vm2455 = vcmp.lt.s32.totalorder %v2454, 0
        %v2456 = vsub.s32 0, %v2454
        %v2457 = vsel %vm2455, %v2456, %v2454
        %v2458 = vclz %v2457
        %v2459 = vsub.s32 %v2458, 2
        %vm2460 = vcmp.gt.s32.totalorder 0, %v2459
        %v2461 = vsel %vm2460, 0, %v2459
        %v2462 = vsub.s32 32, %v2461
        %v2463 = vshll.u32 %v2454, %v2461
        %v2464 = vshrl.u32 %v2446, %v2462
        %v2465 = vor.u32 %v2463, %v2464
        %v2466 = vsub.s32 4294967266, %v2461
        %v2467 = vadd.s32 %v2466, 127
        %v2468 = vshll.u32 %v2467, 23
        %v2469 = vor.u32 4788187, %v2468
        %v2470 = vand.u32 2147483647, %v2469
        %v2472 = vcvt.s32.f32 %v2465
        %v2473 = vmul.f32 %v2472, %v2470
        %v2474 = vxor.u32 %v2473, 2147483648
        %v2475 = vsel %vm2392, %v2474, %v2473
        %v2476 = vsub.s32 4, %v2452
        %v2477 = vsel %vm2392, %v2476, %v2452
        %v2478 = vsel %vm2391, %v2368, %v2475
        %v2479 = vsel %vm2391, 0, %v2477
        %v2480 = vcosq.f32.pop %v2478
        %v2481 = vsinq.f32.pop %v2478
        %vm2482 = vweird.f32 %v2368
        %v2483 = vadd.s32 %v2479, 3
        %v2484 = vand.u32 %v2483, 3
        %vm2485 = vcmp.lt.s32.totalorder %v2484, 2
        %vm2486 = vcmp.eq.s32.totalorder %v2484, 0
        %v2487 = vxor.u32 %v2481, 2147483648
        %v2488 = vsel %vm2486, %v2480, %v2487
        %vm2489 = vcmp.eq.s32.totalorder %v2484, 2
        %v2490 = vxor.u32 %v2480, 2147483648
        %v2491 = vsel %vm2489, %v2490, %v2481
        %v2492 = vsel %vm2485, %v2488, %v2491
        %v2493 = vsel %vm2482, nan, %v2492
        %v2494 = vand.u32 2147483647, %v2370
        %vm2495 = vcmp.le.f32.partialorder %v2494, 0.7853982
        %vm2496 = vcmp.lt.s32.totalorder %v2370, 0
        %v2497 = vand.u32 %v2370, 2139095040
        %v2498 = vshrl.u32 %v2497, 23
        %v2499 = vsub.s32 %v2498, 127
        %v2500 = vand.u32 2147483647, %v2370
        %v2501 = vand.u32 %v2500, 8388607
        %v2502 = vor.u32 %v2501, 8388608
        %v2503 = vsub.s32 0, %v2502
        %v2504 = vadd.s32 %v2499, 1
        %vm2505 = vcmp.gt.s32.totalorder %v2504, 0
        %v2506 = vsel %vm2505, %v2504, 0
        %v2507 = vshrl.u32 %v2506, 5
        %v2508 = vand.u32 %v2506, 31
        %v2509 = vsub.s32 32, %v2508
        %v2510 = vshrl.u32 683565275, %v2509
        %v2511 = vshll.u32 683565275, %v2508
        %v2512 = vshrl.u32 2475754826, %v2509
        %v2513 = vor.u32 %v2511, %v2512
        %v2514 = vshll.u32 2475754826, %v2508
        %v2515 = vshrl.u32 2131351028, %v2509
        %v2516 = vor.u32 %v2514, %v2515
        %v2517 = vshll.u32 2131351028, %v2508
        %v2518 = vshrl.u32 2102212464, %v2509
        %v2519 = vor.u32 %v2517, %v2518
        %v2520 = vshll.u32 2102212464, %v2508
        %v2521 = vshrl.u32 920167782, %v2509
        %v2522 = vor.u32 %v2520, %v2521
        %v2523 = vshll.u32 920167782, %v2508
        %v2524 = vshrl.u32 1326507024, %v2509
        %v2525 = vor.u32 %v2523, %v2524
        %vm2526 = vcmp.lt.s32.totalorder %v2507, 1
        %vm2527 = vcmp.lt.s32.totalorder %v2507, 2
        %vm2528 = vcmp.lt.s32.totalorder %v2507, 3
        %vm2529 = vcmp.lt.s32.totalorder %v2507, 4
        %v2530 = vsel %vm2526, %v2510, %v2513
        %v2531 = vsel %vm2529, %v2519, 2102212464
        %v2532 = vsel %vm2528, %v2516, %v2531
        %v2533 = vsel %vm2527, %v2530, %v2532
        %v2534 = vsel %vm2526, %v2513, %v2516
        %v2535 = vsel %vm2529, %v2522, 920167782
        %v2536 = vsel %vm2528, %v2519, %v2535
        %v2537 = vsel %vm2527, %v2534, %v2536
        %v2538 = vsel %vm2526, %v2516, %v2519
        %v2539 = vsel %vm2529, %v2525, 1326507024
        %v2540 = vsel %vm2528, %v2522, %v2539
        %v2541 = vsel %vm2527, %v2538, %v2540
        %v2542 = vshll.u32 %v2502, 8
        %v2543 = vmul.u32.u64.compose %v2542, %v2541
        %v2544 = vextract.low.u32 %v2543
        %v2545 = vextract.high.u32 %v2543
        %v2546 = vmul.u32.u64.compose %v2542, %v2537
        %v2547 = vextract.low.u32 %v2546
        %v2548 = vextract.high.u32 %v2546
        %v2549 = vmul.u32 %v2542, %v2533
        %v2550 = vadd.s32 %v2545, %v2547
        %vm2551 = vc.u32 %v2545, %v2547
        %v2552 = vadd.s32 %v2548, 1
        %v2553 = vsel %vm2551, %v2552, %v2548
        %v2554 = vadd.s32 %v2549, %v2553
        %v2555 = vadd.s32 %v2554, 536870912
        %v2556 = vshrl.u32 %v2555, 30
        %v2557 = vshll.u32 %v2556, 30
        %v2558 = vsub.s32 %v2554, %v2557
        %vm2559 = vcmp.lt.s32.totalorder %v2558, 0
        %v2560 = vsub.s32 0, %v2558
        %v2561 = vsel %vm2559, %v2560, %v2558
        %v2562 = vclz %v2561
        %v2563 = vsub.s32 %v2562, 2
        %vm2564 = vcmp.gt.s32.totalorder 0, %v2563
        %v2565 = vsel %vm2564, 0, %v2563
        %v2566 = vsub.s32 32, %v2565
        %v2567 = vshll.u32 %v2558, %v2565
        %v2568 = vshrl.u32 %v2550, %v2566
        %v2569 = vor.u32 %v2567, %v2568
        %v2570 = vsub.s32 4294967266, %v2565
        %v2571 = vadd.s32 %v2570, 127
        %v2572 = vshll.u32 %v2571, 23
        %v2573 = vor.u32 4788187, %v2572
        %v2574 = vand.u32 2147483647, %v2573
        %v2576 = vcvt.s32.f32 %v2569
        %v2577 = vmul.f32 %v2576, %v2574
        %v2578 = vxor.u32 %v2577, 2147483648
        %v2579 = vsel %vm2496, %v2578, %v2577
        %v2580 = vsub.s32 4, %v2556
        %v2581 = vsel %vm2496, %v2580, %v2556
        %v2582 = vsel %vm2495, %v2370, %v2579
        %v2583 = vsel %vm2495, 0, %v2581
        %v2584 = vcosq.f32.pop %v2582
        %v2585 = vsinq.f32.pop %v2582
        %vm2586 = vweird.f32 %v2370
        %v2587 = vadd.s32 %v2583, 3
        %v2588 = vand.u32 %v2587, 3
        %vm2589 = vcmp.lt.s32.totalorder %v2588, 2
        %vm2590 = vcmp.eq.s32.totalorder %v2588, 0
        %v2591 = vxor.u32 %v2585, 2147483648
        %v2592 = vsel %vm2590, %v2584, %v2591
        %vm2593 = vcmp.eq.s32.totalorder %v2588, 2
        %v2594 = vxor.u32 %v2584, 2147483648
        %v2595 = vsel %vm2593, %v2594, %v2585
        %v2596 = vsel %vm2589, %v2592, %v2595
        %v2597 = vsel %vm2586, nan, %v2596
        %v2598 = vand.u32 2147483647, %v2374
        %vm2599 = vcmp.le.f32.partialorder %v2598, 0.7853982
        %vm2600 = vcmp.lt.s32.totalorder %v2374, 0
        %v2601 = vand.u32 %v2374, 2139095040
        %v2602 = vshrl.u32 %v2601, 23
        %v2603 = vsub.s32 %v2602, 127
        %v2604 = vand.u32 2147483647, %v2374
        %v2605 = vand.u32 %v2604, 8388607
        %v2606 = vor.u32 %v2605, 8388608
        %v2607 = vsub.s32 0, %v2606
        %v2608 = vadd.s32 %v2603, 1
        %vm2609 = vcmp.gt.s32.totalorder %v2608, 0
        %v2610 = vsel %vm2609, %v2608, 0
        %v2611 = vshrl.u32 %v2610, 5
        %v2612 = vand.u32 %v2610, 31
        %v2613 = vsub.s32 32, %v2612
        %v2614 = vshrl.u32 683565275, %v2613
        %v2615 = vshll.u32 683565275, %v2612
        %v2616 = vshrl.u32 2475754826, %v2613
        %v2617 = vor.u32 %v2615, %v2616
        %v2618 = vshll.u32 2475754826, %v2612
        %v2619 = vshrl.u32 2131351028, %v2613
        %v2620 = vor.u32 %v2618, %v2619
        %v2621 = vshll.u32 2131351028, %v2612
        %v2622 = vshrl.u32 2102212464, %v2613
        %v2623 = vor.u32 %v2621, %v2622
        %v2624 = vshll.u32 2102212464, %v2612
        %v2625 = vshrl.u32 920167782, %v2613
        %v2626 = vor.u32 %v2624, %v2625
        %v2627 = vshll.u32 920167782, %v2612
        %v2628 = vshrl.u32 1326507024, %v2613
        %v2629 = vor.u32 %v2627, %v2628
        %vm2630 = vcmp.lt.s32.totalorder %v2611, 1
        %vm2631 = vcmp.lt.s32.totalorder %v2611, 2
        %vm2632 = vcmp.lt.s32.totalorder %v2611, 3
        %vm2633 = vcmp.lt.s32.totalorder %v2611, 4
        %v2634 = vsel %vm2630, %v2614, %v2617
        %v2635 = vsel %vm2633, %v2623, 2102212464
        %v2636 = vsel %vm2632, %v2620, %v2635
        %v2637 = vsel %vm2631, %v2634, %v2636
        %v2638 = vsel %vm2630, %v2617, %v2620
        %v2639 = vsel %vm2633, %v2626, 920167782
        %v2640 = vsel %vm2632, %v2623, %v2639
        %v2641 = vsel %vm2631, %v2638, %v2640
        %v2642 = vsel %vm2630, %v2620, %v2623
        %v2643 = vsel %vm2633, %v2629, 1326507024
        %v2644 = vsel %vm2632, %v2626, %v2643
        %v2645 = vsel %vm2631, %v2642, %v2644
        %v2646 = vshll.u32 %v2606, 8
        %v2647 = vmul.u32.u64.compose %v2646, %v2645
        %v2648 = vextract.low.u32 %v2647
        %v2649 = vextract.high.u32 %v2647
        %v2650 = vmul.u32.u64.compose %v2646, %v2641
        %v2651 = vextract.low.u32 %v2650
        %v2652 = vextract.high.u32 %v2650
        %v2653 = vmul.u32 %v2646, %v2637
        %v2654 = vadd.s32 %v2649, %v2651
        %vm2655 = vc.u32 %v2649, %v2651
        %v2656 = vadd.s32 %v2652, 1
        %v2657 = vsel %vm2655, %v2656, %v2652
        %v2658 = vadd.s32 %v2653, %v2657
        %v2659 = vadd.s32 %v2658, 536870912
        %v2660 = vshrl.u32 %v2659, 30
        %v2661 = vshll.u32 %v2660, 30
        %v2662 = vsub.s32 %v2658, %v2661
        %vm2663 = vcmp.lt.s32.totalorder %v2662, 0
        %v2664 = vsub.s32 0, %v2662
        %v2665 = vsel %vm2663, %v2664, %v2662
        %v2666 = vclz %v2665
        %v2667 = vsub.s32 %v2666, 2
        %vm2668 = vcmp.gt.s32.totalorder 0, %v2667
        %v2669 = vsel %vm2668, 0, %v2667
        %v2670 = vsub.s32 32, %v2669
        %v2671 = vshll.u32 %v2662, %v2669
        %v2672 = vshrl.u32 %v2654, %v2670
        %v2673 = vor.u32 %v2671, %v2672
        %v2674 = vsub.s32 4294967266, %v2669
        %v2675 = vadd.s32 %v2674, 127
        %v2676 = vshll.u32 %v2675, 23
        %v2677 = vor.u32 4788187, %v2676
        %v2678 = vand.u32 2147483647, %v2677
        %v2680 = vcvt.s32.f32 %v2673
        %v2681 = vmul.f32 %v2680, %v2678
        %v2682 = vxor.u32 %v2681, 2147483648
        %v2683 = vsel %vm2600, %v2682, %v2681
        %v2684 = vsub.s32 4, %v2660
        %v2685 = vsel %vm2600, %v2684, %v2660
        %v2686 = vsel %vm2599, %v2374, %v2683
        %v2687 = vsel %vm2599, 0, %v2685
        %v2688 = vcosq.f32.pop %v2686
        %v2689 = vsinq.f32.pop %v2686
        %vm2690 = vweird.f32 %v2374
        %v2691 = vadd.s32 %v2687, 3
        %v2692 = vand.u32 %v2691, 3
        %vm2693 = vcmp.lt.s32.totalorder %v2692, 2
        %vm2694 = vcmp.eq.s32.totalorder %v2692, 0
        %v2695 = vxor.u32 %v2689, 2147483648
        %v2696 = vsel %vm2694, %v2688, %v2695
        %vm2697 = vcmp.eq.s32.totalorder %v2692, 2
        %v2698 = vxor.u32 %v2688, 2147483648
        %v2699 = vsel %vm2697, %v2698, %v2689
        %v2700 = vsel %vm2693, %v2696, %v2699
        %v2701 = vsel %vm2690, nan, %v2700
        %v2702 = vand.u32 2147483647, %v2376
        %vm2703 = vcmp.le.f32.partialorder %v2702, 0.7853982
        %vm2704 = vcmp.lt.s32.totalorder %v2376, 0
        %v2705 = vand.u32 %v2376, 2139095040
        %v2706 = vshrl.u32 %v2705, 23
        %v2707 = vsub.s32 %v2706, 127
        %v2708 = vand.u32 2147483647, %v2376
        %v2709 = vand.u32 %v2708, 8388607
        %v2710 = vor.u32 %v2709, 8388608
        %v2711 = vsub.s32 0, %v2710
        %v2712 = vadd.s32 %v2707, 1
        %vm2713 = vcmp.gt.s32.totalorder %v2712, 0
        %v2714 = vsel %vm2713, %v2712, 0
        %v2715 = vshrl.u32 %v2714, 5
        %v2716 = vand.u32 %v2714, 31
        %v2717 = vsub.s32 32, %v2716
        %v2718 = vshrl.u32 683565275, %v2717
        %v2719 = vshll.u32 683565275, %v2716
        %v2720 = vshrl.u32 2475754826, %v2717
        %v2721 = vor.u32 %v2719, %v2720
        %v2722 = vshll.u32 2475754826, %v2716
        %v2723 = vshrl.u32 2131351028, %v2717
        %v2724 = vor.u32 %v2722, %v2723
        %v2725 = vshll.u32 2131351028, %v2716
        %v2726 = vshrl.u32 2102212464, %v2717
        %v2727 = vor.u32 %v2725, %v2726
        %v2728 = vshll.u32 2102212464, %v2716
        %v2729 = vshrl.u32 920167782, %v2717
        %v2730 = vor.u32 %v2728, %v2729
        %v2731 = vshll.u32 920167782, %v2716
        %v2732 = vshrl.u32 1326507024, %v2717
        %v2733 = vor.u32 %v2731, %v2732
        %vm2734 = vcmp.lt.s32.totalorder %v2715, 1
        %vm2735 = vcmp.lt.s32.totalorder %v2715, 2
        %vm2736 = vcmp.lt.s32.totalorder %v2715, 3
        %vm2737 = vcmp.lt.s32.totalorder %v2715, 4
        %v2738 = vsel %vm2734, %v2718, %v2721
        %v2739 = vsel %vm2737, %v2727, 2102212464
        %v2740 = vsel %vm2736, %v2724, %v2739
        %v2741 = vsel %vm2735, %v2738, %v2740
        %v2742 = vsel %vm2734, %v2721, %v2724
        %v2743 = vsel %vm2737, %v2730, 920167782
        %v2744 = vsel %vm2736, %v2727, %v2743
        %v2745 = vsel %vm2735, %v2742, %v2744
        %v2746 = vsel %vm2734, %v2724, %v2727
        %v2747 = vsel %vm2737, %v2733, 1326507024
        %v2748 = vsel %vm2736, %v2730, %v2747
        %v2749 = vsel %vm2735, %v2746, %v2748
        %v2750 = vshll.u32 %v2710, 8
        %v2751 = vmul.u32.u64.compose %v2750, %v2749
        %v2752 = vextract.low.u32 %v2751
        %v2753 = vextract.high.u32 %v2751
        %v2754 = vmul.u32.u64.compose %v2750, %v2745
        %v2755 = vextract.low.u32 %v2754
        %v2756 = vextract.high.u32 %v2754
        %v2757 = vmul.u32 %v2750, %v2741
        %v2758 = vadd.s32 %v2753, %v2755
        %vm2759 = vc.u32 %v2753, %v2755
        %v2760 = vadd.s32 %v2756, 1
        %v2761 = vsel %vm2759, %v2760, %v2756
        %v2762 = vadd.s32 %v2757, %v2761
        %v2763 = vadd.s32 %v2762, 536870912
        %v2764 = vshrl.u32 %v2763, 30
        %v2765 = vshll.u32 %v2764, 30
        %v2766 = vsub.s32 %v2762, %v2765
        %vm2767 = vcmp.lt.s32.totalorder %v2766, 0
        %v2768 = vsub.s32 0, %v2766
        %v2769 = vsel %vm2767, %v2768, %v2766
        %v2770 = vclz %v2769
        %v2771 = vsub.s32 %v2770, 2
        %vm2772 = vcmp.gt.s32.totalorder 0, %v2771
        %v2773 = vsel %vm2772, 0, %v2771
        %v2774 = vsub.s32 32, %v2773
        %v2775 = vshll.u32 %v2766, %v2773
        %v2776 = vshrl.u32 %v2758, %v2774
        %v2777 = vor.u32 %v2775, %v2776
        %v2778 = vsub.s32 4294967266, %v2773
        %v2779 = vadd.s32 %v2778, 127
        %v2780 = vshll.u32 %v2779, 23
        %v2781 = vor.u32 4788187, %v2780
        %v2782 = vand.u32 2147483647, %v2781
        %v2784 = vcvt.s32.f32 %v2777
        %v2785 = vmul.f32 %v2784, %v2782
        %v2786 = vxor.u32 %v2785, 2147483648
        %v2787 = vsel %vm2704, %v2786, %v2785
        %v2788 = vsub.s32 4, %v2764
        %v2789 = vsel %vm2704, %v2788, %v2764
        %v2790 = vsel %vm2703, %v2376, %v2787
        %v2791 = vsel %vm2703, 0, %v2789
        %v2792 = vcosq.f32.pop %v2790
        %v2793 = vsinq.f32.pop %v2790
        %vm2794 = vweird.f32 %v2376
        %v2795 = vadd.s32 %v2791, 3
        %v2796 = vand.u32 %v2795, 3
        %vm2797 = vcmp.lt.s32.totalorder %v2796, 2
        %vm2798 = vcmp.eq.s32.totalorder %v2796, 0
        %v2799 = vxor.u32 %v2793, 2147483648
        %v2800 = vsel %vm2798, %v2792, %v2799
        %vm2801 = vcmp.eq.s32.totalorder %v2796, 2
        %v2802 = vxor.u32 %v2792, 2147483648
        %v2803 = vsel %vm2801, %v2802, %v2793
        %v2804 = vsel %vm2797, %v2800, %v2803
        %v2805 = vsel %vm2794, nan, %v2804
        %v2806 = vand.u32 2147483647, %v2380
        %vm2807 = vcmp.le.f32.partialorder %v2806, 0.7853982
        %vm2808 = vcmp.lt.s32.totalorder %v2380, 0
        %v2809 = vand.u32 %v2380, 2139095040
        %v2810 = vshrl.u32 %v2809, 23
        %v2811 = vsub.s32 %v2810, 127
        %v2812 = vand.u32 2147483647, %v2380
        %v2813 = vand.u32 %v2812, 8388607
        %v2814 = vor.u32 %v2813, 8388608
        %v2815 = vsub.s32 0, %v2814
        %v2816 = vadd.s32 %v2811, 1
        %vm2817 = vcmp.gt.s32.totalorder %v2816, 0
        %v2818 = vsel %vm2817, %v2816, 0
        %v2819 = vshrl.u32 %v2818, 5
        %v2820 = vand.u32 %v2818, 31
        %v2821 = vsub.s32 32, %v2820
        %v2822 = vshrl.u32 683565275, %v2821
        %v2823 = vshll.u32 683565275, %v2820
        %v2824 = vshrl.u32 2475754826, %v2821
        %v2825 = vor.u32 %v2823, %v2824
        %v2826 = vshll.u32 2475754826, %v2820
        %v2827 = vshrl.u32 2131351028, %v2821
        %v2828 = vor.u32 %v2826, %v2827
        %v2829 = vshll.u32 2131351028, %v2820
        %v2830 = vshrl.u32 2102212464, %v2821
        %v2831 = vor.u32 %v2829, %v2830
        %v2832 = vshll.u32 2102212464, %v2820
        %v2833 = vshrl.u32 920167782, %v2821
        %v2834 = vor.u32 %v2832, %v2833
        %v2835 = vshll.u32 920167782, %v2820
        %v2836 = vshrl.u32 1326507024, %v2821
        %v2837 = vor.u32 %v2835, %v2836
        %vm2838 = vcmp.lt.s32.totalorder %v2819, 1
        %vm2839 = vcmp.lt.s32.totalorder %v2819, 2
        %vm2840 = vcmp.lt.s32.totalorder %v2819, 3
        %vm2841 = vcmp.lt.s32.totalorder %v2819, 4
        %v2842 = vsel %vm2838, %v2822, %v2825
        %v2843 = vsel %vm2841, %v2831, 2102212464
        %v2844 = vsel %vm2840, %v2828, %v2843
        %v2845 = vsel %vm2839, %v2842, %v2844
        %v2846 = vsel %vm2838, %v2825, %v2828
        %v2847 = vsel %vm2841, %v2834, 920167782
        %v2848 = vsel %vm2840, %v2831, %v2847
        %v2849 = vsel %vm2839, %v2846, %v2848
        %v2850 = vsel %vm2838, %v2828, %v2831
        %v2851 = vsel %vm2841, %v2837, 1326507024
        %v2852 = vsel %vm2840, %v2834, %v2851
        %v2853 = vsel %vm2839, %v2850, %v2852
        %v2854 = vshll.u32 %v2814, 8
        %v2855 = vmul.u32.u64.compose %v2854, %v2853
        %v2856 = vextract.low.u32 %v2855
        %v2857 = vextract.high.u32 %v2855
        %v2858 = vmul.u32.u64.compose %v2854, %v2849
        %v2859 = vextract.low.u32 %v2858
        %v2860 = vextract.high.u32 %v2858
        %v2861 = vmul.u32 %v2854, %v2845
        %v2862 = vadd.s32 %v2857, %v2859
        %vm2863 = vc.u32 %v2857, %v2859
        %v2864 = vadd.s32 %v2860, 1
        %v2865 = vsel %vm2863, %v2864, %v2860
        %v2866 = vadd.s32 %v2861, %v2865
        %v2867 = vadd.s32 %v2866, 536870912
        %v2868 = vshrl.u32 %v2867, 30
        %v2869 = vshll.u32 %v2868, 30
        %v2870 = vsub.s32 %v2866, %v2869
        %vm2871 = vcmp.lt.s32.totalorder %v2870, 0
        %v2872 = vsub.s32 0, %v2870
        %v2873 = vsel %vm2871, %v2872, %v2870
        %v2874 = vclz %v2873
        %v2875 = vsub.s32 %v2874, 2
        %vm2876 = vcmp.gt.s32.totalorder 0, %v2875
        %v2877 = vsel %vm2876, 0, %v2875
        %v2878 = vsub.s32 32, %v2877
        %v2879 = vshll.u32 %v2870, %v2877
        %v2880 = vshrl.u32 %v2862, %v2878
        %v2881 = vor.u32 %v2879, %v2880
        %v2882 = vsub.s32 4294967266, %v2877
        %v2883 = vadd.s32 %v2882, 127
        %v2884 = vshll.u32 %v2883, 23
        %v2885 = vor.u32 4788187, %v2884
        %v2886 = vand.u32 2147483647, %v2885
        %v2888 = vcvt.s32.f32 %v2881
        %v2889 = vmul.f32 %v2888, %v2886
        %v2890 = vxor.u32 %v2889, 2147483648
        %v2891 = vsel %vm2808, %v2890, %v2889
        %v2892 = vsub.s32 4, %v2868
        %v2893 = vsel %vm2808, %v2892, %v2868
        %v2894 = vsel %vm2807, %v2380, %v2891
        %v2895 = vsel %vm2807, 0, %v2893
        %v2896 = vcosq.f32.pop %v2894
        %v2897 = vsinq.f32.pop %v2894
        %vm2898 = vweird.f32 %v2380
        %v2899 = vadd.s32 %v2895, 3
        %v2900 = vand.u32 %v2899, 3
        %vm2901 = vcmp.lt.s32.totalorder %v2900, 2
        %vm2902 = vcmp.eq.s32.totalorder %v2900, 0
        %v2903 = vxor.u32 %v2897, 2147483648
        %v2904 = vsel %vm2902, %v2896, %v2903
        %vm2905 = vcmp.eq.s32.totalorder %v2900, 2
        %v2906 = vxor.u32 %v2896, 2147483648
        %v2907 = vsel %vm2905, %v2906, %v2897
        %v2908 = vsel %vm2901, %v2904, %v2907
        %v2909 = vsel %vm2898, nan, %v2908
        %v2910 = vand.u32 2147483647, %v2382
        %vm2911 = vcmp.le.f32.partialorder %v2910, 0.7853982
        %vm2912 = vcmp.lt.s32.totalorder %v2382, 0
        %v2913 = vand.u32 %v2382, 2139095040
        %v2914 = vshrl.u32 %v2913, 23
        %v2915 = vsub.s32 %v2914, 127
        %v2916 = vand.u32 2147483647, %v2382
        %v2917 = vand.u32 %v2916, 8388607
        %v2918 = vor.u32 %v2917, 8388608
        %v2919 = vsub.s32 0, %v2918
        %v2920 = vadd.s32 %v2915, 1
        %vm2921 = vcmp.gt.s32.totalorder %v2920, 0
        %v2922 = vsel %vm2921, %v2920, 0
        %v2923 = vshrl.u32 %v2922, 5
        %v2924 = vand.u32 %v2922, 31
        %v2925 = vsub.s32 32, %v2924
        %v2926 = vshrl.u32 683565275, %v2925
        %v2927 = vshll.u32 683565275, %v2924
        %v2928 = vshrl.u32 2475754826, %v2925
        %v2929 = vor.u32 %v2927, %v2928
        %v2930 = vshll.u32 2475754826, %v2924
        %v2931 = vshrl.u32 2131351028, %v2925
        %v2932 = vor.u32 %v2930, %v2931
        %v2933 = vshll.u32 2131351028, %v2924
        %v2934 = vshrl.u32 2102212464, %v2925
        %v2935 = vor.u32 %v2933, %v2934
        %v2936 = vshll.u32 2102212464, %v2924
        %v2937 = vshrl.u32 920167782, %v2925
        %v2938 = vor.u32 %v2936, %v2937
        %v2939 = vshll.u32 920167782, %v2924
        %v2940 = vshrl.u32 1326507024, %v2925
        %v2941 = vor.u32 %v2939, %v2940
        %vm2942 = vcmp.lt.s32.totalorder %v2923, 1
        %vm2943 = vcmp.lt.s32.totalorder %v2923, 2
        %vm2944 = vcmp.lt.s32.totalorder %v2923, 3
        %vm2945 = vcmp.lt.s32.totalorder %v2923, 4
        %v2946 = vsel %vm2942, %v2926, %v2929
        %v2947 = vsel %vm2945, %v2935, 2102212464
        %v2948 = vsel %vm2944, %v2932, %v2947
        %v2949 = vsel %vm2943, %v2946, %v2948
        %v2950 = vsel %vm2942, %v2929, %v2932
        %v2951 = vsel %vm2945, %v2938, 920167782
        %v2952 = vsel %vm2944, %v2935, %v2951
        %v2953 = vsel %vm2943, %v2950, %v2952
        %v2954 = vsel %vm2942, %v2932, %v2935
        %v2955 = vsel %vm2945, %v2941, 1326507024
        %v2956 = vsel %vm2944, %v2938, %v2955
        %v2957 = vsel %vm2943, %v2954, %v2956
        %v2958 = vshll.u32 %v2918, 8
        %v2959 = vmul.u32.u64.compose %v2958, %v2957
        %v2960 = vextract.low.u32 %v2959
        %v2961 = vextract.high.u32 %v2959
        %v2962 = vmul.u32.u64.compose %v2958, %v2953
        %v2963 = vextract.low.u32 %v2962
        %v2964 = vextract.high.u32 %v2962
        %v2965 = vmul.u32 %v2958, %v2949
        %v2966 = vadd.s32 %v2961, %v2963
        %vm2967 = vc.u32 %v2961, %v2963
        %v2968 = vadd.s32 %v2964, 1
        %v2969 = vsel %vm2967, %v2968, %v2964
        %v2970 = vadd.s32 %v2965, %v2969
        %v2971 = vadd.s32 %v2970, 536870912
        %v2972 = vshrl.u32 %v2971, 30
        %v2973 = vshll.u32 %v2972, 30
        %v2974 = vsub.s32 %v2970, %v2973
        %vm2975 = vcmp.lt.s32.totalorder %v2974, 0
        %v2976 = vsub.s32 0, %v2974
        %v2977 = vsel %vm2975, %v2976, %v2974
        %v2978 = vclz %v2977
        %v2979 = vsub.s32 %v2978, 2
        %vm2980 = vcmp.gt.s32.totalorder 0, %v2979
        %v2981 = vsel %vm2980, 0, %v2979
        %v2982 = vsub.s32 32, %v2981
        %v2983 = vshll.u32 %v2974, %v2981
        %v2984 = vshrl.u32 %v2966, %v2982
        %v2985 = vor.u32 %v2983, %v2984
        %v2986 = vsub.s32 4294967266, %v2981
        %v2987 = vadd.s32 %v2986, 127
        %v2988 = vshll.u32 %v2987, 23
        %v2989 = vor.u32 4788187, %v2988
        %v2990 = vand.u32 2147483647, %v2989
        %v2992 = vcvt.s32.f32 %v2985
        %v2993 = vmul.f32 %v2992, %v2990
        %v2994 = vxor.u32 %v2993, 2147483648
        %v2995 = vsel %vm2912, %v2994, %v2993
        %v2996 = vsub.s32 4, %v2972
        %v2997 = vsel %vm2912, %v2996, %v2972
        %v2998 = vsel %vm2911, %v2382, %v2995
        %v2999 = vsel %vm2911, 0, %v2997
        %v3000 = vcosq.f32.pop %v2998
        %v3001 = vsinq.f32.pop %v2998
        %vm3002 = vweird.f32 %v2382
        %v3003 = vadd.s32 %v2999, 3
        %v3004 = vand.u32 %v3003, 3
        %vm3005 = vcmp.lt.s32.totalorder %v3004, 2
        %vm3006 = vcmp.eq.s32.totalorder %v3004, 0
        %v3007 = vxor.u32 %v3001, 2147483648
        %v3008 = vsel %vm3006, %v3000, %v3007
        %vm3009 = vcmp.eq.s32.totalorder %v3004, 2
        %v3010 = vxor.u32 %v3000, 2147483648
        %v3011 = vsel %vm3009, %v3010, %v3001
        %v3012 = vsel %vm3005, %v3008, %v3011
        %v3013 = vsel %vm3002, nan, %v3012
        %v3014 = vand.u32 2147483647, %v2386
        %vm3015 = vcmp.le.f32.partialorder %v3014, 0.7853982
        %vm3016 = vcmp.lt.s32.totalorder %v2386, 0
        %v3017 = vand.u32 %v2386, 2139095040
        %v3018 = vshrl.u32 %v3017, 23
        %v3019 = vsub.s32 %v3018, 127
        %v3020 = vand.u32 2147483647, %v2386
        %v3021 = vand.u32 %v3020, 8388607
        %v3022 = vor.u32 %v3021, 8388608
        %v3023 = vsub.s32 0, %v3022
        %v3024 = vadd.s32 %v3019, 1
        %vm3025 = vcmp.gt.s32.totalorder %v3024, 0
        %v3026 = vsel %vm3025, %v3024, 0
        %v3027 = vshrl.u32 %v3026, 5
        %v3028 = vand.u32 %v3026, 31
        %v3029 = vsub.s32 32, %v3028
        %v3030 = vshrl.u32 683565275, %v3029
        %v3031 = vshll.u32 683565275, %v3028
        %v3032 = vshrl.u32 2475754826, %v3029
        %v3033 = vor.u32 %v3031, %v3032
        %v3034 = vshll.u32 2475754826, %v3028
        %v3035 = vshrl.u32 2131351028, %v3029
        %v3036 = vor.u32 %v3034, %v3035
        %v3037 = vshll.u32 2131351028, %v3028
        %v3038 = vshrl.u32 2102212464, %v3029
        %v3039 = vor.u32 %v3037, %v3038
        %v3040 = vshll.u32 2102212464, %v3028
        %v3041 = vshrl.u32 920167782, %v3029
        %v3042 = vor.u32 %v3040, %v3041
        %v3043 = vshll.u32 920167782, %v3028
        %v3044 = vshrl.u32 1326507024, %v3029
        %v3045 = vor.u32 %v3043, %v3044
        %vm3046 = vcmp.lt.s32.totalorder %v3027, 1
        %vm3047 = vcmp.lt.s32.totalorder %v3027, 2
        %vm3048 = vcmp.lt.s32.totalorder %v3027, 3
        %vm3049 = vcmp.lt.s32.totalorder %v3027, 4
        %v3050 = vsel %vm3046, %v3030, %v3033
        %v3051 = vsel %vm3049, %v3039, 2102212464
        %v3052 = vsel %vm3048, %v3036, %v3051
        %v3053 = vsel %vm3047, %v3050, %v3052
        %v3054 = vsel %vm3046, %v3033, %v3036
        %v3055 = vsel %vm3049, %v3042, 920167782
        %v3056 = vsel %vm3048, %v3039, %v3055
        %v3057 = vsel %vm3047, %v3054, %v3056
        %v3058 = vsel %vm3046, %v3036, %v3039
        %v3059 = vsel %vm3049, %v3045, 1326507024
        %v3060 = vsel %vm3048, %v3042, %v3059
        %v3061 = vsel %vm3047, %v3058, %v3060
        %v3062 = vshll.u32 %v3022, 8
        %v3063 = vmul.u32.u64.compose %v3062, %v3061
        %v3064 = vextract.low.u32 %v3063
        %v3065 = vextract.high.u32 %v3063
        %v3066 = vmul.u32.u64.compose %v3062, %v3057
        %v3067 = vextract.low.u32 %v3066
        %v3068 = vextract.high.u32 %v3066
        %v3069 = vmul.u32 %v3062, %v3053
        %v3070 = vadd.s32 %v3065, %v3067
        %vm3071 = vc.u32 %v3065, %v3067
        %v3072 = vadd.s32 %v3068, 1
        %v3073 = vsel %vm3071, %v3072, %v3068
        %v3074 = vadd.s32 %v3069, %v3073
        %v3075 = vadd.s32 %v3074, 536870912
        %v3076 = vshrl.u32 %v3075, 30
        %v3077 = vshll.u32 %v3076, 30
        %v3078 = vsub.s32 %v3074, %v3077
        %vm3079 = vcmp.lt.s32.totalorder %v3078, 0
        %v3080 = vsub.s32 0, %v3078
        %v3081 = vsel %vm3079, %v3080, %v3078
        %v3082 = vclz %v3081
        %v3083 = vsub.s32 %v3082, 2
        %vm3084 = vcmp.gt.s32.totalorder 0, %v3083
        %v3085 = vsel %vm3084, 0, %v3083
        %v3086 = vsub.s32 32, %v3085
        %v3087 = vshll.u32 %v3078, %v3085
        %v3088 = vshrl.u32 %v3070, %v3086
        %v3089 = vor.u32 %v3087, %v3088
        %v3090 = vsub.s32 4294967266, %v3085
        %v3091 = vadd.s32 %v3090, 127
        %v3092 = vshll.u32 %v3091, 23
        %v3093 = vor.u32 4788187, %v3092
        %v3094 = vand.u32 2147483647, %v3093
        %v3096 = vcvt.s32.f32 %v3089
        %v3097 = vmul.f32 %v3096, %v3094
        %v3098 = vxor.u32 %v3097, 2147483648
        %v3099 = vsel %vm3016, %v3098, %v3097
        %v3100 = vsub.s32 4, %v3076
        %v3101 = vsel %vm3016, %v3100, %v3076
        %v3102 = vsel %vm3015, %v2386, %v3099
        %v3103 = vsel %vm3015, 0, %v3101
        %v3104 = vcosq.f32.pop %v3102
        %v3105 = vsinq.f32.pop %v3102
        %vm3106 = vweird.f32 %v2386
        %v3107 = vadd.s32 %v3103, 3
        %v3108 = vand.u32 %v3107, 3
        %vm3109 = vcmp.lt.s32.totalorder %v3108, 2
        %vm3110 = vcmp.eq.s32.totalorder %v3108, 0
        %v3111 = vxor.u32 %v3105, 2147483648
        %v3112 = vsel %vm3110, %v3104, %v3111
        %vm3113 = vcmp.eq.s32.totalorder %v3108, 2
        %v3114 = vxor.u32 %v3104, 2147483648
        %v3115 = vsel %vm3113, %v3114, %v3105
        %v3116 = vsel %vm3109, %v3112, %v3115
        %v3117 = vsel %vm3106, nan, %v3116
        %v3118 = vand.u32 2147483647, %v2388
        %vm3119 = vcmp.le.f32.partialorder %v3118, 0.7853982
        %vm3120 = vcmp.lt.s32.totalorder %v2388, 0
        %v3121 = vand.u32 %v2388, 2139095040
        %v3122 = vshrl.u32 %v3121, 23
        %v3123 = vsub.s32 %v3122, 127
        %v3124 = vand.u32 2147483647, %v2388
        %v3125 = vand.u32 %v3124, 8388607
        %v3126 = vor.u32 %v3125, 8388608
        %v3127 = vsub.s32 0, %v3126
        %v3128 = vadd.s32 %v3123, 1
        %vm3129 = vcmp.gt.s32.totalorder %v3128, 0
        %v3130 = vsel %vm3129, %v3128, 0
        %v3131 = vshrl.u32 %v3130, 5
        %v3132 = vand.u32 %v3130, 31
        %v3133 = vsub.s32 32, %v3132
        %v3134 = vshrl.u32 683565275, %v3133
        %v3135 = vshll.u32 683565275, %v3132
        %v3136 = vshrl.u32 2475754826, %v3133
        %v3137 = vor.u32 %v3135, %v3136
        %v3138 = vshll.u32 2475754826, %v3132
        %v3139 = vshrl.u32 2131351028, %v3133
        %v3140 = vor.u32 %v3138, %v3139
        %v3141 = vshll.u32 2131351028, %v3132
        %v3142 = vshrl.u32 2102212464, %v3133
        %v3143 = vor.u32 %v3141, %v3142
        %v3144 = vshll.u32 2102212464, %v3132
        %v3145 = vshrl.u32 920167782, %v3133
        %v3146 = vor.u32 %v3144, %v3145
        %v3147 = vshll.u32 920167782, %v3132
        %v3148 = vshrl.u32 1326507024, %v3133
        %v3149 = vor.u32 %v3147, %v3148
        %vm3150 = vcmp.lt.s32.totalorder %v3131, 1
        %vm3151 = vcmp.lt.s32.totalorder %v3131, 2
        %vm3152 = vcmp.lt.s32.totalorder %v3131, 3
        %vm3153 = vcmp.lt.s32.totalorder %v3131, 4
        %v3154 = vsel %vm3150, %v3134, %v3137
        %v3155 = vsel %vm3153, %v3143, 2102212464
        %v3156 = vsel %vm3152, %v3140, %v3155
        %v3157 = vsel %vm3151, %v3154, %v3156
        %v3158 = vsel %vm3150, %v3137, %v3140
        %v3159 = vsel %vm3153, %v3146, 920167782
        %v3160 = vsel %vm3152, %v3143, %v3159
        %v3161 = vsel %vm3151, %v3158, %v3160
        %v3162 = vsel %vm3150, %v3140, %v3143
        %v3163 = vsel %vm3153, %v3149, 1326507024
        %v3164 = vsel %vm3152, %v3146, %v3163
        %v3165 = vsel %vm3151, %v3162, %v3164
        %v3166 = vshll.u32 %v3126, 8
        %v3167 = vmul.u32.u64.compose %v3166, %v3165
        %v3168 = vextract.low.u32 %v3167
        %v3169 = vextract.high.u32 %v3167
        %v3170 = vmul.u32.u64.compose %v3166, %v3161
        %v3171 = vextract.low.u32 %v3170
        %v3172 = vextract.high.u32 %v3170
        %v3173 = vmul.u32 %v3166, %v3157
        %v3174 = vadd.s32 %v3169, %v3171
        %vm3175 = vc.u32 %v3169, %v3171
        %v3176 = vadd.s32 %v3172, 1
        %v3177 = vsel %vm3175, %v3176, %v3172
        %v3178 = vadd.s32 %v3173, %v3177
        %v3179 = vadd.s32 %v3178, 536870912
        %v3180 = vshrl.u32 %v3179, 30
        %v3181 = vshll.u32 %v3180, 30
        %v3182 = vsub.s32 %v3178, %v3181
        %vm3183 = vcmp.lt.s32.totalorder %v3182, 0
        %v3184 = vsub.s32 0, %v3182
        %v3185 = vsel %vm3183, %v3184, %v3182
        %v3186 = vclz %v3185
        %v3187 = vsub.s32 %v3186, 2
        %vm3188 = vcmp.gt.s32.totalorder 0, %v3187
        %v3189 = vsel %vm3188, 0, %v3187
        %v3190 = vsub.s32 32, %v3189
        %v3191 = vshll.u32 %v3182, %v3189
        %v3192 = vshrl.u32 %v3174, %v3190
        %v3193 = vor.u32 %v3191, %v3192
        %v3194 = vsub.s32 4294967266, %v3189
        %v3195 = vadd.s32 %v3194, 127
        %v3196 = vshll.u32 %v3195, 23
        %v3197 = vor.u32 4788187, %v3196
        %v3198 = vand.u32 2147483647, %v3197
        %v3200 = vcvt.s32.f32 %v3193
        %v3201 = vmul.f32 %v3200, %v3198
        %v3202 = vxor.u32 %v3201, 2147483648
        %v3203 = vsel %vm3120, %v3202, %v3201
        %v3204 = vsub.s32 4, %v3180
        %v3205 = vsel %vm3120, %v3204, %v3180
        %v3206 = vsel %vm3119, %v2388, %v3203
        %v3207 = vsel %vm3119, 0, %v3205
        %v3208 = vcosq.f32.pop %v3206
        %v3209 = vsinq.f32.pop %v3206
        %vm3210 = vweird.f32 %v2388
        %v3211 = vadd.s32 %v3207, 3
        %v3212 = vand.u32 %v3211, 3
        %vm3213 = vcmp.lt.s32.totalorder %v3212, 2
        %vm3214 = vcmp.eq.s32.totalorder %v3212, 0
        %v3215 = vxor.u32 %v3209, 2147483648
        %v3216 = vsel %vm3214, %v3208, %v3215
        %vm3217 = vcmp.eq.s32.totalorder %v3212, 2
        %v3218 = vxor.u32 %v3208, 2147483648
        %v3219 = vsel %vm3217, %v3218, %v3209
        %v3220 = vsel %vm3213, %v3216, %v3219
        %v3221 = vsel %vm3210, nan, %v3220
        %v3222 = vld [vmem:[%s7] sm:$0x1]
        %v3224 = vsel %vm1327, %v3222, 0
        %3226 = vmatprep.subr.mxu0 0.0
        %3227 = vmatpush1.msra.mxu0 0.0
        %3228 = vmatprep.subr.mxu0 0.0
        %3229 = vmatpush1.msra.mxu0 0.0
        %3230 = vmatprep.subr.mxu0 0.0
        %3231 = vmatpush1.msra.mxu0 0.0
        %3232 = vmatprep.subr.mxu0 0.0
        %3233 = vmatpush1.msra.mxu0 0.0
        %3234 = vmatprep.subr.mxu0 0.0
        %3235 = vmatpush1.msra.mxu0 0.0
        %3236 = vmatprep.subr.mxu0 0.0
        %3237 = vmatpush1.msra.mxu0 0.0
        %3238 = vmatprep.subr.mxu0 0.0
        %3239 = vmatpush1.msra.mxu0 0.0
        %3240 = vmatprep.subr.mxu0 0.0
        %3241 = vmatpush1.msra.mxu0 0.0
        %3242 = vmatprep.subr.mxu0 0.0
        %3243 = vmatpush1.msra.mxu0 0.0
        %3244 = vmatprep.subr.mxu0 0.0
        %3245 = vmatpush1.msra.mxu0 0.0
        %3246 = vmatprep.subr.mxu0 0.0
        %3247 = vmatpush1.msra.mxu0 0.0
        %3248 = vmatprep.subr.mxu0 0.0
        %3249 = vmatpush1.msra.mxu0 0.0
        %3250 = vmatprep.subr.mxu0 %v3221
        %3251 = vmatpush1.msra.mxu0 %v3117
        %3252 = vmatprep.subr.mxu0 %v3013
        %3253 = vmatpush1.msra.mxu0 %v2909
        %3254 = vmatprep.subr.mxu0 %v2805
        %3255 = vmatpush1.msra.mxu0 %v2701
        %3256 = vmatprep.subr.mxu0 %v2597
        %3257 = vmatpush1.msra.mxu0 %v2493
        %3258 = vmatprep.subr.mxu0 0.0
        %3259 = vmatpush2.msra.mxu0 0.0
        %3260 = vmatprep.subr.mxu0 0.0
        %3261 = vmatpush2.msra.mxu0 0.0
        %3262 = vmatprep.subr.mxu0 0.0
        %3263 = vmatpush2.msra.mxu0 0.0
        %3264 = vmatprep.subr.mxu0 0.0
        %3265 = vmatpush2.msra.mxu0 0.0
        %3266 = vmatprep.subr.mxu0 0.0
        %3267 = vmatpush2.msra.mxu0 0.0
        %3268 = vmatprep.subr.mxu0 0.0
        %3269 = vmatpush2.msra.mxu0 0.0
        %3270 = vmatprep.subr.mxu0 0.0
        %3271 = vmatpush2.msra.mxu0 0.0
        %3272 = vmatprep.subr.mxu0 0.0
        %3273 = vmatpush2.msra.mxu0 0.0
        %3274 = vmatprep.subr.mxu0 0.0
        %3275 = vmatpush2.msra.mxu0 0.0
        %3276 = vmatprep.subr.mxu0 0.0
        %3277 = vmatpush2.msra.mxu0 0.0
        %3278 = vmatprep.subr.mxu0 0.0
        %3279 = vmatpush2.msra.mxu0 0.0
        %3280 = vmatprep.subr.mxu0 0.0
        %3281 = vmatpush2.msra.mxu0 0.0
        %3282 = vmatprep.subr.mxu0 0.0
        %3283 = vmatpush2.msra.mxu0 0.0
        %3284 = vmatprep.subr.mxu0 0.0
        %3285 = vmatpush2.msra.mxu0 0.0
        %3286 = vmatprep.subr.mxu0 0.0
        %3287 = vmatpush2.msra.mxu0 0.0
        %3288 = vmatprep.subr.mxu0 0.0
        %3289 = vmatpush2.msra.mxu0 0.0
        %3290 = vmatprep.mubr.f32.mxu0 0.0
        %3291 = vmatmul.mubr.f32.gmra.mxu0 %v3224
        %v3292 = vpop.f32.mrf.mxu0
        %v3293 = vadd.f32 0.0, %v3292
        %v3294 = vpop.f32.mrf.mxu0
        %v3295 = vadd.f32 0.0, %v3294
        %3296 = vdwg.mxu0
        %v3299 = vcombine.low %v3293, %v3295
        %v3301 = vunpack.c.l.s4 1966171168
        %v3302 = vunpack.c.0.s8 %v3301
        %v3303 = vlaneseq
        %v3304 = vshrl.u32 %v3303, 7
        %v3305 = vsub.s32 %v3302, %v3304
        %v3306 = vrot.slane %v3299, %v3305
        %v3308 = vunpack.c.l.s4 1966171168
        %v3309 = vunpack.c.0.s8 %v3308
        %v3310 = vlaneseq
        %v3311 = vshrl.u32 %v3310, 7
        %v3312 = vsub.s32 %v3309, %v3311
        %v3313 = vrot.slane %v3306, %v3312
        %v3315 = vlaneseq
        %vm3316 = vcmp.ge.s32.totalorder %v3315, 0
        %vm3317 = vcmp.lt.s32.totalorder %v3315, 256
        %vm3318 = vmand %vm3316, %vm3317
        %3319 = vst.msk [vmem:[%s320] sm:$0x3] %vm3318, %v3313
        %s3320 = smul.u32 2, %s20
        %p3321 = scmp.lt.s32.totalorder %s3320, 7
        %s3322 = scalar_select %p3321, %s3320, 7
        %s3323 = scalar_lea.vmem %s8, %s3322
        // Predicated region
        $region57: #{_lambda_.1} parent=51 // pred_check
          %p3324 = pneg %p211
        $region58: #{_lambda_.1} parent=51 // pred_check_branch
          %3326 = sbr.rel (%p3324) target = $region60
        $region59: #{_lambda_.1} parent=51 // pred_region
          %s3327 = smul.u32 2, %s20
        $region60: #{_lambda_.1} parent=51 // pred_fallthru
          _
      $region52: #{_lambda_.1} parent=5 // pred_fallthru
        _
      %p3328 = scmp.le.s32.totalorder 2, %s15
      // Predicated region
      $region61: #{_lambda_.1} parent=5 // pred_check
        %p3329 = pneg %p3328
      $region62: #{_lambda_.1} parent=5 // pred_check_branch
        %3331 = sbr.rel (%p3329) target = $region64
      $region63: #{_lambda_.1} parent=5 // pred_region
        %s3332 = ssub.s32 %s15, 2
        // Predicated region
        $region65: #{_lambda_.1} parent=63 // pred_check
          %p3333 = pneg %p217
        $region66: #{_lambda_.1} parent=63 // pred_check_branch
          %3335 = sbr.rel (%p3333) target = $region68
        $region67: #{_lambda_.1} parent=63 // pred_region
          %s3336 = smul.u32 2, %s21
          %p3337 = scmp.lt.s32.totalorder %s3336, 7
          %s3338 = scalar_select %p3337, %s3336, 7
          %s3339 = scalar_lea.vmem %s8, %s3338
        $region68: #{_lambda_.1} parent=63 // pred_fallthru
          _
      $region64: #{_lambda_.1} parent=5 // pred_fallthru
        _
    $region6: #{_lambda_.1} parent=1 // loop_footer
      %s19 = sadd.s32 1, %s15
    $region7: #{_lambda_.1} parent=1 // loop_footer_branch
      %14 = sbr.rel target = $region3
    $region8: #{_lambda_.1} parent=1 // loop_exit
      _
    %3340 = vsyncpa [#allocation3], 1
    %s3341 = scalar_lea.sflag [#allocation3], 1
    %3342 = vsyncpa %s3341, 1

</llo_original>
